<compile_context>
chip_gen: v5e
topology: v5e:2x2
jax: 0.10.0
libtpu: 0.0.40
codegen_flags: <defaults>
</compile_context>

<pallas_src>
import jax
import jax.numpy as jnp
from jax.experimental import pallas as pl
from jax.experimental.pallas import tpu as pltpu


# Explicit scoped-VMEM limit: v5e's default is only 16 MiB; 64 MiB is within
# physical VMEM on v5e/v6e (128 MiB) and v7x (64 MiB).
_VMEM_LIMIT_BYTES = 64 * 1024 * 1024


def _largest_divisor_leq(n, cap):
    """Largest divisor of n that is <= cap (block-size picker)."""
    for cand in range(min(n, cap), 0, -1):
        if n % cand == 0:
            return cand
    return 1


# ---------------------------------------------------------------------------
# Phase 1: hoisted input projection  gates_in[t] = x_t @ W_ih^T + (b_ih + b_hh)
# ---------------------------------------------------------------------------
def _input_proj_kernel(x_ref, w_ref, b_ref, o_ref):
    """o = x @ W_ih^T + bias for one (TM, D) row block.

    The cast to the weight dtype (bf16 fast path) happens in-kernel so the
    matmul runs at bf16 MXU rate with f32 accumulation.
    """
    x = x_ref[...].astype(w_ref.dtype)
    o_ref[...] = (
        jnp.dot(x, w_ref[...], preferred_element_type=jnp.float32) + b_ref[...]
    ).astype(o_ref.dtype)


def _input_projection(x, wih_t, bias):
    """(S, B, D) -> (S, B, 4H) f32: input half of the gates for ALL timesteps."""
    S, B, D = x.shape
    G = wih_t.shape[1]                      # 4H
    sb = S * B
    x2 = x.reshape(sb, D)                   # contiguous, free reshape
    tm = _largest_divisor_leq(sb, 512)      # sublane-dense row block

    out = pl.pallas_call(
        _input_proj_kernel,
        out_shape=jax.ShapeDtypeStruct((sb, G), jnp.float32),
        grid_spec=pltpu.PrefetchScalarGridSpec(
            num_scalar_prefetch=0,
            grid=(sb // tm,),
            in_specs=[
                pl.BlockSpec((tm, D), lambda i: (i, 0)),    # x row block
                pl.BlockSpec((D, G), lambda i: (0, 0)),     # W_ih^T (resident)
                pl.BlockSpec((1, G), lambda i: (0, 0)),     # fused bias
            ],
            out_specs=pl.BlockSpec((tm, G), lambda i: (i, 0)),
        ),
        compiler_params=pltpu.CompilerParams(
            dimension_semantics=("parallel",),              # rows are independent
            vmem_limit_bytes=_VMEM_LIMIT_BYTES,
        ),
    )(x2, wih_t, bias)
    return out.reshape(S, B, G)


# ---------------------------------------------------------------------------
# Phase 2: the recurrence (time-blocked)
# ---------------------------------------------------------------------------
def _lstm_recurrent_kernel(gin_ref, whh_ref, h0_ref, c0_ref,
                           y_ref, hn_ref, cn_ref, h_scr, c_scr):
    """T_BLK timesteps of the LSTM recurrence for the full batch.

    gin_ref : (T_BLK, B, 4H) f32   precomputed x_t @ W_ih^T + bias
    whh_ref : (H, 4H)              W_hh^T (VMEM-resident across the time grid)
    h0/c0   : (B, H)               initial state (read only on the first step)
    y_ref   : (T_BLK, B, H)        per-step hidden outputs (lane-dense)
    hn/cn   : (B, H)               final state (written once on last grid step)
    h_scr/c_scr : (B, H) f32       recurrence carry (persists across grid steps)
    """
    tb = pl.program_id(0)

    @pl.when(tb == 0)
    def _():
        h_scr[...] = h0_ref[...].astype(jnp.float32)
        c_scr[...] = c0_ref[...].astype(jnp.float32)

    H = h_scr.shape[-1]
    t_blk = gin_ref.shape[0]
    w_hh = whh_ref[...]                     # hoisted once per grid step

    # Fully unrolled static time loop (all indices static -> no dynamic-slice
    # overhead; whole block visible to the scheduler for MXU/VPU/EUP overlap).
    for t in range(t_blk):
        h_prev = h_scr[...]
        c_prev = c_scr[...]
        # Only the unavoidable recurrent matmul sits on the serial h->h path.
        gates = gin_ref[t] + jnp.dot(
            h_prev.astype(w_hh.dtype), w_hh, preferred_element_type=jnp.float32)

        # PyTorch gate order: i, f, g, o (H % 128 == 0 -> 128-lane aligned slices)
        i_g = jax.nn.sigmoid(gates[:, 0 * H:1 * H])
        f_g = jax.nn.sigmoid(gates[:, 1 * H:2 * H])
        g_g = jnp.tanh(gates[:, 2 * H:3 * H])
        o_g = jax.nn.sigmoid(gates[:, 3 * H:4 * H])

        c_new = f_g * c_prev + i_g * g_g
        h_new = o_g * jnp.tanh(c_new)

        h_scr[...] = h_new
        c_scr[...] = c_new
        y_ref[t] = h_new.astype(y_ref.dtype)

    # Final state written back exactly once (no per-step redundant stores).
    @pl.when(tb == pl.num_programs(0) - 1)
    def _():
        hn_ref[...] = h_scr[...].astype(hn_ref.dtype)
        cn_ref[...] = c_scr[...].astype(cn_ref.dtype)


def _lstm_layer(gates_in, whh_t, h0, c0, out_dtype, t_blk_cap=32):
    """Run the recurrence of one LSTM layer over the whole sequence."""
    S, B, G = gates_in.shape
    H = h0.shape[-1]
    t_blk = _largest_divisor_leq(S, t_blk_cap)

    grid_spec = pltpu.PrefetchScalarGridSpec(
        num_scalar_prefetch=0,
        grid=(S // t_blk,),
        in_specs=[
            pl.BlockSpec((t_blk, B, G), lambda tb: (tb, 0, 0)),   # gates_in block
            # Constant-index (VMEM-resident) inputs.
            # TODO(synk): at large H on v7x add pipeline_mode=pl.Buffered(1) so
            #             the resident weight is not double-buffered.
            pl.BlockSpec((H, G), lambda tb: (0, 0)),              # W_hh^T
            pl.BlockSpec((B, H), lambda tb: (0, 0)),              # h0
            pl.BlockSpec((B, H), lambda tb: (0, 0)),              # c0
        ],
        out_specs=(
            pl.BlockSpec((t_blk, B, H), lambda tb: (tb, 0, 0)),   # y (lane-dense)
            pl.BlockSpec((B, H), lambda tb: (0, 0)),              # h_n (revisited)
            pl.BlockSpec((B, H), lambda tb: (0, 0)),              # c_n (revisited)
        ),
        scratch_shapes=[
            pltpu.VMEM((B, H), jnp.float32),                      # h carry
            pltpu.VMEM((B, H), jnp.float32),                      # c carry
        ],
    )

    return pl.pallas_call(
        _lstm_recurrent_kernel,
        out_shape=(
            jax.ShapeDtypeStruct((S, B, H), out_dtype),
            jax.ShapeDtypeStruct((B, H), out_dtype),
            jax.ShapeDtypeStruct((B, H), out_dtype),
        ),
        grid_spec=grid_spec,
        compiler_params=pltpu.CompilerParams(
            # The time axis is a true recurrence through VMEM scratch: it must
            # stay sequential ("arbitrary") and cannot be megacore-sharded.
            # TODO(synk): for B >= 16 on v7x, add a leading "parallel" batch
            #             axis (batch is independent) to use the second core.
            dimension_semantics=("arbitrary",),
            vmem_limit_bytes=_VMEM_LIMIT_BYTES,
        ),
    )(gates_in, whh_t, h0, c0)


# ---------------------------------------------------------------------------
# Parameter prep (load time, outside jit) + forward
# ---------------------------------------------------------------------------
def prepare_encoder_params(wih_list, whh_list, bih_list, bhh_list,
                           compute_dtype=jnp.bfloat16):
    """One-time weight prep: transpose to (D_in,4H)/(H,4H) matmul layout, fuse
    b_ih + b_hh, and cast to the MXU compute dtype.  Done outside the jitted
    forward so no per-call HBM transpose copies are paid."""
    params = []
    for wih, whh, bih, bhh in zip(wih_list, whh_list, bih_list, bhh_list):
        params.append((
            jnp.asarray(wih.T, dtype=compute_dtype),                    # (D_in, 4H)
            jnp.asarray(whh.T, dtype=compute_dtype),                    # (H, 4H)
            jnp.asarray((bih + bhh).reshape(1, -1), dtype=jnp.float32),  # (1, 4H)
        ))
    return tuple(params)


@jax.jit
def encoder_forward(X, h0, c0, params):
    """Equivalent of Encoder.forward(X, (h0, c0)) for rnn_type='LSTM'.

    X: (S, B, embed), h0/c0: (L, B, hidden), params from prepare_encoder_params.
    """
    inp = X
    h_last, c_last = [], []
    # TODO(synk): at tiny S/B the per-layer pallas_calls could be fused into one
    #             kernel that loops over layers with all weights resident.
    for layer, (wih_t, whh_t, bias) in enumerate(params):
        gates_in = _input_projection(inp, wih_t, bias)          # (S, B, 4H) f32
        inp, h_n, c_n = _lstm_layer(gates_in, whh_t, h0[layer], c0[layer],
                                    out_dtype=X.dtype)
        h_last.append(h_n)
        c_last.append(c_n)
    return inp, (jnp.stack(h_last), jnp.stack(c_last))


# ---------------------------------------------------------------------------
# Pure-JAX reference (PyTorch semantics, f32)
# ---------------------------------------------------------------------------
def _lstm_reference(X, h0, c0, wih_list, whh_list, bih_list, bhh_list):
    num_layers = h0.shape[0]
    inp = X
    h_all, c_all = [], []
    hp = jax.lax.Precision.HIGHEST
    for layer in range(num_layers):
        wih, whh = wih_list[layer], whh_list[layer]
        bih, bhh = bih_list[layer], bhh_list[layer]
        h, c = h0[layer], c0[layer]
        H = h.shape[-1]
        ys = []
        for t in range(inp.shape[0]):
            gates = (jnp.dot(inp[t], wih.T, precision=hp) + bih
                     + jnp.dot(h, whh.T, precision=hp) + bhh)
            i_g = jax.nn.sigmoid(gates[:, 0 * H:1 * H])
            f_g = jax.nn.sigmoid(gates[:, 1 * H:2 * H])
            g_g = jnp.tanh(gates[:, 2 * H:3 * H])
            o_g = jax.nn.sigmoid(gates[:, 3 * H:4 * H])
            c = f_g * c + i_g * g_g
            h = o_g * jnp.tanh(c)
            ys.append(h)
        inp = jnp.stack(ys)
        h_all.append(h)
        c_all.append(c)
    return inp, (jnp.stack(h_all), jnp.stack(c_all))


if __name__ == "__main__":
    # Config consistent with the module:
    #   params = {embed_size: 64, hidden_size: 128, rnn_type: 'LSTM', num_layers: 2}
    S, B = 8, 8            # seq_len, batch (batch_first=False, nn.LSTM default)
    D, H, L = 64, 128, 2   # embed_size, hidden_size (lane-dense), num_layers

    key = jax.random.PRNGKey(0)
    keys = jax.random.split(key, 4 * L + 1)
    k = 1.0 / jnp.sqrt(H)  # PyTorch-style uniform(-1/sqrt(H), 1/sqrt(H)) init

    wih_list, whh_list, bih_list, bhh_list = [], [], [], []
    for layer in range(L):
        d_in = D if layer == 0 else H
        wih_list.append(jax.random.uniform(keys[4 * layer + 0], (4 * H, d_in),
                                           jnp.float32, -k, k))
        whh_list.append(jax.random.uniform(keys[4 * layer + 1], (4 * H, H),
                                           jnp.float32, -k, k))
        bih_list.append(jax.random.uniform(keys[4 * layer + 2], (4 * H,),
                                           jnp.float32, -k, k))
        bhh_list.append(jax.random.uniform(keys[4 * layer + 3], (4 * H,),
                                           jnp.float32, -k, k))

    X = jax.random.normal(keys[-1], (S, B, D), dtype=jnp.float32)
    # Encoder.initHidden(batch_size) for LSTM: zeros for both h0 and c0.
    h0 = jnp.zeros((L, B, H), dtype=jnp.float32)
    c0 = jnp.zeros((L, B, H), dtype=jnp.float32)

    y_ref, (h_ref, c_ref) = _lstm_reference(X, h0, c0, wih_list, whh_list,
                                            bih_list, bhh_list)

    # 1) f32 weights: validates the kernel structure tightly against the reference.
    params_f32 = prepare_encoder_params(wih_list, whh_list, bih_list, bhh_list,
                                        compute_dtype=jnp.float32)
    y32, (h32, c32) = encoder_forward(X, h0, c0, params_f32)
    jax.block_until_ready((y32, h32, c32))
    assert y32.shape == (S, B, H), y32.shape
    assert h32.shape == (L, B, H) and c32.shape == (L, B, H)
    assert jnp.allclose(y32, y_ref, atol=2e-3, rtol=2e-3), "rnn_output mismatch (f32)"
    assert jnp.allclose(h32, h_ref, atol=2e-3, rtol=2e-3), "h_n mismatch (f32)"
    assert jnp.allclose(c32, c_ref, atol=2e-3, rtol=2e-3), "c_n mismatch (f32)"

    # 2) bf16 weights (the fast path from the perf review): same f32 carry and
    #    f32 MXU accumulation; tolerance loosened only for weight quantisation.
    params_bf16 = prepare_encoder_params(wih_list, whh_list, bih_list, bhh_list,
                                         compute_dtype=jnp.bfloat16)
    y16, (h16, c16) = encoder_forward(X, h0, c0, params_bf16)
    jax.block_until_ready((y16, h16, c16))
    assert jnp.allclose(y16, y_ref, atol=3e-2, rtol=3e-2), "rnn_output mismatch (bf16)"
    assert jnp.allclose(h16, h_ref, atol=3e-2, rtol=3e-2), "h_n mismatch (bf16)"
    assert jnp.allclose(c16, c_ref, atol=3e-2, rtol=3e-2), "c_n mismatch (bf16)"

    print("KERNEL_OK")
</pallas_src>

<mosaic_0001>
module attributes {stable_mosaic.version = 11 : i64} {
  func.func @_input_proj_kernel(%arg0: i32, %arg1: memref<64x64xf32, #tpu.memory_space<vmem>>, %arg2: memref<64x512xf32, #tpu.memory_space<vmem>>, %arg3: memref<1x512xf32, #tpu.memory_space<vmem>>, %arg4: memref<64x512xf32, #tpu.memory_space<vmem>>) attributes {dimension_semantics = [#tpu.dimension_semantics<parallel>], iteration_bounds = array<i64: 1>, scalar_prefetch = 0 : i64, scratch_operands = 0 : i64, tpu.core_type = #tpu.core_type<tc>, window_params = [{transform_indices = @transform_0, window_bounds = array<i64: 64, 64>}, {pipeline_mode = #tpu.pipeline_mode<synchronous>, transform_indices = @transform_1, window_bounds = array<i64: 64, 512>}, {pipeline_mode = #tpu.pipeline_mode<synchronous>, transform_indices = @transform_2, window_bounds = array<i64: 1, 512>}, {transform_indices = @transform_3, window_bounds = array<i64: 64, 512>}]} {
    %c0 = arith.constant 0 : index
    %c0_0 = arith.constant 0 : index
    %0 = vector.load %arg1[%c0, %c0_0] : memref<64x64xf32, #tpu.memory_space<vmem>>, vector<64x64xf32>
    %c0_1 = arith.constant 0 : index
    %c0_2 = arith.constant 0 : index
    %1 = vector.load %arg2[%c0_1, %c0_2] : memref<64x512xf32, #tpu.memory_space<vmem>>, vector<64x512xf32>
    %cst = arith.constant dense<0.000000e+00> : vector<64x512xf32>
    %2 = tpu.matmul %0, %1, %cst {dimension_numbers = #tpu.dot_dimension_numbers<[1], [0], [0], [1], [0, 0, 1, 1], [], []>} : vector<64x64xf32>, vector<64x512xf32>, vector<64x512xf32> -> vector<64x512xf32>
    %c0_3 = arith.constant 0 : index
    %c0_4 = arith.constant 0 : index
    %3 = vector.load %arg3[%c0_3, %c0_4] : memref<1x512xf32, #tpu.memory_space<vmem>>, vector<1x512xf32>
    %4 = vector.broadcast %3 : vector<1x512xf32> to vector<64x512xf32>
    %5 = arith.addf %2, %4 : vector<64x512xf32>
    %c0_5 = arith.constant 0 : index
    %c0_6 = arith.constant 0 : index
    %6 = vector.load %arg4[%c0_5, %c0_6] : memref<64x512xf32, #tpu.memory_space<vmem>>, vector<64x512xf32>
    tpu.vector_store %arg4[%c0_5, %c0_6], %5 {strides = array<i32>} : memref<64x512xf32, #tpu.memory_space<vmem>>, vector<64x512xf32>,
    return
  }
  func.func @transform_0(%arg0: i32) -> (i32, i32) {
    %c0_i32 = arith.constant 0 : i32
    %c0_i32_0 = arith.constant 0 : i32
    return %arg0, %c0_i32 : i32, i32
  }
  func.func @transform_1(%arg0: i32) -> (i32, i32) {
    %c0_i32 = arith.constant 0 : i32
    %c0_i32_0 = arith.constant 0 : i32
    %c0_i32_1 = arith.constant 0 : i32
    return %c0_i32, %c0_i32_0 : i32, i32
  }
  func.func @transform_2(%arg0: i32) -> (i32, i32) {
    %c0_i32 = arith.constant 0 : i32
    %c0_i32_0 = arith.constant 0 : i32
    %c0_i32_1 = arith.constant 0 : i32
    return %c0_i32, %c0_i32_0 : i32, i32
  }
  func.func @transform_3(%arg0: i32) -> (i32, i32) {
    %c0_i32 = arith.constant 0 : i32
    %c0_i32_0 = arith.constant 0 : i32
    return %arg0, %c0_i32 : i32, i32
  }
}

module attributes {stable_mosaic.version = 11 : i64} {
  func.func @_input_proj_kernel(%arg0: i32, %arg1: memref<64x128xf32, #tpu.memory_space<vmem>>, %arg2: memref<128x512xf32, #tpu.memory_space<vmem>>, %arg3: memref<1x512xf32, #tpu.memory_space<vmem>>, %arg4: memref<64x512xf32, #tpu.memory_space<vmem>>) attributes {dimension_semantics = [#tpu.dimension_semantics<parallel>], iteration_bounds = array<i64: 1>, scalar_prefetch = 0 : i64, scratch_operands = 0 : i64, tpu.core_type = #tpu.core_type<tc>, window_params = [{transform_indices = @transform_0, window_bounds = array<i64: 64, 128>}, {pipeline_mode = #tpu.pipeline_mode<synchronous>, transform_indices = @transform_1, window_bounds = array<i64: 128, 512>}, {pipeline_mode = #tpu.pipeline_mode<synchronous>, transform_indices = @transform_2, window_bounds = array<i64: 1, 512>}, {transform_indices = @transform_3, window_bounds = array<i64: 64, 512>}]} {
    %c0 = arith.constant 0 : index
    %c0_0 = arith.constant 0 : index
    %0 = vector.load %arg1[%c0, %c0_0] : memref<64x128xf32, #tpu.memory_space<vmem>>, vector<64x128xf32>
    %c0_1 = arith.constant 0 : index
    %c0_2 = arith.constant 0 : index
    %1 = vector.load %arg2[%c0_1, %c0_2] : memref<128x512xf32, #tpu.memory_space<vmem>>, vector<128x512xf32>
    %cst = arith.constant dense<0.000000e+00> : vector<64x512xf32>
    %2 = tpu.matmul %0, %1, %cst {dimension_numbers = #tpu.dot_dimension_numbers<[1], [0], [0], [1], [0, 0, 1, 1], [], []>} : vector<64x128xf32>, vector<128x512xf32>, vector<64x512xf32> -> vector<64x512xf32>
    %c0_3 = arith.constant 0 : index
    %c0_4 = arith.constant 0 : index
    %3 = vector.load %arg3[%c0_3, %c0_4] : memref<1x512xf32, #tpu.memory_space<vmem>>, vector<1x512xf32>
    %4 = vector.broadcast %3 : vector<1x512xf32> to vector<64x512xf32>
    %5 = arith.addf %2, %4 : vector<64x512xf32>
    %c0_5 = arith.constant 0 : index
    %c0_6 = arith.constant 0 : index
    %6 = vector.load %arg4[%c0_5, %c0_6] : memref<64x512xf32, #tpu.memory_space<vmem>>, vector<64x512xf32>
    tpu.vector_store %arg4[%c0_5, %c0_6], %5 {strides = array<i32>} : memref<64x512xf32, #tpu.memory_space<vmem>>, vector<64x512xf32>,
    return
  }
  func.func @transform_0(%arg0: i32) -> (i32, i32) {
    %c0_i32 = arith.constant 0 : i32
    %c0_i32_0 = arith.constant 0 : i32
    return %arg0, %c0_i32 : i32, i32
  }
  func.func @transform_1(%arg0: i32) -> (i32, i32) {
    %c0_i32 = arith.constant 0 : i32
    %c0_i32_0 = arith.constant 0 : i32
    %c0_i32_1 = arith.constant 0 : i32
    return %c0_i32, %c0_i32_0 : i32, i32
  }
  func.func @transform_2(%arg0: i32) -> (i32, i32) {
    %c0_i32 = arith.constant 0 : i32
    %c0_i32_0 = arith.constant 0 : i32
    %c0_i32_1 = arith.constant 0 : i32
    return %c0_i32, %c0_i32_0 : i32, i32
  }
  func.func @transform_3(%arg0: i32) -> (i32, i32) {
    %c0_i32 = arith.constant 0 : i32
    %c0_i32_0 = arith.constant 0 : i32
    return %arg0, %c0_i32 : i32, i32
  }
}

module attributes {stable_mosaic.version = 11 : i64} {
  func.func @_lstm_recurrent_kernel(%arg0: i32, %arg1: memref<8x8x512xf32, #tpu.memory_space<vmem>>, %arg2: memref<128x512xf32, #tpu.memory_space<vmem>>, %arg3: memref<8x128xf32, #tpu.memory_space<vmem>>, %arg4: memref<8x128xf32, #tpu.memory_space<vmem>>, %arg5: memref<8x8x128xf32, #tpu.memory_space<vmem>>, %arg6: memref<8x128xf32, #tpu.memory_space<vmem>>, %arg7: memref<8x128xf32, #tpu.memory_space<vmem>>, %arg8: memref<8x128xf32, #tpu.memory_space<vmem>>, %arg9: memref<8x128xf32, #tpu.memory_space<vmem>>) attributes {dimension_semantics = [#tpu.dimension_semantics<arbitrary>], iteration_bounds = array<i64: 1>, scalar_prefetch = 0 : i64, scratch_operands = 2 : i64, tpu.core_type = #tpu.core_type<tc>, window_params = [{transform_indices = @transform_0, window_bounds = array<i64: 8, 8, 512>}, {pipeline_mode = #tpu.pipeline_mode<synchronous>, transform_indices = @transform_1, window_bounds = array<i64: 128, 512>}, {pipeline_mode = #tpu.pipeline_mode<synchronous>, transform_indices = @transform_2, window_bounds = array<i64: 8, 128>}, {pipeline_mode = #tpu.pipeline_mode<synchronous>, transform_indices = @transform_3, window_bounds = array<i64: 8, 128>}, {transform_indices = @transform_4, window_bounds = array<i64: 8, 8, 128>}, {pipeline_mode = #tpu.pipeline_mode<synchronous>, transform_indices = @transform_5, window_bounds = array<i64: 8, 128>}, {pipeline_mode = #tpu.pipeline_mode<synchronous>, transform_indices = @transform_6, window_bounds = array<i64: 8, 128>}]} {
    %c0_i32 = arith.constant 0 : i32
    %0 = arith.cmpi eq, %arg0, %c0_i32 : i32
    %1 = arith.extui %0 : i1 to i32
    %c0_i32_0 = arith.constant 0 : i32
    %2 = arith.cmpi ne, %1, %c0_i32_0 : i32
    scf.if %2 {
      %c0_140 = arith.constant 0 : index
      %c0_141 = arith.constant 0 : index
      %295 = vector.load %arg3[%c0_140, %c0_141] : memref<8x128xf32, #tpu.memory_space<vmem>>, vector<8x128xf32>
      %c0_142 = arith.constant 0 : index
      %c0_143 = arith.constant 0 : index
      %296 = vector.load %arg8[%c0_142, %c0_143] : memref<8x128xf32, #tpu.memory_space<vmem>>, vector<8x128xf32>
      tpu.vector_store %arg8[%c0_142, %c0_143], %295 {strides = array<i32>} : memref<8x128xf32, #tpu.memory_space<vmem>>, vector<8x128xf32>,
      %c0_144 = arith.constant 0 : index
      %c0_145 = arith.constant 0 : index
      %297 = vector.load %arg4[%c0_144, %c0_145] : memref<8x128xf32, #tpu.memory_space<vmem>>, vector<8x128xf32>
      %c0_146 = arith.constant 0 : index
      %c0_147 = arith.constant 0 : index
      %298 = vector.load %arg9[%c0_146, %c0_147] : memref<8x128xf32, #tpu.memory_space<vmem>>, vector<8x128xf32>
      tpu.vector_store %arg9[%c0_146, %c0_147], %297 {strides = array<i32>} : memref<8x128xf32, #tpu.memory_space<vmem>>, vector<8x128xf32>,
    } else {
    }
    %c0 = arith.constant 0 : index
    %c0_1 = arith.constant 0 : index
    %3 = vector.load %arg2[%c0, %c0_1] : memref<128x512xf32, #tpu.memory_space<vmem>>, vector<128x512xf32>
    %c0_2 = arith.constant 0 : index
    %c0_3 = arith.constant 0 : index
    %4 = vector.load %arg8[%c0_2, %c0_3] : memref<8x128xf32, #tpu.memory_space<vmem>>, vector<8x128xf32>
    %c0_4 = arith.constant 0 : index
    %c0_5 = arith.constant 0 : index
    %5 = vector.load %arg9[%c0_4, %c0_5] : memref<8x128xf32, #tpu.memory_space<vmem>>, vector<8x128xf32>
    %c0_6 = arith.constant 0 : index
    %c0_7 = arith.constant 0 : index
    %c0_8 = arith.constant 0 : index
    %6 = vector.load %arg1[%c0_6, %c0_7, %c0_8] : memref<8x8x512xf32, #tpu.memory_space<vmem>>, vector<1x8x512xf32>
    %7 = vector.shape_cast %6 : vector<1x8x512xf32> to vector<8x512xf32>
    %cst = arith.constant dense<0.000000e+00> : vector<8x512xf32>
    %8 = tpu.matmul %4, %3, %cst {dimension_numbers = #tpu.dot_dimension_numbers<[1], [0], [0], [1], [0, 0, 1, 1], [], []>} : vector<8x128xf32>, vector<128x512xf32>, vector<8x512xf32> -> vector<8x512xf32>
    %9 = arith.addf %7, %8 : vector<8x512xf32>
    %10 = vector.extract_strided_slice %9 {offsets = [0, 0], sizes = [8, 128], strides = [1, 1]} : vector<8x512xf32> to vector<8x128xf32>
    %11 = arith.negf %10 : vector<8x128xf32>
    %12 = math.exp %11 : vector<8x128xf32>
    %cst_9 = arith.constant 1.000000e+00 : f32
    %13 = vector.broadcast %cst_9 : f32 to vector<8x128xf32>
    %14 = arith.addf %13, %12 : vector<8x128xf32>
    %15 = arith.divf %13, %14 : vector<8x128xf32>
    %16 = vector.extract_strided_slice %9 {offsets = [0, 128], sizes = [8, 128], strides = [1, 1]} : vector<8x512xf32> to vector<8x128xf32>
    %17 = arith.negf %16 : vector<8x128xf32>
    %18 = math.exp %17 : vector<8x128xf32>
    %cst_10 = arith.constant 1.000000e+00 : f32
    %19 = vector.broadcast %cst_10 : f32 to vector<8x128xf32>
    %20 = arith.addf %19, %18 : vector<8x128xf32>
    %21 = arith.divf %19, %20 : vector<8x128xf32>
    %22 = vector.extract_strided_slice %9 {offsets = [0, 256], sizes = [8, 128], strides = [1, 1]} : vector<8x512xf32> to vector<8x128xf32>
    %23 = math.tanh %22 : vector<8x128xf32>
    %24 = vector.extract_strided_slice %9 {offsets = [0, 384], sizes = [8, 128], strides = [1, 1]} : vector<8x512xf32> to vector<8x128xf32>
    %25 = arith.negf %24 : vector<8x128xf32>
    %26 = math.exp %25 : vector<8x128xf32>
    %cst_11 = arith.constant 1.000000e+00 : f32
    %27 = vector.broadcast %cst_11 : f32 to vector<8x128xf32>
    %28 = arith.addf %27, %26 : vector<8x128xf32>
    %29 = arith.divf %27, %28 : vector<8x128xf32>
    %30 = arith.mulf %21, %5 : vector<8x128xf32>
    %31 = arith.mulf %15, %23 : vector<8x128xf32>
    %32 = arith.addf %30, %31 : vector<8x128xf32>
    %33 = math.tanh %32 : vector<8x128xf32>
    %34 = arith.mulf %29, %33 : vector<8x128xf32>
    %c0_12 = arith.constant 0 : index
    %c0_13 = arith.constant 0 : index
    %35 = vector.load %arg8[%c0_12, %c0_13] : memref<8x128xf32, #tpu.memory_space<vmem>>, vector<8x128xf32>
    tpu.vector_store %arg8[%c0_12, %c0_13], %34 {strides = array<i32>} : memref<8x128xf32, #tpu.memory_space<vmem>>, vector<8x128xf32>,
    %c0_14 = arith.constant 0 : index
    %c0_15 = arith.constant 0 : index
    %36 = vector.load %arg9[%c0_14, %c0_15] : memref<8x128xf32, #tpu.memory_space<vmem>>, vector<8x128xf32>
    tpu.vector_store %arg9[%c0_14, %c0_15], %32 {strides = array<i32>} : memref<8x128xf32, #tpu.memory_space<vmem>>, vector<8x128xf32>,
    %c0_16 = arith.constant 0 : index
    %c0_17 = arith.constant 0 : index
    %c0_18 = arith.constant 0 : index
    %37 = vector.load %arg5[%c0_16, %c0_17, %c0_18] : memref<8x8x128xf32, #tpu.memory_space<vmem>>, vector<1x8x128xf32>
    %38 = vector.shape_cast %37 : vector<1x8x128xf32> to vector<8x128xf32>
    %39 = vector.shape_cast %34 : vector<8x128xf32> to vector<1x8x128xf32>
    tpu.vector_store %arg5[%c0_16, %c0_17, %c0_18], %39 {strides = array<i32>} : memref<8x8x128xf32, #tpu.memory_space<vmem>>, vector<1x8x128xf32>,
    %c0_19 = arith.constant 0 : index
    %c0_20 = arith.constant 0 : index
    %40 = vector.load %arg8[%c0_19, %c0_20] : memref<8x128xf32, #tpu.memory_space<vmem>>, vector<8x128xf32>
    %c0_21 = arith.constant 0 : index
    %c0_22 = arith.constant 0 : index
    %41 = vector.load %arg9[%c0_21, %c0_22] : memref<8x128xf32, #tpu.memory_space<vmem>>, vector<8x128xf32>
    %c1 = arith.constant 1 : index
    %c0_23 = arith.constant 0 : index
    %c0_24 = arith.constant 0 : index
    %42 = vector.load %arg1[%c1, %c0_23, %c0_24] : memref<8x8x512xf32, #tpu.memory_space<vmem>>, vector<1x8x512xf32>
    %43 = vector.shape_cast %42 : vector<1x8x512xf32> to vector<8x512xf32>
    %cst_25 = arith.constant dense<0.000000e+00> : vector<8x512xf32>
    %44 = tpu.matmul %40, %3, %cst_25 {dimension_numbers = #tpu.dot_dimension_numbers<[1], [0], [0], [1], [0, 0, 1, 1], [], []>} : vector<8x128xf32>, vector<128x512xf32>, vector<8x512xf32> -> vector<8x512xf32>
    %45 = arith.addf %43, %44 : vector<8x512xf32>
    %46 = vector.extract_strided_slice %45 {offsets = [0, 0], sizes = [8, 128], strides = [1, 1]} : vector<8x512xf32> to vector<8x128xf32>
    %47 = arith.negf %46 : vector<8x128xf32>
    %48 = math.exp %47 : vector<8x128xf32>
    %cst_26 = arith.constant 1.000000e+00 : f32
    %49 = vector.broadcast %cst_26 : f32 to vector<8x128xf32>
    %50 = arith.addf %49, %48 : vector<8x128xf32>
    %51 = arith.divf %49, %50 : vector<8x128xf32>
    %52 = vector.extract_strided_slice %45 {offsets = [0, 128], sizes = [8, 128], strides = [1, 1]} : vector<8x512xf32> to vector<8x128xf32>
    %53 = arith.negf %52 : vector<8x128xf32>
    %54 = math.exp %53 : vector<8x128xf32>
    %cst_27 = arith.constant 1.000000e+00 : f32
    %55 = vector.broadcast %cst_27 : f32 to vector<8x128xf32>
    %56 = arith.addf %55, %54 : vector<8x128xf32>
    %57 = arith.divf %55, %56 : vector<8x128xf32>
    %58 = vector.extract_strided_slice %45 {offsets = [0, 256], sizes = [8, 128], strides = [1, 1]} : vector<8x512xf32> to vector<8x128xf32>
    %59 = math.tanh %58 : vector<8x128xf32>
    %60 = vector.extract_strided_slice %45 {offsets = [0, 384], sizes = [8, 128], strides = [1, 1]} : vector<8x512xf32> to vector<8x128xf32>
    %61 = arith.negf %60 : vector<8x128xf32>
    %62 = math.exp %61 : vector<8x128xf32>
    %cst_28 = arith.constant 1.000000e+00 : f32
    %63 = vector.broadcast %cst_28 : f32 to vector<8x128xf32>
    %64 = arith.addf %63, %62 : vector<8x128xf32>
    %65 = arith.divf %63, %64 : vector<8x128xf32>
    %66 = arith.mulf %57, %41 : vector<8x128xf32>
    %67 = arith.mulf %51, %59 : vector<8x128xf32>
    %68 = arith.addf %66, %67 : vector<8x128xf32>
    %69 = math.tanh %68 : vector<8x128xf32>
    %70 = arith.mulf %65, %69 : vector<8x128xf32>
    %c0_29 = arith.constant 0 : index
    %c0_30 = arith.constant 0 : index
    %71 = vector.load %arg8[%c0_29, %c0_30] : memref<8x128xf32, #tpu.memory_space<vmem>>, vector<8x128xf32>
    tpu.vector_store %arg8[%c0_29, %c0_30], %70 {strides = array<i32>} : memref<8x128xf32, #tpu.memory_space<vmem>>, vector<8x128xf32>,
    %c0_31 = arith.constant 0 : index
    %c0_32 = arith.constant 0 : index
    %72 = vector.load %arg9[%c0_31, %c0_32] : memref<8x128xf32, #tpu.memory_space<vmem>>, vector<8x128xf32>
    tpu.vector_store %arg9[%c0_31, %c0_32], %68 {strides = array<i32>} : memref<8x128xf32, #tpu.memory_space<vmem>>, vector<8x128xf32>,
    %c1_33 = arith.constant 1 : index
    %c0_34 = arith.constant 0 : index
    %c0_35 = arith.constant 0 : index
    %73 = vector.load %arg5[%c1_33, %c0_34, %c0_35] : memref<8x8x128xf32, #tpu.memory_space<vmem>>, vector<1x8x128xf32>
    %74 = vector.shape_cast %73 : vector<1x8x128xf32> to vector<8x128xf32>
    %75 = vector.shape_cast %70 : vector<8x128xf32> to vector<1x8x128xf32>
    tpu.vector_store %arg5[%c1_33, %c0_34, %c0_35], %75 {strides = array<i32>} : memref<8x8x128xf32, #tpu.memory_space<vmem>>, vector<1x8x128xf32>,
    %c0_36 = arith.constant 0 : index
    %c0_37 = arith.constant 0 : index
    %76 = vector.load %arg8[%c0_36, %c0_37] : memref<8x128xf32, #tpu.memory_space<vmem>>, vector<8x128xf32>
    %c0_38 = arith.constant 0 : index
    %c0_39 = arith.constant 0 : index
    %77 = vector.load %arg9[%c0_38, %c0_39] : memref<8x128xf32, #tpu.memory_space<vmem>>, vector<8x128xf32>
    %c2 = arith.constant 2 : index
    %c0_40 = arith.constant 0 : index
    %c0_41 = arith.constant 0 : index
    %78 = vector.load %arg1[%c2, %c0_40, %c0_41] : memref<8x8x512xf32, #tpu.memory_space<vmem>>, vector<1x8x512xf32>
    %79 = vector.shape_cast %78 : vector<1x8x512xf32> to vector<8x512xf32>
    %cst_42 = arith.constant dense<0.000000e+00> : vector<8x512xf32>
    %80 = tpu.matmul %76, %3, %cst_42 {dimension_numbers = #tpu.dot_dimension_numbers<[1], [0], [0], [1], [0, 0, 1, 1], [], []>} : vector<8x128xf32>, vector<128x512xf32>, vector<8x512xf32> -> vector<8x512xf32>
    %81 = arith.addf %79, %80 : vector<8x512xf32>
    %82 = vector.extract_strided_slice %81 {offsets = [0, 0], sizes = [8, 128], strides = [1, 1]} : vector<8x512xf32> to vector<8x128xf32>
    %83 = arith.negf %82 : vector<8x128xf32>
    %84 = math.exp %83 : vector<8x128xf32>
    %cst_43 = arith.constant 1.000000e+00 : f32
    %85 = vector.broadcast %cst_43 : f32 to vector<8x128xf32>
    %86 = arith.addf %85, %84 : vector<8x128xf32>
    %87 = arith.divf %85, %86 : vector<8x128xf32>
    %88 = vector.extract_strided_slice %81 {offsets = [0, 128], sizes = [8, 128], strides = [1, 1]} : vector<8x512xf32> to vector<8x128xf32>
    %89 = arith.negf %88 : vector<8x128xf32>
    %90 = math.exp %89 : vector<8x128xf32>
    %cst_44 = arith.constant 1.000000e+00 : f32
    %91 = vector.broadcast %cst_44 : f32 to vector<8x128xf32>
    %92 = arith.addf %91, %90 : vector<8x128xf32>
    %93 = arith.divf %91, %92 : vector<8x128xf32>
    %94 = vector.extract_strided_slice %81 {offsets = [0, 256], sizes = [8, 128], strides = [1, 1]} : vector<8x512xf32> to vector<8x128xf32>
    %95 = math.tanh %94 : vector<8x128xf32>
    %96 = vector.extract_strided_slice %81 {offsets = [0, 384], sizes = [8, 128], strides = [1, 1]} : vector<8x512xf32> to vector<8x128xf32>
    %97 = arith.negf %96 : vector<8x128xf32>
    %98 = math.exp %97 : vector<8x128xf32>
    %cst_45 = arith.constant 1.000000e+00 : f32
    %99 = vector.broadcast %cst_45 : f32 to vector<8x128xf32>
    %100 = arith.addf %99, %98 : vector<8x128xf32>
    %101 = arith.divf %99, %100 : vector<8x128xf32>
    %102 = arith.mulf %93, %77 : vector<8x128xf32>
    %103 = arith.mulf %87, %95 : vector<8x128xf32>
    %104 = arith.addf %102, %103 : vector<8x128xf32>
    %105 = math.tanh %104 : vector<8x128xf32>
    %106 = arith.mulf %101, %105 : vector<8x128xf32>
    %c0_46 = arith.constant 0 : index
    %c0_47 = arith.constant 0 : index
    %107 = vector.load %arg8[%c0_46, %c0_47] : memref<8x128xf32, #tpu.memory_space<vmem>>, vector<8x128xf32>
    tpu.vector_store %arg8[%c0_46, %c0_47], %106 {strides = array<i32>} : memref<8x128xf32, #tpu.memory_space<vmem>>, vector<8x128xf32>,
    %c0_48 = arith.constant 0 : index
    %c0_49 = arith.constant 0 : index
    %108 = vector.load %arg9[%c0_48, %c0_49] : memref<8x128xf32, #tpu.memory_space<vmem>>, vector<8x128xf32>
    tpu.vector_store %arg9[%c0_48, %c0_49], %104 {strides = array<i32>} : memref<8x128xf32, #tpu.memory_space<vmem>>, vector<8x128xf32>,
    %c2_50 = arith.constant 2 : index
    %c0_51 = arith.constant 0 : index
    %c0_52 = arith.constant 0 : index
    %109 = vector.load %arg5[%c2_50, %c0_51, %c0_52] : memref<8x8x128xf32, #tpu.memory_space<vmem>>, vector<1x8x128xf32>
    %110 = vector.shape_cast %109 : vector<1x8x128xf32> to vector<8x128xf32>
    %111 = vector.shape_cast %106 : vector<8x128xf32> to vector<1x8x128xf32>
    tpu.vector_store %arg5[%c2_50, %c0_51, %c0_52], %111 {strides = array<i32>} : memref<8x8x128xf32, #tpu.memory_space<vmem>>, vector<1x8x128xf32>,
    %c0_53 = arith.constant 0 : index
    %c0_54 = arith.constant 0 : index
    %112 = vector.load %arg8[%c0_53, %c0_54] : memref<8x128xf32, #tpu.memory_space<vmem>>, vector<8x128xf32>
    %c0_55 = arith.constant 0 : index
    %c0_56 = arith.constant 0 : index
    %113 = vector.load %arg9[%c0_55, %c0_56] : memref<8x128xf32, #tpu.memory_space<vmem>>, vector<8x128xf32>
    %c3 = arith.constant 3 : index
    %c0_57 = arith.constant 0 : index
    %c0_58 = arith.constant 0 : index
    %114 = vector.load %arg1[%c3, %c0_57, %c0_58] : memref<8x8x512xf32, #tpu.memory_space<vmem>>, vector<1x8x512xf32>
    %115 = vector.shape_cast %114 : vector<1x8x512xf32> to vector<8x512xf32>
    %cst_59 = arith.constant dense<0.000000e+00> : vector<8x512xf32>
    %116 = tpu.matmul %112, %3, %cst_59 {dimension_numbers = #tpu.dot_dimension_numbers<[1], [0], [0], [1], [0, 0, 1, 1], [], []>} : vector<8x128xf32>, vector<128x512xf32>, vector<8x512xf32> -> vector<8x512xf32>
    %117 = arith.addf %115, %116 : vector<8x512xf32>
    %118 = vector.extract_strided_slice %117 {offsets = [0, 0], sizes = [8, 128], strides = [1, 1]} : vector<8x512xf32> to vector<8x128xf32>
    %119 = arith.negf %118 : vector<8x128xf32>
    %120 = math.exp %119 : vector<8x128xf32>
    %cst_60 = arith.constant 1.000000e+00 : f32
    %121 = vector.broadcast %cst_60 : f32 to vector<8x128xf32>
    %122 = arith.addf %121, %120 : vector<8x128xf32>
    %123 = arith.divf %121, %122 : vector<8x128xf32>
    %124 = vector.extract_strided_slice %117 {offsets = [0, 128], sizes = [8, 128], strides = [1, 1]} : vector<8x512xf32> to vector<8x128xf32>
    %125 = arith.negf %124 : vector<8x128xf32>
    %126 = math.exp %125 : vector<8x128xf32>
    %cst_61 = arith.constant 1.000000e+00 : f32
    %127 = vector.broadcast %cst_61 : f32 to vector<8x128xf32>
    %128 = arith.addf %127, %126 : vector<8x128xf32>
    %129 = arith.divf %127, %128 : vector<8x128xf32>
    %130 = vector.extract_strided_slice %117 {offsets = [0, 256], sizes = [8, 128], strides = [1, 1]} : vector<8x512xf32> to vector<8x128xf32>
    %131 = math.tanh %130 : vector<8x128xf32>
    %132 = vector.extract_strided_slice %117 {offsets = [0, 384], sizes = [8, 128], strides = [1, 1]} : vector<8x512xf32> to vector<8x128xf32>
    %133 = arith.negf %132 : vector<8x128xf32>
    %134 = math.exp %133 : vector<8x128xf32>
    %cst_62 = arith.constant 1.000000e+00 : f32
    %135 = vector.broadcast %cst_62 : f32 to vector<8x128xf32>
    %136 = arith.addf %135, %134 : vector<8x128xf32>
    %137 = arith.divf %135, %136 : vector<8x128xf32>
    %138 = arith.mulf %129, %113 : vector<8x128xf32>
    %139 = arith.mulf %123, %131 : vector<8x128xf32>
    %140 = arith.addf %138, %139 : vector<8x128xf32>
    %141 = math.tanh %140 : vector<8x128xf32>
    %142 = arith.mulf %137, %141 : vector<8x128xf32>
    %c0_63 = arith.constant 0 : index
    %c0_64 = arith.constant 0 : index
    %143 = vector.load %arg8[%c0_63, %c0_64] : memref<8x128xf32, #tpu.memory_space<vmem>>, vector<8x128xf32>
    tpu.vector_store %arg8[%c0_63, %c0_64], %142 {strides = array<i32>} : memref<8x128xf32, #tpu.memory_space<vmem>>, vector<8x128xf32>,
    %c0_65 = arith.constant 0 : index
    %c0_66 = arith.constant 0 : index
    %144 = vector.load %arg9[%c0_65, %c0_66] : memref<8x128xf32, #tpu.memory_space<vmem>>, vector<8x128xf32>
    tpu.vector_store %arg9[%c0_65, %c0_66], %140 {strides = array<i32>} : memref<8x128xf32, #tpu.memory_space<vmem>>, vector<8x128xf32>,
    %c3_67 = arith.constant 3 : index
    %c0_68 = arith.constant 0 : index
    %c0_69 = arith.constant 0 : index
    %145 = vector.load %arg5[%c3_67, %c0_68, %c0_69] : memref<8x8x128xf32, #tpu.memory_space<vmem>>, vector<1x8x128xf32>
    %146 = vector.shape_cast %145 : vector<1x8x128xf32> to vector<8x128xf32>
    %147 = vector.shape_cast %142 : vector<8x128xf32> to vector<1x8x128xf32>
    tpu.vector_store %arg5[%c3_67, %c0_68, %c0_69], %147 {strides = array<i32>} : memref<8x8x128xf32, #tpu.memory_space<vmem>>, vector<1x8x128xf32>,
    %c0_70 = arith.constant 0 : index
    %c0_71 = arith.constant 0 : index
    %148 = vector.load %arg8[%c0_70, %c0_71] : memref<8x128xf32, #tpu.memory_space<vmem>>, vector<8x128xf32>
    %c0_72 = arith.constant 0 : index
    %c0_73 = arith.constant 0 : index
    %149 = vector.load %arg9[%c0_72, %c0_73] : memref<8x128xf32, #tpu.memory_space<vmem>>, vector<8x128xf32>
    %c4 = arith.constant 4 : index
    %c0_74 = arith.constant 0 : index
    %c0_75 = arith.constant 0 : index
    %150 = vector.load %arg1[%c4, %c0_74, %c0_75] : memref<8x8x512xf32, #tpu.memory_space<vmem>>, vector<1x8x512xf32>
    %151 = vector.shape_cast %150 : vector<1x8x512xf32> to vector<8x512xf32>
    %cst_76 = arith.constant dense<0.000000e+00> : vector<8x512xf32>
    %152 = tpu.matmul %148, %3, %cst_76 {dimension_numbers = #tpu.dot_dimension_numbers<[1], [0], [0], [1], [0, 0, 1, 1], [], []>} : vector<8x128xf32>, vector<128x512xf32>, vector<8x512xf32> -> vector<8x512xf32>
    %153 = arith.addf %151, %152 : vector<8x512xf32>
    %154 = vector.extract_strided_slice %153 {offsets = [0, 0], sizes = [8, 128], strides = [1, 1]} : vector<8x512xf32> to vector<8x128xf32>
    %155 = arith.negf %154 : vector<8x128xf32>
    %156 = math.exp %155 : vector<8x128xf32>
    %cst_77 = arith.constant 1.000000e+00 : f32
    %157 = vector.broadcast %cst_77 : f32 to vector<8x128xf32>
    %158 = arith.addf %157, %156 : vector<8x128xf32>
    %159 = arith.divf %157, %158 : vector<8x128xf32>
    %160 = vector.extract_strided_slice %153 {offsets = [0, 128], sizes = [8, 128], strides = [1, 1]} : vector<8x512xf32> to vector<8x128xf32>
    %161 = arith.negf %160 : vector<8x128xf32>
    %162 = math.exp %161 : vector<8x128xf32>
    %cst_78 = arith.constant 1.000000e+00 : f32
    %163 = vector.broadcast %cst_78 : f32 to vector<8x128xf32>
    %164 = arith.addf %163, %162 : vector<8x128xf32>
    %165 = arith.divf %163, %164 : vector<8x128xf32>
    %166 = vector.extract_strided_slice %153 {offsets = [0, 256], sizes = [8, 128], strides = [1, 1]} : vector<8x512xf32> to vector<8x128xf32>
    %167 = math.tanh %166 : vector<8x128xf32>
    %168 = vector.extract_strided_slice %153 {offsets = [0, 384], sizes = [8, 128], strides = [1, 1]} : vector<8x512xf32> to vector<8x128xf32>
    %169 = arith.negf %168 : vector<8x128xf32>
    %170 = math.exp %169 : vector<8x128xf32>
    %cst_79 = arith.constant 1.000000e+00 : f32
    %171 = vector.broadcast %cst_79 : f32 to vector<8x128xf32>
    %172 = arith.addf %171, %170 : vector<8x128xf32>
    %173 = arith.divf %171, %172 : vector<8x128xf32>
    %174 = arith.mulf %165, %149 : vector<8x128xf32>
    %175 = arith.mulf %159, %167 : vector<8x128xf32>
    %176 = arith.addf %174, %175 : vector<8x128xf32>
    %177 = math.tanh %176 : vector<8x128xf32>
    %178 = arith.mulf %173, %177 : vector<8x128xf32>
    %c0_80 = arith.constant 0 : index
    %c0_81 = arith.constant 0 : index
    %179 = vector.load %arg8[%c0_80, %c0_81] : memref<8x128xf32, #tpu.memory_space<vmem>>, vector<8x128xf32>
    tpu.vector_store %arg8[%c0_80, %c0_81], %178 {strides = array<i32>} : memref<8x128xf32, #tpu.memory_space<vmem>>, vector<8x128xf32>,
    %c0_82 = arith.constant 0 : index
    %c0_83 = arith.constant 0 : index
    %180 = vector.load %arg9[%c0_82, %c0_83] : memref<8x128xf32, #tpu.memory_space<vmem>>, vector<8x128xf32>
    tpu.vector_store %arg9[%c0_82, %c0_83], %176 {strides = array<i32>} : memref<8x128xf32, #tpu.memory_space<vmem>>, vector<8x128xf32>,
    %c4_84 = arith.constant 4 : index
    %c0_85 = arith.constant 0 : index
    %c0_86 = arith.constant 0 : index
    %181 = vector.load %arg5[%c4_84, %c0_85, %c0_86] : memref<8x8x128xf32, #tpu.memory_space<vmem>>, vector<1x8x128xf32>
    %182 = vector.shape_cast %181 : vector<1x8x128xf32> to vector<8x128xf32>
    %183 = vector.shape_cast %178 : vector<8x128xf32> to vector<1x8x128xf32>
    tpu.vector_store %arg5[%c4_84, %c0_85, %c0_86], %183 {strides = array<i32>} : memref<8x8x128xf32, #tpu.memory_space<vmem>>, vector<1x8x128xf32>,
    %c0_87 = arith.constant 0 : index
    %c0_88 = arith.constant 0 : index
    %184 = vector.load %arg8[%c0_87, %c0_88] : memref<8x128xf32, #tpu.memory_space<vmem>>, vector<8x128xf32>
    %c0_89 = arith.constant 0 : index
    %c0_90 = arith.constant 0 : index
    %185 = vector.load %arg9[%c0_89, %c0_90] : memref<8x128xf32, #tpu.memory_space<vmem>>, vector<8x128xf32>
    %c5 = arith.constant 5 : index
    %c0_91 = arith.constant 0 : index
    %c0_92 = arith.constant 0 : index
    %186 = vector.load %arg1[%c5, %c0_91, %c0_92] : memref<8x8x512xf32, #tpu.memory_space<vmem>>, vector<1x8x512xf32>
    %187 = vector.shape_cast %186 : vector<1x8x512xf32> to vector<8x512xf32>
    %cst_93 = arith.constant dense<0.000000e+00> : vector<8x512xf32>
    %188 = tpu.matmul %184, %3, %cst_93 {dimension_numbers = #tpu.dot_dimension_numbers<[1], [0], [0], [1], [0, 0, 1, 1], [], []>} : vector<8x128xf32>, vector<128x512xf32>, vector<8x512xf32> -> vector<8x512xf32>
    %189 = arith.addf %187, %188 : vector<8x512xf32>
    %190 = vector.extract_strided_slice %189 {offsets = [0, 0], sizes = [8, 128], strides = [1, 1]} : vector<8x512xf32> to vector<8x128xf32>
    %191 = arith.negf %190 : vector<8x128xf32>
    %192 = math.exp %191 : vector<8x128xf32>
    %cst_94 = arith.constant 1.000000e+00 : f32
    %193 = vector.broadcast %cst_94 : f32 to vector<8x128xf32>
    %194 = arith.addf %193, %192 : vector<8x128xf32>
    %195 = arith.divf %193, %194 : vector<8x128xf32>
    %196 = vector.extract_strided_slice %189 {offsets = [0, 128], sizes = [8, 128], strides = [1, 1]} : vector<8x512xf32> to vector<8x128xf32>
    %197 = arith.negf %196 : vector<8x128xf32>
    %198 = math.exp %197 : vector<8x128xf32>
    %cst_95 = arith.constant 1.000000e+00 : f32
    %199 = vector.broadcast %cst_95 : f32 to vector<8x128xf32>
    %200 = arith.addf %199, %198 : vector<8x128xf32>
    %201 = arith.divf %199, %200 : vector<8x128xf32>
    %202 = vector.extract_strided_slice %189 {offsets = [0, 256], sizes = [8, 128], strides = [1, 1]} : vector<8x512xf32> to vector<8x128xf32>
    %203 = math.tanh %202 : vector<8x128xf32>
    %204 = vector.extract_strided_slice %189 {offsets = [0, 384], sizes = [8, 128], strides = [1, 1]} : vector<8x512xf32> to vector<8x128xf32>
    %205 = arith.negf %204 : vector<8x128xf32>
    %206 = math.exp %205 : vector<8x128xf32>
    %cst_96 = arith.constant 1.000000e+00 : f32
    %207 = vector.broadcast %cst_96 : f32 to vector<8x128xf32>
    %208 = arith.addf %207, %206 : vector<8x128xf32>
    %209 = arith.divf %207, %208 : vector<8x128xf32>
    %210 = arith.mulf %201, %185 : vector<8x128xf32>
    %211 = arith.mulf %195, %203 : vector<8x128xf32>
    %212 = arith.addf %210, %211 : vector<8x128xf32>
    %213 = math.tanh %212 : vector<8x128xf32>
    %214 = arith.mulf %209, %213 : vector<8x128xf32>
    %c0_97 = arith.constant 0 : index
    %c0_98 = arith.constant 0 : index
    %215 = vector.load %arg8[%c0_97, %c0_98] : memref<8x128xf32, #tpu.memory_space<vmem>>, vector<8x128xf32>
    tpu.vector_store %arg8[%c0_97, %c0_98], %214 {strides = array<i32>} : memref<8x128xf32, #tpu.memory_space<vmem>>, vector<8x128xf32>,
    %c0_99 = arith.constant 0 : index
    %c0_100 = arith.constant 0 : index
    %216 = vector.load %arg9[%c0_99, %c0_100] : memref<8x128xf32, #tpu.memory_space<vmem>>, vector<8x128xf32>
    tpu.vector_store %arg9[%c0_99, %c0_100], %212 {strides = array<i32>} : memref<8x128xf32, #tpu.memory_space<vmem>>, vector<8x128xf32>,
    %c5_101 = arith.constant 5 : index
    %c0_102 = arith.constant 0 : index
    %c0_103 = arith.constant 0 : index
    %217 = vector.load %arg5[%c5_101, %c0_102, %c0_103] : memref<8x8x128xf32, #tpu.memory_space<vmem>>, vector<1x8x128xf32>
    %218 = vector.shape_cast %217 : vector<1x8x128xf32> to vector<8x128xf32>
    %219 = vector.shape_cast %214 : vector<8x128xf32> to vector<1x8x128xf32>
    tpu.vector_store %arg5[%c5_101, %c0_102, %c0_103], %219 {strides = array<i32>} : memref<8x8x128xf32, #tpu.memory_space<vmem>>, vector<1x8x128xf32>,
    %c0_104 = arith.constant 0 : index
    %c0_105 = arith.constant 0 : index
    %220 = vector.load %arg8[%c0_104, %c0_105] : memref<8x128xf32, #tpu.memory_space<vmem>>, vector<8x128xf32>
    %c0_106 = arith.constant 0 : index
    %c0_107 = arith.constant 0 : index
    %221 = vector.load %arg9[%c0_106, %c0_107] : memref<8x128xf32, #tpu.memory_space<vmem>>, vector<8x128xf32>
    %c6 = arith.constant 6 : index
    %c0_108 = arith.constant 0 : index
    %c0_109 = arith.constant 0 : index
    %222 = vector.load %arg1[%c6, %c0_108, %c0_109] : memref<8x8x512xf32, #tpu.memory_space<vmem>>, vector<1x8x512xf32>
    %223 = vector.shape_cast %222 : vector<1x8x512xf32> to vector<8x512xf32>
    %cst_110 = arith.constant dense<0.000000e+00> : vector<8x512xf32>
    %224 = tpu.matmul %220, %3, %cst_110 {dimension_numbers = #tpu.dot_dimension_numbers<[1], [0], [0], [1], [0, 0, 1, 1], [], []>} : vector<8x128xf32>, vector<128x512xf32>, vector<8x512xf32> -> vector<8x512xf32>
    %225 = arith.addf %223, %224 : vector<8x512xf32>
    %226 = vector.extract_strided_slice %225 {offsets = [0, 0], sizes = [8, 128], strides = [1, 1]} : vector<8x512xf32> to vector<8x128xf32>
    %227 = arith.negf %226 : vector<8x128xf32>
    %228 = math.exp %227 : vector<8x128xf32>
    %cst_111 = arith.constant 1.000000e+00 : f32
    %229 = vector.broadcast %cst_111 : f32 to vector<8x128xf32>
    %230 = arith.addf %229, %228 : vector<8x128xf32>
    %231 = arith.divf %229, %230 : vector<8x128xf32>
    %232 = vector.extract_strided_slice %225 {offsets = [0, 128], sizes = [8, 128], strides = [1, 1]} : vector<8x512xf32> to vector<8x128xf32>
    %233 = arith.negf %232 : vector<8x128xf32>
    %234 = math.exp %233 : vector<8x128xf32>
    %cst_112 = arith.constant 1.000000e+00 : f32
    %235 = vector.broadcast %cst_112 : f32 to vector<8x128xf32>
    %236 = arith.addf %235, %234 : vector<8x128xf32>
    %237 = arith.divf %235, %236 : vector<8x128xf32>
    %238 = vector.extract_strided_slice %225 {offsets = [0, 256], sizes = [8, 128], strides = [1, 1]} : vector<8x512xf32> to vector<8x128xf32>
    %239 = math.tanh %238 : vector<8x128xf32>
    %240 = vector.extract_strided_slice %225 {offsets = [0, 384], sizes = [8, 128], strides = [1, 1]} : vector<8x512xf32> to vector<8x128xf32>
    %241 = arith.negf %240 : vector<8x128xf32>
    %242 = math.exp %241 : vector<8x128xf32>
    %cst_113 = arith.constant 1.000000e+00 : f32
    %243 = vector.broadcast %cst_113 : f32 to vector<8x128xf32>
    %244 = arith.addf %243, %242 : vector<8x128xf32>
    %245 = arith.divf %243, %244 : vector<8x128xf32>
    %246 = arith.mulf %237, %221 : vector<8x128xf32>
    %247 = arith.mulf %231, %239 : vector<8x128xf32>
    %248 = arith.addf %246, %247 : vector<8x128xf32>
    %249 = math.tanh %248 : vector<8x128xf32>
    %250 = arith.mulf %245, %249 : vector<8x128xf32>
    %c0_114 = arith.constant 0 : index
    %c0_115 = arith.constant 0 : index
    %251 = vector.load %arg8[%c0_114, %c0_115] : memref<8x128xf32, #tpu.memory_space<vmem>>, vector<8x128xf32>
    tpu.vector_store %arg8[%c0_114, %c0_115], %250 {strides = array<i32>} : memref<8x128xf32, #tpu.memory_space<vmem>>, vector<8x128xf32>,
    %c0_116 = arith.constant 0 : index
    %c0_117 = arith.constant 0 : index
    %252 = vector.load %arg9[%c0_116, %c0_117] : memref<8x128xf32, #tpu.memory_space<vmem>>, vector<8x128xf32>
    tpu.vector_store %arg9[%c0_116, %c0_117], %248 {strides = array<i32>} : memref<8x128xf32, #tpu.memory_space<vmem>>, vector<8x128xf32>,
    %c6_118 = arith.constant 6 : index
    %c0_119 = arith.constant 0 : index
    %c0_120 = arith.constant 0 : index
    %253 = vector.load %arg5[%c6_118, %c0_119, %c0_120] : memref<8x8x128xf32, #tpu.memory_space<vmem>>, vector<1x8x128xf32>
    %254 = vector.shape_cast %253 : vector<1x8x128xf32> to vector<8x128xf32>
    %255 = vector.shape_cast %250 : vector<8x128xf32> to vector<1x8x128xf32>
    tpu.vector_store %arg5[%c6_118, %c0_119, %c0_120], %255 {strides = array<i32>} : memref<8x8x128xf32, #tpu.memory_space<vmem>>, vector<1x8x128xf32>,
    %c0_121 = arith.constant 0 : index
    %c0_122 = arith.constant 0 : index
    %256 = vector.load %arg8[%c0_121, %c0_122] : memref<8x128xf32, #tpu.memory_space<vmem>>, vector<8x128xf32>
    %c0_123 = arith.constant 0 : index
    %c0_124 = arith.constant 0 : index
    %257 = vector.load %arg9[%c0_123, %c0_124] : memref<8x128xf32, #tpu.memory_space<vmem>>, vector<8x128xf32>
    %c7 = arith.constant 7 : index
    %c0_125 = arith.constant 0 : index
    %c0_126 = arith.constant 0 : index
    %258 = vector.load %arg1[%c7, %c0_125, %c0_126] : memref<8x8x512xf32, #tpu.memory_space<vmem>>, vector<1x8x512xf32>
    %259 = vector.shape_cast %258 : vector<1x8x512xf32> to vector<8x512xf32>
    %cst_127 = arith.constant dense<0.000000e+00> : vector<8x512xf32>
    %260 = tpu.matmul %256, %3, %cst_127 {dimension_numbers = #tpu.dot_dimension_numbers<[1], [0], [0], [1], [0, 0, 1, 1], [], []>} : vector<8x128xf32>, vector<128x512xf32>, vector<8x512xf32> -> vector<8x512xf32>
    %261 = arith.addf %259, %260 : vector<8x512xf32>
    %262 = vector.extract_strided_slice %261 {offsets = [0, 0], sizes = [8, 128], strides = [1, 1]} : vector<8x512xf32> to vector<8x128xf32>
    %263 = arith.negf %262 : vector<8x128xf32>
    %264 = math.exp %263 : vector<8x128xf32>
    %cst_128 = arith.constant 1.000000e+00 : f32
    %265 = vector.broadcast %cst_128 : f32 to vector<8x128xf32>
    %266 = arith.addf %265, %264 : vector<8x128xf32>
    %267 = arith.divf %265, %266 : vector<8x128xf32>
    %268 = vector.extract_strided_slice %261 {offsets = [0, 128], sizes = [8, 128], strides = [1, 1]} : vector<8x512xf32> to vector<8x128xf32>
    %269 = arith.negf %268 : vector<8x128xf32>
    %270 = math.exp %269 : vector<8x128xf32>
    %cst_129 = arith.constant 1.000000e+00 : f32
    %271 = vector.broadcast %cst_129 : f32 to vector<8x128xf32>
    %272 = arith.addf %271, %270 : vector<8x128xf32>
    %273 = arith.divf %271, %272 : vector<8x128xf32>
    %274 = vector.extract_strided_slice %261 {offsets = [0, 256], sizes = [8, 128], strides = [1, 1]} : vector<8x512xf32> to vector<8x128xf32>
    %275 = math.tanh %274 : vector<8x128xf32>
    %276 = vector.extract_strided_slice %261 {offsets = [0, 384], sizes = [8, 128], strides = [1, 1]} : vector<8x512xf32> to vector<8x128xf32>
    %277 = arith.negf %276 : vector<8x128xf32>
    %278 = math.exp %277 : vector<8x128xf32>
    %cst_130 = arith.constant 1.000000e+00 : f32
    %279 = vector.broadcast %cst_130 : f32 to vector<8x128xf32>
    %280 = arith.addf %279, %278 : vector<8x128xf32>
    %281 = arith.divf %279, %280 : vector<8x128xf32>
    %282 = arith.mulf %273, %257 : vector<8x128xf32>
    %283 = arith.mulf %267, %275 : vector<8x128xf32>
    %284 = arith.addf %282, %283 : vector<8x128xf32>
    %285 = math.tanh %284 : vector<8x128xf32>
    %286 = arith.mulf %281, %285 : vector<8x128xf32>
    %c0_131 = arith.constant 0 : index
    %c0_132 = arith.constant 0 : index
    %287 = vector.load %arg8[%c0_131, %c0_132] : memref<8x128xf32, #tpu.memory_space<vmem>>, vector<8x128xf32>
    tpu.vector_store %arg8[%c0_131, %c0_132], %286 {strides = array<i32>} : memref<8x128xf32, #tpu.memory_space<vmem>>, vector<8x128xf32>,
    %c0_133 = arith.constant 0 : index
    %c0_134 = arith.constant 0 : index
    %288 = vector.load %arg9[%c0_133, %c0_134] : memref<8x128xf32, #tpu.memory_space<vmem>>, vector<8x128xf32>
    tpu.vector_store %arg9[%c0_133, %c0_134], %284 {strides = array<i32>} : memref<8x128xf32, #tpu.memory_space<vmem>>, vector<8x128xf32>,
    %c7_135 = arith.constant 7 : index
    %c0_136 = arith.constant 0 : index
    %c0_137 = arith.constant 0 : index
    %289 = vector.load %arg5[%c7_135, %c0_136, %c0_137] : memref<8x8x128xf32, #tpu.memory_space<vmem>>, vector<1x8x128xf32>
    %290 = vector.shape_cast %289 : vector<1x8x128xf32> to vector<8x128xf32>
    %291 = vector.shape_cast %286 : vector<8x128xf32> to vector<1x8x128xf32>
    tpu.vector_store %arg5[%c7_135, %c0_136, %c0_137], %291 {strides = array<i32>} : memref<8x8x128xf32, #tpu.memory_space<vmem>>, vector<1x8x128xf32>,
    %c0_i32_138 = arith.constant 0 : i32
    %292 = arith.cmpi eq, %arg0, %c0_i32_138 : i32
    %293 = arith.extui %292 : i1 to i32
    %c0_i32_139 = arith.constant 0 : i32
    %294 = arith.cmpi ne, %293, %c0_i32_139 : i32
    scf.if %294 {
      %c0_140 = arith.constant 0 : index
      %c0_141 = arith.constant 0 : index
      %295 = vector.load %arg8[%c0_140, %c0_141] : memref<8x128xf32, #tpu.memory_space<vmem>>, vector<8x128xf32>
      %c0_142 = arith.constant 0 : index
      %c0_143 = arith.constant 0 : index
      %296 = vector.load %arg6[%c0_142, %c0_143] : memref<8x128xf32, #tpu.memory_space<vmem>>, vector<8x128xf32>
      tpu.vector_store %arg6[%c0_142, %c0_143], %295 {strides = array<i32>} : memref<8x128xf32, #tpu.memory_space<vmem>>, vector<8x128xf32>,
      %c0_144 = arith.constant 0 : index
      %c0_145 = arith.constant 0 : index
      %297 = vector.load %arg9[%c0_144, %c0_145] : memref<8x128xf32, #tpu.memory_space<vmem>>, vector<8x128xf32>
      %c0_146 = arith.constant 0 : index
      %c0_147 = arith.constant 0 : index
      %298 = vector.load %arg7[%c0_146, %c0_147] : memref<8x128xf32, #tpu.memory_space<vmem>>, vector<8x128xf32>
      tpu.vector_store %arg7[%c0_146, %c0_147], %297 {strides = array<i32>} : memref<8x128xf32, #tpu.memory_space<vmem>>, vector<8x128xf32>,
    } else {
    }
    return
  }
  func.func @transform_0(%arg0: i32) -> (i32, i32, i32) {
    %c0_i32 = arith.constant 0 : i32
    %c0_i32_0 = arith.constant 0 : i32
    %c0_i32_1 = arith.constant 0 : i32
    return %arg0, %c0_i32, %c0_i32_0 : i32, i32, i32
  }
  func.func @transform_1(%arg0: i32) -> (i32, i32) {
    %c0_i32 = arith.constant 0 : i32
    %c0_i32_0 = arith.constant 0 : i32
    %c0_i32_1 = arith.constant 0 : i32
    return %c0_i32, %c0_i32_0 : i32, i32
  }
  func.func @transform_2(%arg0: i32) -> (i32, i32) {
    %c0_i32 = arith.constant 0 : i32
    %c0_i32_0 = arith.constant 0 : i32
    %c0_i32_1 = arith.constant 0 : i32
    return %c0_i32, %c0_i32_0 : i32, i32
  }
  func.func @transform_3(%arg0: i32) -> (i32, i32) {
    %c0_i32 = arith.constant 0 : i32
    %c0_i32_0 = arith.constant 0 : i32
    %c0_i32_1 = arith.constant 0 : i32
    return %c0_i32, %c0_i32_0 : i32, i32
  }
  func.func @transform_4(%arg0: i32) -> (i32, i32, i32) {
    %c0_i32 = arith.constant 0 : i32
    %c0_i32_0 = arith.constant 0 : i32
    %c0_i32_1 = arith.constant 0 : i32
    return %arg0, %c0_i32, %c0_i32_0 : i32, i32, i32
  }
  func.func @transform_5(%arg0: i32) -> (i32, i32) {
    %c0_i32 = arith.constant 0 : i32
    %c0_i32_0 = arith.constant 0 : i32
    %c0_i32_1 = arith.constant 0 : i32
    return %c0_i32, %c0_i32_0 : i32, i32
  }
  func.func @transform_6(%arg0: i32) -> (i32, i32) {
    %c0_i32 = arith.constant 0 : i32
    %c0_i32_0 = arith.constant 0 : i32
    %c0_i32_1 = arith.constant 0 : i32
    return %c0_i32, %c0_i32_0 : i32, i32
  }
}

module attributes {stable_mosaic.version = 11 : i64} {
  func.func @_lstm_recurrent_kernel(%arg0: i32, %arg1: memref<8x8x512xf32, #tpu.memory_space<vmem>>, %arg2: memref<128x512xf32, #tpu.memory_space<vmem>>, %arg3: memref<8x128xf32, #tpu.memory_space<vmem>>, %arg4: memref<8x128xf32, #tpu.memory_space<vmem>>, %arg5: memref<8x8x128xf32, #tpu.memory_space<vmem>>, %arg6: memref<8x128xf32, #tpu.memory_space<vmem>>, %arg7: memref<8x128xf32, #tpu.memory_space<vmem>>, %arg8: memref<8x128xf32, #tpu.memory_space<vmem>>, %arg9: memref<8x128xf32, #tpu.memory_space<vmem>>) attributes {dimension_semantics = [#tpu.dimension_semantics<arbitrary>], iteration_bounds = array<i64: 1>, scalar_prefetch = 0 : i64, scratch_operands = 2 : i64, tpu.core_type = #tpu.core_type<tc>, window_params = [{transform_indices = @transform_0, window_bounds = array<i64: 8, 8, 512>}, {pipeline_mode = #tpu.pipeline_mode<synchronous>, transform_indices = @transform_1, window_bounds = array<i64: 128, 512>}, {pipeline_mode = #tpu.pipeline_mode<synchronous>, transform_indices = @transform_2, window_bounds = array<i64: 8, 128>}, {pipeline_mode = #tpu.pipeline_mode<synchronous>, transform_indices = @transform_3, window_bounds = array<i64: 8, 128>}, {transform_indices = @transform_4, window_bounds = array<i64: 8, 8, 128>}, {pipeline_mode = #tpu.pipeline_mode<synchronous>, transform_indices = @transform_5, window_bounds = array<i64: 8, 128>}, {pipeline_mode = #tpu.pipeline_mode<synchronous>, transform_indices = @transform_6, window_bounds = array<i64: 8, 128>}]} {
    %c0_i32 = arith.constant 0 : i32
    %0 = arith.cmpi eq, %arg0, %c0_i32 : i32
    %1 = arith.extui %0 : i1 to i32
    %c0_i32_0 = arith.constant 0 : i32
    %2 = arith.cmpi ne, %1, %c0_i32_0 : i32
    scf.if %2 {
      %c0_140 = arith.constant 0 : index
      %c0_141 = arith.constant 0 : index
      %295 = vector.load %arg3[%c0_140, %c0_141] : memref<8x128xf32, #tpu.memory_space<vmem>>, vector<8x128xf32>
      %c0_142 = arith.constant 0 : index
      %c0_143 = arith.constant 0 : index
      %296 = vector.load %arg8[%c0_142, %c0_143] : memref<8x128xf32, #tpu.memory_space<vmem>>, vector<8x128xf32>
      tpu.vector_store %arg8[%c0_142, %c0_143], %295 {strides = array<i32>} : memref<8x128xf32, #tpu.memory_space<vmem>>, vector<8x128xf32>,
      %c0_144 = arith.constant 0 : index
      %c0_145 = arith.constant 0 : index
      %297 = vector.load %arg4[%c0_144, %c0_145] : memref<8x128xf32, #tpu.memory_space<vmem>>, vector<8x128xf32>
      %c0_146 = arith.constant 0 : index
      %c0_147 = arith.constant 0 : index
      %298 = vector.load %arg9[%c0_146, %c0_147] : memref<8x128xf32, #tpu.memory_space<vmem>>, vector<8x128xf32>
      tpu.vector_store %arg9[%c0_146, %c0_147], %297 {strides = array<i32>} : memref<8x128xf32, #tpu.memory_space<vmem>>, vector<8x128xf32>,
    } else {
    }
    %c0 = arith.constant 0 : index
    %c0_1 = arith.constant 0 : index
    %3 = vector.load %arg2[%c0, %c0_1] : memref<128x512xf32, #tpu.memory_space<vmem>>, vector<128x512xf32>
    %c0_2 = arith.constant 0 : index
    %c0_3 = arith.constant 0 : index
    %4 = vector.load %arg8[%c0_2, %c0_3] : memref<8x128xf32, #tpu.memory_space<vmem>>, vector<8x128xf32>
    %c0_4 = arith.constant 0 : index
    %c0_5 = arith.constant 0 : index
    %5 = vector.load %arg9[%c0_4, %c0_5] : memref<8x128xf32, #tpu.memory_space<vmem>>, vector<8x128xf32>
    %c0_6 = arith.constant 0 : index
    %c0_7 = arith.constant 0 : index
    %c0_8 = arith.constant 0 : index
    %6 = vector.load %arg1[%c0_6, %c0_7, %c0_8] : memref<8x8x512xf32, #tpu.memory_space<vmem>>, vector<1x8x512xf32>
    %7 = vector.shape_cast %6 : vector<1x8x512xf32> to vector<8x512xf32>
    %cst = arith.constant dense<0.000000e+00> : vector<8x512xf32>
    %8 = tpu.matmul %4, %3, %cst {dimension_numbers = #tpu.dot_dimension_numbers<[1], [0], [0], [1], [0, 0, 1, 1], [], []>} : vector<8x128xf32>, vector<128x512xf32>, vector<8x512xf32> -> vector<8x512xf32>
    %9 = arith.addf %7, %8 : vector<8x512xf32>
    %10 = vector.extract_strided_slice %9 {offsets = [0, 0], sizes = [8, 128], strides = [1, 1]} : vector<8x512xf32> to vector<8x128xf32>
    %11 = arith.negf %10 : vector<8x128xf32>
    %12 = math.exp %11 : vector<8x128xf32>
    %cst_9 = arith.constant 1.000000e+00 : f32
    %13 = vector.broadcast %cst_9 : f32 to vector<8x128xf32>
    %14 = arith.addf %13, %12 : vector<8x128xf32>
    %15 = arith.divf %13, %14 : vector<8x128xf32>
    %16 = vector.extract_strided_slice %9 {offsets = [0, 128], sizes = [8, 128], strides = [1, 1]} : vector<8x512xf32> to vector<8x128xf32>
    %17 = arith.negf %16 : vector<8x128xf32>
    %18 = math.exp %17 : vector<8x128xf32>
    %cst_10 = arith.constant 1.000000e+00 : f32
    %19 = vector.broadcast %cst_10 : f32 to vector<8x128xf32>
    %20 = arith.addf %19, %18 : vector<8x128xf32>
    %21 = arith.divf %19, %20 : vector<8x128xf32>
    %22 = vector.extract_strided_slice %9 {offsets = [0, 256], sizes = [8, 128], strides = [1, 1]} : vector<8x512xf32> to vector<8x128xf32>
    %23 = math.tanh %22 : vector<8x128xf32>
    %24 = vector.extract_strided_slice %9 {offsets = [0, 384], sizes = [8, 128], strides = [1, 1]} : vector<8x512xf32> to vector<8x128xf32>
    %25 = arith.negf %24 : vector<8x128xf32>
    %26 = math.exp %25 : vector<8x128xf32>
    %cst_11 = arith.constant 1.000000e+00 : f32
    %27 = vector.broadcast %cst_11 : f32 to vector<8x128xf32>
    %28 = arith.addf %27, %26 : vector<8x128xf32>
    %29 = arith.divf %27, %28 : vector<8x128xf32>
    %30 = arith.mulf %21, %5 : vector<8x128xf32>
    %31 = arith.mulf %15, %23 : vector<8x128xf32>
    %32 = arith.addf %30, %31 : vector<8x128xf32>
    %33 = math.tanh %32 : vector<8x128xf32>
    %34 = arith.mulf %29, %33 : vector<8x128xf32>
    %c0_12 = arith.constant 0 : index
    %c0_13 = arith.constant 0 : index
    %35 = vector.load %arg8[%c0_12, %c0_13] : memref<8x128xf32, #tpu.memory_space<vmem>>, vector<8x128xf32>
    tpu.vector_store %arg8[%c0_12, %c0_13], %34 {strides = array<i32>} : memref<8x128xf32, #tpu.memory_space<vmem>>, vector<8x128xf32>,
    %c0_14 = arith.constant 0 : index
    %c0_15 = arith.constant 0 : index
    %36 = vector.load %arg9[%c0_14, %c0_15] : memref<8x128xf32, #tpu.memory_space<vmem>>, vector<8x128xf32>
    tpu.vector_store %arg9[%c0_14, %c0_15], %32 {strides = array<i32>} : memref<8x128xf32, #tpu.memory_space<vmem>>, vector<8x128xf32>,
    %c0_16 = arith.constant 0 : index
    %c0_17 = arith.constant 0 : index
    %c0_18 = arith.constant 0 : index
    %37 = vector.load %arg5[%c0_16, %c0_17, %c0_18] : memref<8x8x128xf32, #tpu.memory_space<vmem>>, vector<1x8x128xf32>
    %38 = vector.shape_cast %37 : vector<1x8x128xf32> to vector<8x128xf32>
    %39 = vector.shape_cast %34 : vector<8x128xf32> to vector<1x8x128xf32>
    tpu.vector_store %arg5[%c0_16, %c0_17, %c0_18], %39 {strides = array<i32>} : memref<8x8x128xf32, #tpu.memory_space<vmem>>, vector<1x8x128xf32>,
    %c0_19 = arith.constant 0 : index
    %c0_20 = arith.constant 0 : index
    %40 = vector.load %arg8[%c0_19, %c0_20] : memref<8x128xf32, #tpu.memory_space<vmem>>, vector<8x128xf32>
    %c0_21 = arith.constant 0 : index
    %c0_22 = arith.constant 0 : index
    %41 = vector.load %arg9[%c0_21, %c0_22] : memref<8x128xf32, #tpu.memory_space<vmem>>, vector<8x128xf32>
    %c1 = arith.constant 1 : index
    %c0_23 = arith.constant 0 : index
    %c0_24 = arith.constant 0 : index
    %42 = vector.load %arg1[%c1, %c0_23, %c0_24] : memref<8x8x512xf32, #tpu.memory_space<vmem>>, vector<1x8x512xf32>
    %43 = vector.shape_cast %42 : vector<1x8x512xf32> to vector<8x512xf32>
    %cst_25 = arith.constant dense<0.000000e+00> : vector<8x512xf32>
    %44 = tpu.matmul %40, %3, %cst_25 {dimension_numbers = #tpu.dot_dimension_numbers<[1], [0], [0], [1], [0, 0, 1, 1], [], []>} : vector<8x128xf32>, vector<128x512xf32>, vector<8x512xf32> -> vector<8x512xf32>
    %45 = arith.addf %43, %44 : vector<8x512xf32>
    %46 = vector.extract_strided_slice %45 {offsets = [0, 0], sizes = [8, 128], strides = [1, 1]} : vector<8x512xf32> to vector<8x128xf32>
    %47 = arith.negf %46 : vector<8x128xf32>
    %48 = math.exp %47 : vector<8x128xf32>
    %cst_26 = arith.constant 1.000000e+00 : f32
    %49 = vector.broadcast %cst_26 : f32 to vector<8x128xf32>
    %50 = arith.addf %49, %48 : vector<8x128xf32>
    %51 = arith.divf %49, %50 : vector<8x128xf32>
    %52 = vector.extract_strided_slice %45 {offsets = [0, 128], sizes = [8, 128], strides = [1, 1]} : vector<8x512xf32> to vector<8x128xf32>
    %53 = arith.negf %52 : vector<8x128xf32>
    %54 = math.exp %53 : vector<8x128xf32>
    %cst_27 = arith.constant 1.000000e+00 : f32
    %55 = vector.broadcast %cst_27 : f32 to vector<8x128xf32>
    %56 = arith.addf %55, %54 : vector<8x128xf32>
    %57 = arith.divf %55, %56 : vector<8x128xf32>
    %58 = vector.extract_strided_slice %45 {offsets = [0, 256], sizes = [8, 128], strides = [1, 1]} : vector<8x512xf32> to vector<8x128xf32>
    %59 = math.tanh %58 : vector<8x128xf32>
    %60 = vector.extract_strided_slice %45 {offsets = [0, 384], sizes = [8, 128], strides = [1, 1]} : vector<8x512xf32> to vector<8x128xf32>
    %61 = arith.negf %60 : vector<8x128xf32>
    %62 = math.exp %61 : vector<8x128xf32>
    %cst_28 = arith.constant 1.000000e+00 : f32
    %63 = vector.broadcast %cst_28 : f32 to vector<8x128xf32>
    %64 = arith.addf %63, %62 : vector<8x128xf32>
    %65 = arith.divf %63, %64 : vector<8x128xf32>
    %66 = arith.mulf %57, %41 : vector<8x128xf32>
    %67 = arith.mulf %51, %59 : vector<8x128xf32>
    %68 = arith.addf %66, %67 : vector<8x128xf32>
    %69 = math.tanh %68 : vector<8x128xf32>
    %70 = arith.mulf %65, %69 : vector<8x128xf32>
    %c0_29 = arith.constant 0 : index
    %c0_30 = arith.constant 0 : index
    %71 = vector.load %arg8[%c0_29, %c0_30] : memref<8x128xf32, #tpu.memory_space<vmem>>, vector<8x128xf32>
    tpu.vector_store %arg8[%c0_29, %c0_30], %70 {strides = array<i32>} : memref<8x128xf32, #tpu.memory_space<vmem>>, vector<8x128xf32>,
    %c0_31 = arith.constant 0 : index
    %c0_32 = arith.constant 0 : index
    %72 = vector.load %arg9[%c0_31, %c0_32] : memref<8x128xf32, #tpu.memory_space<vmem>>, vector<8x128xf32>
    tpu.vector_store %arg9[%c0_31, %c0_32], %68 {strides = array<i32>} : memref<8x128xf32, #tpu.memory_space<vmem>>, vector<8x128xf32>,
    %c1_33 = arith.constant 1 : index
    %c0_34 = arith.constant 0 : index
    %c0_35 = arith.constant 0 : index
    %73 = vector.load %arg5[%c1_33, %c0_34, %c0_35] : memref<8x8x128xf32, #tpu.memory_space<vmem>>, vector<1x8x128xf32>
    %74 = vector.shape_cast %73 : vector<1x8x128xf32> to vector<8x128xf32>
    %75 = vector.shape_cast %70 : vector<8x128xf32> to vector<1x8x128xf32>
    tpu.vector_store %arg5[%c1_33, %c0_34, %c0_35], %75 {strides = array<i32>} : memref<8x8x128xf32, #tpu.memory_space<vmem>>, vector<1x8x128xf32>,
    %c0_36 = arith.constant 0 : index
    %c0_37 = arith.constant 0 : index
    %76 = vector.load %arg8[%c0_36, %c0_37] : memref<8x128xf32, #tpu.memory_space<vmem>>, vector<8x128xf32>
    %c0_38 = arith.constant 0 : index
    %c0_39 = arith.constant 0 : index
    %77 = vector.load %arg9[%c0_38, %c0_39] : memref<8x128xf32, #tpu.memory_space<vmem>>, vector<8x128xf32>
    %c2 = arith.constant 2 : index
    %c0_40 = arith.constant 0 : index
    %c0_41 = arith.constant 0 : index
    %78 = vector.load %arg1[%c2, %c0_40, %c0_41] : memref<8x8x512xf32, #tpu.memory_space<vmem>>, vector<1x8x512xf32>
    %79 = vector.shape_cast %78 : vector<1x8x512xf32> to vector<8x512xf32>
    %cst_42 = arith.constant dense<0.000000e+00> : vector<8x512xf32>
    %80 = tpu.matmul %76, %3, %cst_42 {dimension_numbers = #tpu.dot_dimension_numbers<[1], [0], [0], [1], [0, 0, 1, 1], [], []>} : vector<8x128xf32>, vector<128x512xf32>, vector<8x512xf32> -> vector<8x512xf32>
    %81 = arith.addf %79, %80 : vector<8x512xf32>
    %82 = vector.extract_strided_slice %81 {offsets = [0, 0], sizes = [8, 128], strides = [1, 1]} : vector<8x512xf32> to vector<8x128xf32>
    %83 = arith.negf %82 : vector<8x128xf32>
    %84 = math.exp %83 : vector<8x128xf32>
    %cst_43 = arith.constant 1.000000e+00 : f32
    %85 = vector.broadcast %cst_43 : f32 to vector<8x128xf32>
    %86 = arith.addf %85, %84 : vector<8x128xf32>
    %87 = arith.divf %85, %86 : vector<8x128xf32>
    %88 = vector.extract_strided_slice %81 {offsets = [0, 128], sizes = [8, 128], strides = [1, 1]} : vector<8x512xf32> to vector<8x128xf32>
    %89 = arith.negf %88 : vector<8x128xf32>
    %90 = math.exp %89 : vector<8x128xf32>
    %cst_44 = arith.constant 1.000000e+00 : f32
    %91 = vector.broadcast %cst_44 : f32 to vector<8x128xf32>
    %92 = arith.addf %91, %90 : vector<8x128xf32>
    %93 = arith.divf %91, %92 : vector<8x128xf32>
    %94 = vector.extract_strided_slice %81 {offsets = [0, 256], sizes = [8, 128], strides = [1, 1]} : vector<8x512xf32> to vector<8x128xf32>
    %95 = math.tanh %94 : vector<8x128xf32>
    %96 = vector.extract_strided_slice %81 {offsets = [0, 384], sizes = [8, 128], strides = [1, 1]} : vector<8x512xf32> to vector<8x128xf32>
    %97 = arith.negf %96 : vector<8x128xf32>
    %98 = math.exp %97 : vector<8x128xf32>
    %cst_45 = arith.constant 1.000000e+00 : f32
    %99 = vector.broadcast %cst_45 : f32 to vector<8x128xf32>
    %100 = arith.addf %99, %98 : vector<8x128xf32>
    %101 = arith.divf %99, %100 : vector<8x128xf32>
    %102 = arith.mulf %93, %77 : vector<8x128xf32>
    %103 = arith.mulf %87, %95 : vector<8x128xf32>
    %104 = arith.addf %102, %103 : vector<8x128xf32>
    %105 = math.tanh %104 : vector<8x128xf32>
    %106 = arith.mulf %101, %105 : vector<8x128xf32>
    %c0_46 = arith.constant 0 : index
    %c0_47 = arith.constant 0 : index
    %107 = vector.load %arg8[%c0_46, %c0_47] : memref<8x128xf32, #tpu.memory_space<vmem>>, vector<8x128xf32>
    tpu.vector_store %arg8[%c0_46, %c0_47], %106 {strides = array<i32>} : memref<8x128xf32, #tpu.memory_space<vmem>>, vector<8x128xf32>,
    %c0_48 = arith.constant 0 : index
    %c0_49 = arith.constant 0 : index
    %108 = vector.load %arg9[%c0_48, %c0_49] : memref<8x128xf32, #tpu.memory_space<vmem>>, vector<8x128xf32>
    tpu.vector_store %arg9[%c0_48, %c0_49], %104 {strides = array<i32>} : memref<8x128xf32, #tpu.memory_space<vmem>>, vector<8x128xf32>,
    %c2_50 = arith.constant 2 : index
    %c0_51 = arith.constant 0 : index
    %c0_52 = arith.constant 0 : index
    %109 = vector.load %arg5[%c2_50, %c0_51, %c0_52] : memref<8x8x128xf32, #tpu.memory_space<vmem>>, vector<1x8x128xf32>
    %110 = vector.shape_cast %109 : vector<1x8x128xf32> to vector<8x128xf32>
    %111 = vector.shape_cast %106 : vector<8x128xf32> to vector<1x8x128xf32>
    tpu.vector_store %arg5[%c2_50, %c0_51, %c0_52], %111 {strides = array<i32>} : memref<8x8x128xf32, #tpu.memory_space<vmem>>, vector<1x8x128xf32>,
    %c0_53 = arith.constant 0 : index
    %c0_54 = arith.constant 0 : index
    %112 = vector.load %arg8[%c0_53, %c0_54] : memref<8x128xf32, #tpu.memory_space<vmem>>, vector<8x128xf32>
    %c0_55 = arith.constant 0 : index
    %c0_56 = arith.constant 0 : index
    %113 = vector.load %arg9[%c0_55, %c0_56] : memref<8x128xf32, #tpu.memory_space<vmem>>, vector<8x128xf32>
    %c3 = arith.constant 3 : index
    %c0_57 = arith.constant 0 : index
    %c0_58 = arith.constant 0 : index
    %114 = vector.load %arg1[%c3, %c0_57, %c0_58] : memref<8x8x512xf32, #tpu.memory_space<vmem>>, vector<1x8x512xf32>
    %115 = vector.shape_cast %114 : vector<1x8x512xf32> to vector<8x512xf32>
    %cst_59 = arith.constant dense<0.000000e+00> : vector<8x512xf32>
    %116 = tpu.matmul %112, %3, %cst_59 {dimension_numbers = #tpu.dot_dimension_numbers<[1], [0], [0], [1], [0, 0, 1, 1], [], []>} : vector<8x128xf32>, vector<128x512xf32>, vector<8x512xf32> -> vector<8x512xf32>
    %117 = arith.addf %115, %116 : vector<8x512xf32>
    %118 = vector.extract_strided_slice %117 {offsets = [0, 0], sizes = [8, 128], strides = [1, 1]} : vector<8x512xf32> to vector<8x128xf32>
    %119 = arith.negf %118 : vector<8x128xf32>
    %120 = math.exp %119 : vector<8x128xf32>
    %cst_60 = arith.constant 1.000000e+00 : f32
    %121 = vector.broadcast %cst_60 : f32 to vector<8x128xf32>
    %122 = arith.addf %121, %120 : vector<8x128xf32>
    %123 = arith.divf %121, %122 : vector<8x128xf32>
    %124 = vector.extract_strided_slice %117 {offsets = [0, 128], sizes = [8, 128], strides = [1, 1]} : vector<8x512xf32> to vector<8x128xf32>
    %125 = arith.negf %124 : vector<8x128xf32>
    %126 = math.exp %125 : vector<8x128xf32>
    %cst_61 = arith.constant 1.000000e+00 : f32
    %127 = vector.broadcast %cst_61 : f32 to vector<8x128xf32>
    %128 = arith.addf %127, %126 : vector<8x128xf32>
    %129 = arith.divf %127, %128 : vector<8x128xf32>
    %130 = vector.extract_strided_slice %117 {offsets = [0, 256], sizes = [8, 128], strides = [1, 1]} : vector<8x512xf32> to vector<8x128xf32>
    %131 = math.tanh %130 : vector<8x128xf32>
    %132 = vector.extract_strided_slice %117 {offsets = [0, 384], sizes = [8, 128], strides = [1, 1]} : vector<8x512xf32> to vector<8x128xf32>
    %133 = arith.negf %132 : vector<8x128xf32>
    %134 = math.exp %133 : vector<8x128xf32>
    %cst_62 = arith.constant 1.000000e+00 : f32
    %135 = vector.broadcast %cst_62 : f32 to vector<8x128xf32>
    %136 = arith.addf %135, %134 : vector<8x128xf32>
    %137 = arith.divf %135, %136 : vector<8x128xf32>
    %138 = arith.mulf %129, %113 : vector<8x128xf32>
    %139 = arith.mulf %123, %131 : vector<8x128xf32>
    %140 = arith.addf %138, %139 : vector<8x128xf32>
    %141 = math.tanh %140 : vector<8x128xf32>
    %142 = arith.mulf %137, %141 : vector<8x128xf32>
    %c0_63 = arith.constant 0 : index
    %c0_64 = arith.constant 0 : index
    %143 = vector.load %arg8[%c0_63, %c0_64] : memref<8x128xf32, #tpu.memory_space<vmem>>, vector<8x128xf32>
    tpu.vector_store %arg8[%c0_63, %c0_64], %142 {strides = array<i32>} : memref<8x128xf32, #tpu.memory_space<vmem>>, vector<8x128xf32>,
    %c0_65 = arith.constant 0 : index
    %c0_66 = arith.constant 0 : index
    %144 = vector.load %arg9[%c0_65, %c0_66] : memref<8x128xf32, #tpu.memory_space<vmem>>, vector<8x128xf32>
    tpu.vector_store %arg9[%c0_65, %c0_66], %140 {strides = array<i32>} : memref<8x128xf32, #tpu.memory_space<vmem>>, vector<8x128xf32>,
    %c3_67 = arith.constant 3 : index
    %c0_68 = arith.constant 0 : index
    %c0_69 = arith.constant 0 : index
    %145 = vector.load %arg5[%c3_67, %c0_68, %c0_69] : memref<8x8x128xf32, #tpu.memory_space<vmem>>, vector<1x8x128xf32>
    %146 = vector.shape_cast %145 : vector<1x8x128xf32> to vector<8x128xf32>
    %147 = vector.shape_cast %142 : vector<8x128xf32> to vector<1x8x128xf32>
    tpu.vector_store %arg5[%c3_67, %c0_68, %c0_69], %147 {strides = array<i32>} : memref<8x8x128xf32, #tpu.memory_space<vmem>>, vector<1x8x128xf32>,
    %c0_70 = arith.constant 0 : index
    %c0_71 = arith.constant 0 : index
    %148 = vector.load %arg8[%c0_70, %c0_71] : memref<8x128xf32, #tpu.memory_space<vmem>>, vector<8x128xf32>
    %c0_72 = arith.constant 0 : index
    %c0_73 = arith.constant 0 : index
    %149 = vector.load %arg9[%c0_72, %c0_73] : memref<8x128xf32, #tpu.memory_space<vmem>>, vector<8x128xf32>
    %c4 = arith.constant 4 : index
    %c0_74 = arith.constant 0 : index
    %c0_75 = arith.constant 0 : index
    %150 = vector.load %arg1[%c4, %c0_74, %c0_75] : memref<8x8x512xf32, #tpu.memory_space<vmem>>, vector<1x8x512xf32>
    %151 = vector.shape_cast %150 : vector<1x8x512xf32> to vector<8x512xf32>
    %cst_76 = arith.constant dense<0.000000e+00> : vector<8x512xf32>
    %152 = tpu.matmul %148, %3, %cst_76 {dimension_numbers = #tpu.dot_dimension_numbers<[1], [0], [0], [1], [0, 0, 1, 1], [], []>} : vector<8x128xf32>, vector<128x512xf32>, vector<8x512xf32> -> vector<8x512xf32>
    %153 = arith.addf %151, %152 : vector<8x512xf32>
    %154 = vector.extract_strided_slice %153 {offsets = [0, 0], sizes = [8, 128], strides = [1, 1]} : vector<8x512xf32> to vector<8x128xf32>
    %155 = arith.negf %154 : vector<8x128xf32>
    %156 = math.exp %155 : vector<8x128xf32>
    %cst_77 = arith.constant 1.000000e+00 : f32
    %157 = vector.broadcast %cst_77 : f32 to vector<8x128xf32>
    %158 = arith.addf %157, %156 : vector<8x128xf32>
    %159 = arith.divf %157, %158 : vector<8x128xf32>
    %160 = vector.extract_strided_slice %153 {offsets = [0, 128], sizes = [8, 128], strides = [1, 1]} : vector<8x512xf32> to vector<8x128xf32>
    %161 = arith.negf %160 : vector<8x128xf32>
    %162 = math.exp %161 : vector<8x128xf32>
    %cst_78 = arith.constant 1.000000e+00 : f32
    %163 = vector.broadcast %cst_78 : f32 to vector<8x128xf32>
    %164 = arith.addf %163, %162 : vector<8x128xf32>
    %165 = arith.divf %163, %164 : vector<8x128xf32>
    %166 = vector.extract_strided_slice %153 {offsets = [0, 256], sizes = [8, 128], strides = [1, 1]} : vector<8x512xf32> to vector<8x128xf32>
    %167 = math.tanh %166 : vector<8x128xf32>
    %168 = vector.extract_strided_slice %153 {offsets = [0, 384], sizes = [8, 128], strides = [1, 1]} : vector<8x512xf32> to vector<8x128xf32>
    %169 = arith.negf %168 : vector<8x128xf32>
    %170 = math.exp %169 : vector<8x128xf32>
    %cst_79 = arith.constant 1.000000e+00 : f32
    %171 = vector.broadcast %cst_79 : f32 to vector<8x128xf32>
    %172 = arith.addf %171, %170 : vector<8x128xf32>
    %173 = arith.divf %171, %172 : vector<8x128xf32>
    %174 = arith.mulf %165, %149 : vector<8x128xf32>
    %175 = arith.mulf %159, %167 : vector<8x128xf32>
    %176 = arith.addf %174, %175 : vector<8x128xf32>
    %177 = math.tanh %176 : vector<8x128xf32>
    %178 = arith.mulf %173, %177 : vector<8x128xf32>
    %c0_80 = arith.constant 0 : index
    %c0_81 = arith.constant 0 : index
    %179 = vector.load %arg8[%c0_80, %c0_81] : memref<8x128xf32, #tpu.memory_space<vmem>>, vector<8x128xf32>
    tpu.vector_store %arg8[%c0_80, %c0_81], %178 {strides = array<i32>} : memref<8x128xf32, #tpu.memory_space<vmem>>, vector<8x128xf32>,
    %c0_82 = arith.constant 0 : index
    %c0_83 = arith.constant 0 : index
    %180 = vector.load %arg9[%c0_82, %c0_83] : memref<8x128xf32, #tpu.memory_space<vmem>>, vector<8x128xf32>
    tpu.vector_store %arg9[%c0_82, %c0_83], %176 {strides = array<i32>} : memref<8x128xf32, #tpu.memory_space<vmem>>, vector<8x128xf32>,
    %c4_84 = arith.constant 4 : index
    %c0_85 = arith.constant 0 : index
    %c0_86 = arith.constant 0 : index
    %181 = vector.load %arg5[%c4_84, %c0_85, %c0_86] : memref<8x8x128xf32, #tpu.memory_space<vmem>>, vector<1x8x128xf32>
    %182 = vector.shape_cast %181 : vector<1x8x128xf32> to vector<8x128xf32>
    %183 = vector.shape_cast %178 : vector<8x128xf32> to vector<1x8x128xf32>
    tpu.vector_store %arg5[%c4_84, %c0_85, %c0_86], %183 {strides = array<i32>} : memref<8x8x128xf32, #tpu.memory_space<vmem>>, vector<1x8x128xf32>,
    %c0_87 = arith.constant 0 : index
    %c0_88 = arith.constant 0 : index
    %184 = vector.load %arg8[%c0_87, %c0_88] : memref<8x128xf32, #tpu.memory_space<vmem>>, vector<8x128xf32>
    %c0_89 = arith.constant 0 : index
    %c0_90 = arith.constant 0 : index
    %185 = vector.load %arg9[%c0_89, %c0_90] : memref<8x128xf32, #tpu.memory_space<vmem>>, vector<8x128xf32>
    %c5 = arith.constant 5 : index
    %c0_91 = arith.constant 0 : index
    %c0_92 = arith.constant 0 : index
    %186 = vector.load %arg1[%c5, %c0_91, %c0_92] : memref<8x8x512xf32, #tpu.memory_space<vmem>>, vector<1x8x512xf32>
    %187 = vector.shape_cast %186 : vector<1x8x512xf32> to vector<8x512xf32>
    %cst_93 = arith.constant dense<0.000000e+00> : vector<8x512xf32>
    %188 = tpu.matmul %184, %3, %cst_93 {dimension_numbers = #tpu.dot_dimension_numbers<[1], [0], [0], [1], [0, 0, 1, 1], [], []>} : vector<8x128xf32>, vector<128x512xf32>, vector<8x512xf32> -> vector<8x512xf32>
    %189 = arith.addf %187, %188 : vector<8x512xf32>
    %190 = vector.extract_strided_slice %189 {offsets = [0, 0], sizes = [8, 128], strides = [1, 1]} : vector<8x512xf32> to vector<8x128xf32>
    %191 = arith.negf %190 : vector<8x128xf32>
    %192 = math.exp %191 : vector<8x128xf32>
    %cst_94 = arith.constant 1.000000e+00 : f32
    %193 = vector.broadcast %cst_94 : f32 to vector<8x128xf32>
    %194 = arith.addf %193, %192 : vector<8x128xf32>
    %195 = arith.divf %193, %194 : vector<8x128xf32>
    %196 = vector.extract_strided_slice %189 {offsets = [0, 128], sizes = [8, 128], strides = [1, 1]} : vector<8x512xf32> to vector<8x128xf32>
    %197 = arith.negf %196 : vector<8x128xf32>
    %198 = math.exp %197 : vector<8x128xf32>
    %cst_95 = arith.constant 1.000000e+00 : f32
    %199 = vector.broadcast %cst_95 : f32 to vector<8x128xf32>
    %200 = arith.addf %199, %198 : vector<8x128xf32>
    %201 = arith.divf %199, %200 : vector<8x128xf32>
    %202 = vector.extract_strided_slice %189 {offsets = [0, 256], sizes = [8, 128], strides = [1, 1]} : vector<8x512xf32> to vector<8x128xf32>
    %203 = math.tanh %202 : vector<8x128xf32>
    %204 = vector.extract_strided_slice %189 {offsets = [0, 384], sizes = [8, 128], strides = [1, 1]} : vector<8x512xf32> to vector<8x128xf32>
    %205 = arith.negf %204 : vector<8x128xf32>
    %206 = math.exp %205 : vector<8x128xf32>
    %cst_96 = arith.constant 1.000000e+00 : f32
    %207 = vector.broadcast %cst_96 : f32 to vector<8x128xf32>
    %208 = arith.addf %207, %206 : vector<8x128xf32>
    %209 = arith.divf %207, %208 : vector<8x128xf32>
    %210 = arith.mulf %201, %185 : vector<8x128xf32>
    %211 = arith.mulf %195, %203 : vector<8x128xf32>
    %212 = arith.addf %210, %211 : vector<8x128xf32>
    %213 = math.tanh %212 : vector<8x128xf32>
    %214 = arith.mulf %209, %213 : vector<8x128xf32>
    %c0_97 = arith.constant 0 : index
    %c0_98 = arith.constant 0 : index
    %215 = vector.load %arg8[%c0_97, %c0_98] : memref<8x128xf32, #tpu.memory_space<vmem>>, vector<8x128xf32>
    tpu.vector_store %arg8[%c0_97, %c0_98], %214 {strides = array<i32>} : memref<8x128xf32, #tpu.memory_space<vmem>>, vector<8x128xf32>,
    %c0_99 = arith.constant 0 : index
    %c0_100 = arith.constant 0 : index
    %216 = vector.load %arg9[%c0_99, %c0_100] : memref<8x128xf32, #tpu.memory_space<vmem>>, vector<8x128xf32>
    tpu.vector_store %arg9[%c0_99, %c0_100], %212 {strides = array<i32>} : memref<8x128xf32, #tpu.memory_space<vmem>>, vector<8x128xf32>,
    %c5_101 = arith.constant 5 : index
    %c0_102 = arith.constant 0 : index
    %c0_103 = arith.constant 0 : index
    %217 = vector.load %arg5[%c5_101, %c0_102, %c0_103] : memref<8x8x128xf32, #tpu.memory_space<vmem>>, vector<1x8x128xf32>
    %218 = vector.shape_cast %217 : vector<1x8x128xf32> to vector<8x128xf32>
    %219 = vector.shape_cast %214 : vector<8x128xf32> to vector<1x8x128xf32>
    tpu.vector_store %arg5[%c5_101, %c0_102, %c0_103], %219 {strides = array<i32>} : memref<8x8x128xf32, #tpu.memory_space<vmem>>, vector<1x8x128xf32>,
    %c0_104 = arith.constant 0 : index
    %c0_105 = arith.constant 0 : index
    %220 = vector.load %arg8[%c0_104, %c0_105] : memref<8x128xf32, #tpu.memory_space<vmem>>, vector<8x128xf32>
    %c0_106 = arith.constant 0 : index
    %c0_107 = arith.constant 0 : index
    %221 = vector.load %arg9[%c0_106, %c0_107] : memref<8x128xf32, #tpu.memory_space<vmem>>, vector<8x128xf32>
    %c6 = arith.constant 6 : index
    %c0_108 = arith.constant 0 : index
    %c0_109 = arith.constant 0 : index
    %222 = vector.load %arg1[%c6, %c0_108, %c0_109] : memref<8x8x512xf32, #tpu.memory_space<vmem>>, vector<1x8x512xf32>
    %223 = vector.shape_cast %222 : vector<1x8x512xf32> to vector<8x512xf32>
    %cst_110 = arith.constant dense<0.000000e+00> : vector<8x512xf32>
    %224 = tpu.matmul %220, %3, %cst_110 {dimension_numbers = #tpu.dot_dimension_numbers<[1], [0], [0], [1], [0, 0, 1, 1], [], []>} : vector<8x128xf32>, vector<128x512xf32>, vector<8x512xf32> -> vector<8x512xf32>
    %225 = arith.addf %223, %224 : vector<8x512xf32>
    %226 = vector.extract_strided_slice %225 {offsets = [0, 0], sizes = [8, 128], strides = [1, 1]} : vector<8x512xf32> to vector<8x128xf32>
    %227 = arith.negf %226 : vector<8x128xf32>
    %228 = math.exp %227 : vector<8x128xf32>
    %cst_111 = arith.constant 1.000000e+00 : f32
    %229 = vector.broadcast %cst_111 : f32 to vector<8x128xf32>
    %230 = arith.addf %229, %228 : vector<8x128xf32>
    %231 = arith.divf %229, %230 : vector<8x128xf32>
    %232 = vector.extract_strided_slice %225 {offsets = [0, 128], sizes = [8, 128], strides = [1, 1]} : vector<8x512xf32> to vector<8x128xf32>
    %233 = arith.negf %232 : vector<8x128xf32>
    %234 = math.exp %233 : vector<8x128xf32>
    %cst_112 = arith.constant 1.000000e+00 : f32
    %235 = vector.broadcast %cst_112 : f32 to vector<8x128xf32>
    %236 = arith.addf %235, %234 : vector<8x128xf32>
    %237 = arith.divf %235, %236 : vector<8x128xf32>
    %238 = vector.extract_strided_slice %225 {offsets = [0, 256], sizes = [8, 128], strides = [1, 1]} : vector<8x512xf32> to vector<8x128xf32>
    %239 = math.tanh %238 : vector<8x128xf32>
    %240 = vector.extract_strided_slice %225 {offsets = [0, 384], sizes = [8, 128], strides = [1, 1]} : vector<8x512xf32> to vector<8x128xf32>
    %241 = arith.negf %240 : vector<8x128xf32>
    %242 = math.exp %241 : vector<8x128xf32>
    %cst_113 = arith.constant 1.000000e+00 : f32
    %243 = vector.broadcast %cst_113 : f32 to vector<8x128xf32>
    %244 = arith.addf %243, %242 : vector<8x128xf32>
    %245 = arith.divf %243, %244 : vector<8x128xf32>
    %246 = arith.mulf %237, %221 : vector<8x128xf32>
    %247 = arith.mulf %231, %239 : vector<8x128xf32>
    %248 = arith.addf %246, %247 : vector<8x128xf32>
    %249 = math.tanh %248 : vector<8x128xf32>
    %250 = arith.mulf %245, %249 : vector<8x128xf32>
    %c0_114 = arith.constant 0 : index
    %c0_115 = arith.constant 0 : index
    %251 = vector.load %arg8[%c0_114, %c0_115] : memref<8x128xf32, #tpu.memory_space<vmem>>, vector<8x128xf32>
    tpu.vector_store %arg8[%c0_114, %c0_115], %250 {strides = array<i32>} : memref<8x128xf32, #tpu.memory_space<vmem>>, vector<8x128xf32>,
    %c0_116 = arith.constant 0 : index
    %c0_117 = arith.constant 0 : index
    %252 = vector.load %arg9[%c0_116, %c0_117] : memref<8x128xf32, #tpu.memory_space<vmem>>, vector<8x128xf32>
    tpu.vector_store %arg9[%c0_116, %c0_117], %248 {strides = array<i32>} : memref<8x128xf32, #tpu.memory_space<vmem>>, vector<8x128xf32>,
    %c6_118 = arith.constant 6 : index
    %c0_119 = arith.constant 0 : index
    %c0_120 = arith.constant 0 : index
    %253 = vector.load %arg5[%c6_118, %c0_119, %c0_120] : memref<8x8x128xf32, #tpu.memory_space<vmem>>, vector<1x8x128xf32>
    %254 = vector.shape_cast %253 : vector<1x8x128xf32> to vector<8x128xf32>
    %255 = vector.shape_cast %250 : vector<8x128xf32> to vector<1x8x128xf32>
    tpu.vector_store %arg5[%c6_118, %c0_119, %c0_120], %255 {strides = array<i32>} : memref<8x8x128xf32, #tpu.memory_space<vmem>>, vector<1x8x128xf32>,
    %c0_121 = arith.constant 0 : index
    %c0_122 = arith.constant 0 : index
    %256 = vector.load %arg8[%c0_121, %c0_122] : memref<8x128xf32, #tpu.memory_space<vmem>>, vector<8x128xf32>
    %c0_123 = arith.constant 0 : index
    %c0_124 = arith.constant 0 : index
    %257 = vector.load %arg9[%c0_123, %c0_124] : memref<8x128xf32, #tpu.memory_space<vmem>>, vector<8x128xf32>
    %c7 = arith.constant 7 : index
    %c0_125 = arith.constant 0 : index
    %c0_126 = arith.constant 0 : index
    %258 = vector.load %arg1[%c7, %c0_125, %c0_126] : memref<8x8x512xf32, #tpu.memory_space<vmem>>, vector<1x8x512xf32>
    %259 = vector.shape_cast %258 : vector<1x8x512xf32> to vector<8x512xf32>
    %cst_127 = arith.constant dense<0.000000e+00> : vector<8x512xf32>
    %260 = tpu.matmul %256, %3, %cst_127 {dimension_numbers = #tpu.dot_dimension_numbers<[1], [0], [0], [1], [0, 0, 1, 1], [], []>} : vector<8x128xf32>, vector<128x512xf32>, vector<8x512xf32> -> vector<8x512xf32>
    %261 = arith.addf %259, %260 : vector<8x512xf32>
    %262 = vector.extract_strided_slice %261 {offsets = [0, 0], sizes = [8, 128], strides = [1, 1]} : vector<8x512xf32> to vector<8x128xf32>
    %263 = arith.negf %262 : vector<8x128xf32>
    %264 = math.exp %263 : vector<8x128xf32>
    %cst_128 = arith.constant 1.000000e+00 : f32
    %265 = vector.broadcast %cst_128 : f32 to vector<8x128xf32>
    %266 = arith.addf %265, %264 : vector<8x128xf32>
    %267 = arith.divf %265, %266 : vector<8x128xf32>
    %268 = vector.extract_strided_slice %261 {offsets = [0, 128], sizes = [8, 128], strides = [1, 1]} : vector<8x512xf32> to vector<8x128xf32>
    %269 = arith.negf %268 : vector<8x128xf32>
    %270 = math.exp %269 : vector<8x128xf32>
    %cst_129 = arith.constant 1.000000e+00 : f32
    %271 = vector.broadcast %cst_129 : f32 to vector<8x128xf32>
    %272 = arith.addf %271, %270 : vector<8x128xf32>
    %273 = arith.divf %271, %272 : vector<8x128xf32>
    %274 = vector.extract_strided_slice %261 {offsets = [0, 256], sizes = [8, 128], strides = [1, 1]} : vector<8x512xf32> to vector<8x128xf32>
    %275 = math.tanh %274 : vector<8x128xf32>
    %276 = vector.extract_strided_slice %261 {offsets = [0, 384], sizes = [8, 128], strides = [1, 1]} : vector<8x512xf32> to vector<8x128xf32>
    %277 = arith.negf %276 : vector<8x128xf32>
    %278 = math.exp %277 : vector<8x128xf32>
    %cst_130 = arith.constant 1.000000e+00 : f32
    %279 = vector.broadcast %cst_130 : f32 to vector<8x128xf32>
    %280 = arith.addf %279, %278 : vector<8x128xf32>
    %281 = arith.divf %279, %280 : vector<8x128xf32>
    %282 = arith.mulf %273, %257 : vector<8x128xf32>
    %283 = arith.mulf %267, %275 : vector<8x128xf32>
    %284 = arith.addf %282, %283 : vector<8x128xf32>
    %285 = math.tanh %284 : vector<8x128xf32>
    %286 = arith.mulf %281, %285 : vector<8x128xf32>
    %c0_131 = arith.constant 0 : index
    %c0_132 = arith.constant 0 : index
    %287 = vector.load %arg8[%c0_131, %c0_132] : memref<8x128xf32, #tpu.memory_space<vmem>>, vector<8x128xf32>
    tpu.vector_store %arg8[%c0_131, %c0_132], %286 {strides = array<i32>} : memref<8x128xf32, #tpu.memory_space<vmem>>, vector<8x128xf32>,
    %c0_133 = arith.constant 0 : index
    %c0_134 = arith.constant 0 : index
    %288 = vector.load %arg9[%c0_133, %c0_134] : memref<8x128xf32, #tpu.memory_space<vmem>>, vector<8x128xf32>
    tpu.vector_store %arg9[%c0_133, %c0_134], %284 {strides = array<i32>} : memref<8x128xf32, #tpu.memory_space<vmem>>, vector<8x128xf32>,
    %c7_135 = arith.constant 7 : index
    %c0_136 = arith.constant 0 : index
    %c0_137 = arith.constant 0 : index
    %289 = vector.load %arg5[%c7_135, %c0_136, %c0_137] : memref<8x8x128xf32, #tpu.memory_space<vmem>>, vector<1x8x128xf32>
    %290 = vector.shape_cast %289 : vector<1x8x128xf32> to vector<8x128xf32>
    %291 = vector.shape_cast %286 : vector<8x128xf32> to vector<1x8x128xf32>
    tpu.vector_store %arg5[%c7_135, %c0_136, %c0_137], %291 {strides = array<i32>} : memref<8x8x128xf32, #tpu.memory_space<vmem>>, vector<1x8x128xf32>,
    %c0_i32_138 = arith.constant 0 : i32
    %292 = arith.cmpi eq, %arg0, %c0_i32_138 : i32
    %293 = arith.extui %292 : i1 to i32
    %c0_i32_139 = arith.constant 0 : i32
    %294 = arith.cmpi ne, %293, %c0_i32_139 : i32
    scf.if %294 {
      %c0_140 = arith.constant 0 : index
      %c0_141 = arith.constant 0 : index
      %295 = vector.load %arg8[%c0_140, %c0_141] : memref<8x128xf32, #tpu.memory_space<vmem>>, vector<8x128xf32>
      %c0_142 = arith.constant 0 : index
      %c0_143 = arith.constant 0 : index
      %296 = vector.load %arg6[%c0_142, %c0_143] : memref<8x128xf32, #tpu.memory_space<vmem>>, vector<8x128xf32>
      tpu.vector_store %arg6[%c0_142, %c0_143], %295 {strides = array<i32>} : memref<8x128xf32, #tpu.memory_space<vmem>>, vector<8x128xf32>,
      %c0_144 = arith.constant 0 : index
      %c0_145 = arith.constant 0 : index
      %297 = vector.load %arg9[%c0_144, %c0_145] : memref<8x128xf32, #tpu.memory_space<vmem>>, vector<8x128xf32>
      %c0_146 = arith.constant 0 : index
      %c0_147 = arith.constant 0 : index
      %298 = vector.load %arg7[%c0_146, %c0_147] : memref<8x128xf32, #tpu.memory_space<vmem>>, vector<8x128xf32>
      tpu.vector_store %arg7[%c0_146, %c0_147], %297 {strides = array<i32>} : memref<8x128xf32, #tpu.memory_space<vmem>>, vector<8x128xf32>,
    } else {
    }
    return
  }
  func.func @transform_0(%arg0: i32) -> (i32, i32, i32) {
    %c0_i32 = arith.constant 0 : i32
    %c0_i32_0 = arith.constant 0 : i32
    %c0_i32_1 = arith.constant 0 : i32
    return %arg0, %c0_i32, %c0_i32_0 : i32, i32, i32
  }
  func.func @transform_1(%arg0: i32) -> (i32, i32) {
    %c0_i32 = arith.constant 0 : i32
    %c0_i32_0 = arith.constant 0 : i32
    %c0_i32_1 = arith.constant 0 : i32
    return %c0_i32, %c0_i32_0 : i32, i32
  }
  func.func @transform_2(%arg0: i32) -> (i32, i32) {
    %c0_i32 = arith.constant 0 : i32
    %c0_i32_0 = arith.constant 0 : i32
    %c0_i32_1 = arith.constant 0 : i32
    return %c0_i32, %c0_i32_0 : i32, i32
  }
  func.func @transform_3(%arg0: i32) -> (i32, i32) {
    %c0_i32 = arith.constant 0 : i32
    %c0_i32_0 = arith.constant 0 : i32
    %c0_i32_1 = arith.constant 0 : i32
    return %c0_i32, %c0_i32_0 : i32, i32
  }
  func.func @transform_4(%arg0: i32) -> (i32, i32, i32) {
    %c0_i32 = arith.constant 0 : i32
    %c0_i32_0 = arith.constant 0 : i32
    %c0_i32_1 = arith.constant 0 : i32
    return %arg0, %c0_i32, %c0_i32_0 : i32, i32, i32
  }
  func.func @transform_5(%arg0: i32) -> (i32, i32) {
    %c0_i32 = arith.constant 0 : i32
    %c0_i32_0 = arith.constant 0 : i32
    %c0_i32_1 = arith.constant 0 : i32
    return %c0_i32, %c0_i32_0 : i32, i32
  }
  func.func @transform_6(%arg0: i32) -> (i32, i32) {
    %c0_i32 = arith.constant 0 : i32
    %c0_i32_0 = arith.constant 0 : i32
    %c0_i32_1 = arith.constant 0 : i32
    return %c0_i32, %c0_i32_0 : i32, i32
  }
}

</mosaic_0001>

<llo_original>
// kernel: encoder_forward.4
$region0: #{encoder_forward.4}
  #allocation0 [shape = 'u32[]', space=smem, size = 0x4, offset = 0x4, fixed_abs, tag = 'smem constant byte address 0x4 - core index']
  #allocation1 [shape = 'u32[72,128]{1,0:T(1,128)}', space=vmem, size = 0x9000, scoped, tag = 'internal scratch']
  %s0 = inlined_call_operand.hbm [shape: f32[64,64], index: 0, kind: input, shape index: {}]
  %s1 = inlined_call_operand.hbm [shape: f32[64,512], index: 1, kind: input, shape index: {}]
  %s2 = inlined_call_operand.vmem [shape: f32[1,512], index: 2, kind: input, shape index: {}]
  %s3 = inlined_call_operand.vmem [shape: f32[64,512], index: 3, kind: output, shape index: {}]
  %s4 = sld [smem:[#allocation0]]
  $region30: #{encoder_forward.4} parent=0
    _
  %s6 = ssub.s32 1, %s4
  %s7 = scalar_select 0, %s6, %s4
  $region1: #{encoder_forward.4} parent=0
    #allocation2 [shape = 'u8[32768]{0}', space=vmem, size = 0x8000, scoped, tag = 'input window, operand 0, single buffered']
    #allocation3 [shape = 's32[1]{0}', space=sflag, size = 0x4, scoped, tag = 'scoped memory for encoder_forward.4']
    #allocation4 [shape = 'u8[131072]{0}', space=vmem, size = 0x20000, scoped, tag = 'input window, operand 1, single buffered']
    #allocation5 [shape = 's32[1]{0}', space=sflag, size = 0x4, scoped, tag = 'scoped memory for encoder_forward.4']
    %8 = vsyncpa [#allocation3], 0
    %9 = vsyncpa [#allocation5], 0
    // Predicated region
    $region2: #{encoder_forward.4} parent=1 // pred_check
      _
    $region3: #{encoder_forward.4} parent=1 // pred_check_branch
      %11 = sbr.rel (0) target = $region5
    $region4: #{encoder_forward.4} parent=1 // pred_region
      %13 = vsyncadd [#allocation3], 0
      %s14 = sshll.u32 %s0, 4
      %s15 = int_to_ptr.hbm [resolvable:$true] %s14
      %s16 = sshll.u32 [#allocation2], 4
      %s17 = int_to_ptr.vmem [resolvable:$true] %s16
      %22 = dma.hbm_to_vmem [thread:$0]  %s15, 1024, %s17, [#allocation3], 128, 128, 8
    $region5: #{encoder_forward.4} parent=1 // pred_fallthru
      _
    // Predicated region
    $region6: #{encoder_forward.4} parent=1 // pred_check
      _
    $region7: #{encoder_forward.4} parent=1 // pred_check_branch
      %24 = sbr.rel (0) target = $region9
    $region8: #{encoder_forward.4} parent=1 // pred_region
      %26 = vsyncadd [#allocation5], 0
      %s27 = sshll.u32 %s1, 4
      %s28 = int_to_ptr.hbm [resolvable:$true] %s27
      %s29 = sshll.u32 [#allocation4], 4
      %s30 = int_to_ptr.vmem [resolvable:$true] %s29
      %35 = dma.hbm_to_vmem [thread:$0]  %s28, 4096, %s30, [#allocation5], 512, 512, 32
    $region9: #{encoder_forward.4} parent=1 // pred_fallthru
      _
    // Predicated region
    $region10: #{encoder_forward.4} parent=1 // pred_check
      _
    $region11: #{encoder_forward.4} parent=1 // pred_check_branch
      %37 = sbr.rel (0) target = $region13
    $region12: #{encoder_forward.4} parent=1 // pred_region
      _
    $region13: #{encoder_forward.4} parent=1 // pred_fallthru
      _
    // Predicated region
    $region14: #{encoder_forward.4} parent=1 // pred_check
      _
    $region15: #{encoder_forward.4} parent=1 // pred_check_branch
      %39 = sbr.rel (0) target = $region17
    $region16: #{encoder_forward.4} parent=1 // pred_region
      %41 = dma.done [#allocation3], 1024
    $region17: #{encoder_forward.4} parent=1 // pred_fallthru
      _
    // Predicated region
    $region18: #{encoder_forward.4} parent=1 // pred_check
      _
    $region19: #{encoder_forward.4} parent=1 // pred_check_branch
      %43 = sbr.rel (0) target = $region21
    $region20: #{encoder_forward.4} parent=1 // pred_region
      %45 = dma.done [#allocation5], 4096
    $region21: #{encoder_forward.4} parent=1 // pred_fallthru
      _
    %v46 = vld [vmem:[#allocation2] sm:$0xff]
    %v47 = vld [vmem:[#allocation2 + $0x8] sm:$0xff]
    %v48 = vld [vmem:[#allocation2 + $0x10] sm:$0xff]
    %v49 = vld [vmem:[#allocation2 + $0x18] sm:$0xff]
    %v50 = vld [vmem:[#allocation2 + $0x20] sm:$0xff]
    %v51 = vld [vmem:[#allocation2 + $0x28] sm:$0xff]
    %v52 = vld [vmem:[#allocation2 + $0x30] sm:$0xff]
    %v53 = vld [vmem:[#allocation2 + $0x38] sm:$0xff]
    %v54 = vld [vmem:[#allocation4] sm:$0xff]
    %v55 = vld [vmem:[#allocation4 + $0x8] sm:$0xff]
    %v56 = vld [vmem:[#allocation4 + $0x10] sm:$0xff]
    %v57 = vld [vmem:[#allocation4 + $0x18] sm:$0xff]
    %v58 = vld [vmem:[#allocation4 + $0x20] sm:$0xff]
    %v59 = vld [vmem:[#allocation4 + $0x28] sm:$0xff]
    %v60 = vld [vmem:[#allocation4 + $0x30] sm:$0xff]
    %v61 = vld [vmem:[#allocation4 + $0x38] sm:$0xff]
    %v62 = vld [vmem:[#allocation4 + $0x40] sm:$0xff]
    %v63 = vld [vmem:[#allocation4 + $0x48] sm:$0xff]
    %v64 = vld [vmem:[#allocation4 + $0x50] sm:$0xff]
    %v65 = vld [vmem:[#allocation4 + $0x58] sm:$0xff]
    %v66 = vld [vmem:[#allocation4 + $0x60] sm:$0xff]
    %v67 = vld [vmem:[#allocation4 + $0x68] sm:$0xff]
    %v68 = vld [vmem:[#allocation4 + $0x70] sm:$0xff]
    %v69 = vld [vmem:[#allocation4 + $0x78] sm:$0xff]
    %v70 = vld [vmem:[#allocation4 + $0x80] sm:$0xff]
    %v71 = vld [vmem:[#allocation4 + $0x88] sm:$0xff]
    %v72 = vld [vmem:[#allocation4 + $0x90] sm:$0xff]
    %v73 = vld [vmem:[#allocation4 + $0x98] sm:$0xff]
    %v74 = vld [vmem:[#allocation4 + $0xa0] sm:$0xff]
    %v75 = vld [vmem:[#allocation4 + $0xa8] sm:$0xff]
    %v76 = vld [vmem:[#allocation4 + $0xb0] sm:$0xff]
    %v77 = vld [vmem:[#allocation4 + $0xb8] sm:$0xff]
    %v78 = vld [vmem:[#allocation4 + $0xc0] sm:$0xff]
    %v79 = vld [vmem:[#allocation4 + $0xc8] sm:$0xff]
    %v80 = vld [vmem:[#allocation4 + $0xd0] sm:$0xff]
    %v81 = vld [vmem:[#allocation4 + $0xd8] sm:$0xff]
    %v82 = vld [vmem:[#allocation4 + $0xe0] sm:$0xff]
    %v83 = vld [vmem:[#allocation4 + $0xe8] sm:$0xff]
    %v84 = vld [vmem:[#allocation4 + $0xf0] sm:$0xff]
    %v85 = vld [vmem:[#allocation4 + $0xf8] sm:$0xff]
    %v86 = vld [vmem:[%s2] sm:$0xf]
    %v88 = vperm.slane %v86, 0
    %v89 = vperm.slane %v86, 1
    %v90 = vperm.slane %v86, 2
    %v91 = vperm.slane %v86, 3
    %vm96 = vcmask 523264
    %v98 = vsel %vm96, %v46, 0
    %v101 = vsel %vm96, %v47, 0
    %v104 = vsel %vm96, %v48, 0
    %v107 = vsel %vm96, %v49, 0
    %v110 = vsel %vm96, %v50, 0
    %v113 = vsel %vm96, %v51, 0
    %v116 = vsel %vm96, %v52, 0
    %v119 = vsel %vm96, %v53, 0
    %121 = vmatpush.msra.mxu0 0.0
    %122 = vmatpush.msra.mxu0 0.0
    %123 = vmatpush.msra.mxu0 0.0
    %124 = vmatpush.msra.mxu0 0.0
    %125 = vmatpush.msra.mxu0 0.0
    %126 = vmatpush.msra.mxu0 0.0
    %127 = vmatpush.msra.mxu0 0.0
    %128 = vmatpush.msra.mxu0 0.0
    %129 = vmatpush.msra.mxu0 %v82
    %130 = vmatpush.msra.mxu0 %v78
    %131 = vmatpush.msra.mxu0 %v74
    %132 = vmatpush.msra.mxu0 %v70
    %133 = vmatpush.msra.mxu0 %v66
    %134 = vmatpush.msra.mxu0 %v62
    %135 = vmatpush.msra.mxu0 %v58
    %136 = vmatpush.msra.mxu0 %v54
    %137 = vmatmul.f32.gmra.mxu0 %v98
    %v138 = vpop.f32.mrf.mxu0
    %v139 = vadd.f32 %v88, %v138
    %140 = vmatmul.f32.gmra.mxu0 %v101
    %v141 = vpop.f32.mrf.mxu0
    %v142 = vadd.f32 %v88, %v141
    %143 = vmatmul.f32.gmra.mxu0 %v104
    %v144 = vpop.f32.mrf.mxu0
    %v145 = vadd.f32 %v88, %v144
    %146 = vmatmul.f32.gmra.mxu0 %v107
    %v147 = vpop.f32.mrf.mxu0
    %v148 = vadd.f32 %v88, %v147
    %149 = vmatmul.f32.gmra.mxu0 %v110
    %v150 = vpop.f32.mrf.mxu0
    %v151 = vadd.f32 %v88, %v150
    %152 = vmatmul.f32.gmra.mxu0 %v113
    %v153 = vpop.f32.mrf.mxu0
    %v154 = vadd.f32 %v88, %v153
    %155 = vmatmul.f32.gmra.mxu0 %v116
    %v156 = vpop.f32.mrf.mxu0
    %v157 = vadd.f32 %v88, %v156
    %158 = vmatmul.f32.gmra.mxu0 %v119
    %v159 = vpop.f32.mrf.mxu0
    %v160 = vadd.f32 %v88, %v159
    %161 = vdwg.mxu0
    %162 = vmatpush.msra.mxu0 0.0
    %163 = vmatpush.msra.mxu0 0.0
    %164 = vmatpush.msra.mxu0 0.0
    %165 = vmatpush.msra.mxu0 0.0
    %166 = vmatpush.msra.mxu0 0.0
    %167 = vmatpush.msra.mxu0 0.0
    %168 = vmatpush.msra.mxu0 0.0
    %169 = vmatpush.msra.mxu0 0.0
    %170 = vmatpush.msra.mxu0 %v83
    %171 = vmatpush.msra.mxu0 %v79
    %172 = vmatpush.msra.mxu0 %v75
    %173 = vmatpush.msra.mxu0 %v71
    %174 = vmatpush.msra.mxu0 %v67
    %175 = vmatpush.msra.mxu0 %v63
    %176 = vmatpush.msra.mxu0 %v59
    %177 = vmatpush.msra.mxu0 %v55
    %178 = vmatmul.f32.gmra.mxu0 %v98
    %v179 = vpop.f32.mrf.mxu0
    %v180 = vadd.f32 %v89, %v179
    %181 = vmatmul.f32.gmra.mxu0 %v101
    %v182 = vpop.f32.mrf.mxu0
    %v183 = vadd.f32 %v89, %v182
    %184 = vmatmul.f32.gmra.mxu0 %v104
    %v185 = vpop.f32.mrf.mxu0
    %v186 = vadd.f32 %v89, %v185
    %187 = vmatmul.f32.gmra.mxu0 %v107
    %v188 = vpop.f32.mrf.mxu0
    %v189 = vadd.f32 %v89, %v188
    %190 = vmatmul.f32.gmra.mxu0 %v110
    %v191 = vpop.f32.mrf.mxu0
    %v192 = vadd.f32 %v89, %v191
    %193 = vmatmul.f32.gmra.mxu0 %v113
    %v194 = vpop.f32.mrf.mxu0
    %v195 = vadd.f32 %v89, %v194
    %196 = vmatmul.f32.gmra.mxu0 %v116
    %v197 = vpop.f32.mrf.mxu0
    %v198 = vadd.f32 %v89, %v197
    %199 = vmatmul.f32.gmra.mxu0 %v119
    %v200 = vpop.f32.mrf.mxu0
    %v201 = vadd.f32 %v89, %v200
    %202 = vdwg.mxu0
    %203 = vmatpush.msra.mxu0 0.0
    %204 = vmatpush.msra.mxu0 0.0
    %205 = vmatpush.msra.mxu0 0.0
    %206 = vmatpush.msra.mxu0 0.0
    %207 = vmatpush.msra.mxu0 0.0
    %208 = vmatpush.msra.mxu0 0.0
    %209 = vmatpush.msra.mxu0 0.0
    %210 = vmatpush.msra.mxu0 0.0
    %211 = vmatpush.msra.mxu0 %v84
    %212 = vmatpush.msra.mxu0 %v80
    %213 = vmatpush.msra.mxu0 %v76
    %214 = vmatpush.msra.mxu0 %v72
    %215 = vmatpush.msra.mxu0 %v68
    %216 = vmatpush.msra.mxu0 %v64
    %217 = vmatpush.msra.mxu0 %v60
    %218 = vmatpush.msra.mxu0 %v56
    %219 = vmatmul.f32.gmra.mxu0 %v98
    %v220 = vpop.f32.mrf.mxu0
    %v221 = vadd.f32 %v90, %v220
    %222 = vmatmul.f32.gmra.mxu0 %v101
    %v223 = vpop.f32.mrf.mxu0
    %v224 = vadd.f32 %v90, %v223
    %225 = vmatmul.f32.gmra.mxu0 %v104
    %v226 = vpop.f32.mrf.mxu0
    %v227 = vadd.f32 %v90, %v226
    %228 = vmatmul.f32.gmra.mxu0 %v107
    %v229 = vpop.f32.mrf.mxu0
    %v230 = vadd.f32 %v90, %v229
    %231 = vmatmul.f32.gmra.mxu0 %v110
    %v232 = vpop.f32.mrf.mxu0
    %v233 = vadd.f32 %v90, %v232
    %234 = vmatmul.f32.gmra.mxu0 %v113
    %v235 = vpop.f32.mrf.mxu0
    %v236 = vadd.f32 %v90, %v235
    %237 = vmatmul.f32.gmra.mxu0 %v116
    %v238 = vpop.f32.mrf.mxu0
    %v239 = vadd.f32 %v90, %v238
    %240 = vmatmul.f32.gmra.mxu0 %v119
    %v241 = vpop.f32.mrf.mxu0
    %v242 = vadd.f32 %v90, %v241
    %243 = vdwg.mxu0
    %244 = vmatpush.msra.mxu0 0.0
    %245 = vmatpush.msra.mxu0 0.0
    %246 = vmatpush.msra.mxu0 0.0
    %247 = vmatpush.msra.mxu0 0.0
    %248 = vmatpush.msra.mxu0 0.0
    %249 = vmatpush.msra.mxu0 0.0
    %250 = vmatpush.msra.mxu0 0.0
    %251 = vmatpush.msra.mxu0 0.0
    %252 = vmatpush.msra.mxu0 %v85
    %253 = vmatpush.msra.mxu0 %v81
    %254 = vmatpush.msra.mxu0 %v77
    %255 = vmatpush.msra.mxu0 %v73
    %256 = vmatpush.msra.mxu0 %v69
    %257 = vmatpush.msra.mxu0 %v65
    %258 = vmatpush.msra.mxu0 %v61
    %259 = vmatpush.msra.mxu0 %v57
    %260 = vmatmul.f32.gmra.mxu0 %v98
    %v261 = vpop.f32.mrf.mxu0
    %v262 = vadd.f32 %v91, %v261
    %263 = vmatmul.f32.gmra.mxu0 %v101
    %v264 = vpop.f32.mrf.mxu0
    %v265 = vadd.f32 %v91, %v264
    %266 = vmatmul.f32.gmra.mxu0 %v104
    %v267 = vpop.f32.mrf.mxu0
    %v268 = vadd.f32 %v91, %v267
    %269 = vmatmul.f32.gmra.mxu0 %v107
    %v270 = vpop.f32.mrf.mxu0
    %v271 = vadd.f32 %v91, %v270
    %272 = vmatmul.f32.gmra.mxu0 %v110
    %v273 = vpop.f32.mrf.mxu0
    %v274 = vadd.f32 %v91, %v273
    %275 = vmatmul.f32.gmra.mxu0 %v113
    %v276 = vpop.f32.mrf.mxu0
    %v277 = vadd.f32 %v91, %v276
    %278 = vmatmul.f32.gmra.mxu0 %v116
    %v279 = vpop.f32.mrf.mxu0
    %v280 = vadd.f32 %v91, %v279
    %281 = vmatmul.f32.gmra.mxu0 %v119
    %v282 = vpop.f32.mrf.mxu0
    %v283 = vadd.f32 %v91, %v282
    %284 = vdwg.mxu0
    %285 = vst [vmem:[%s3] sm:$0xff] %v139
    %286 = vst [vmem:[%s3 + $0x8] sm:$0xff] %v180
    %287 = vst [vmem:[%s3 + $0x10] sm:$0xff] %v221
    %288 = vst [vmem:[%s3 + $0x18] sm:$0xff] %v262
    %289 = vst [vmem:[%s3 + $0x20] sm:$0xff] %v142
    %290 = vst [vmem:[%s3 + $0x28] sm:$0xff] %v183
    %291 = vst [vmem:[%s3 + $0x30] sm:$0xff] %v224
    %292 = vst [vmem:[%s3 + $0x38] sm:$0xff] %v265
    %293 = vst [vmem:[%s3 + $0x40] sm:$0xff] %v145
    %294 = vst [vmem:[%s3 + $0x48] sm:$0xff] %v186
    %295 = vst [vmem:[%s3 + $0x50] sm:$0xff] %v227
    %296 = vst [vmem:[%s3 + $0x58] sm:$0xff] %v268
    %297 = vst [vmem:[%s3 + $0x60] sm:$0xff] %v148
    %298 = vst [vmem:[%s3 + $0x68] sm:$0xff] %v189
    %299 = vst [vmem:[%s3 + $0x70] sm:$0xff] %v230
    %300 = vst [vmem:[%s3 + $0x78] sm:$0xff] %v271
    %301 = vst [vmem:[%s3 + $0x80] sm:$0xff] %v151
    %302 = vst [vmem:[%s3 + $0x88] sm:$0xff] %v192
    %303 = vst [vmem:[%s3 + $0x90] sm:$0xff] %v233
    %304 = vst [vmem:[%s3 + $0x98] sm:$0xff] %v274
    %305 = vst [vmem:[%s3 + $0xa0] sm:$0xff] %v154
    %306 = vst [vmem:[%s3 + $0xa8] sm:$0xff] %v195
    %307 = vst [vmem:[%s3 + $0xb0] sm:$0xff] %v236
    %308 = vst [vmem:[%s3 + $0xb8] sm:$0xff] %v277
    %309 = vst [vmem:[%s3 + $0xc0] sm:$0xff] %v157
    %310 = vst [vmem:[%s3 + $0xc8] sm:$0xff] %v198
    %311 = vst [vmem:[%s3 + $0xd0] sm:$0xff] %v239
    %312 = vst [vmem:[%s3 + $0xd8] sm:$0xff] %v280
    %313 = vst [vmem:[%s3 + $0xe0] sm:$0xff] %v160
    %314 = vst [vmem:[%s3 + $0xe8] sm:$0xff] %v201
    %315 = vst [vmem:[%s3 + $0xf0] sm:$0xff] %v242
    %316 = vst [vmem:[%s3 + $0xf8] sm:$0xff] %v283
    // Predicated region
    $region22: #{encoder_forward.4} parent=1 // pred_check
      _
    $region23: #{encoder_forward.4} parent=1 // pred_check_branch
      %318 = sbr.rel (0) target = $region25
    $region24: #{encoder_forward.4} parent=1 // pred_region
      _
    $region25: #{encoder_forward.4} parent=1 // pred_fallthru
      _
    // Predicated region
    $region26: #{encoder_forward.4} parent=1 // pred_check
      _
    $region27: #{encoder_forward.4} parent=1 // pred_check_branch
      %320 = sbr.rel (0) target = $region29
    $region28: #{encoder_forward.4} parent=1 // pred_region
      _
    $region29: #{encoder_forward.4} parent=1 // pred_fallthru
      _
    %321 = vsyncpa [#allocation3], 1
    %322 = vsyncpa [#allocation5], 1

// kernel: encoder_forward.6
$region0: #{encoder_forward.6}
  #allocation0 [shape = 'u32[]', space=smem, size = 0x4, offset = 0x4, fixed_abs, tag = 'smem constant byte address 0x4 - core index']
  #allocation1 [shape = 'u32[72,128]{1,0:T(1,128)}', space=vmem, size = 0x9000, scoped, tag = 'internal scratch']
  %s0 = inlined_call_operand.vmem [shape: f32[64,128], index: 0, kind: input, shape index: {}]
  %s1 = inlined_call_operand.hbm [shape: f32[128,512], index: 1, kind: input, shape index: {}]
  %s2 = inlined_call_operand.vmem [shape: f32[1,512], index: 2, kind: input, shape index: {}]
  %s3 = inlined_call_operand.vmem [shape: f32[64,512], index: 3, kind: output, shape index: {}]
  %s4 = sld [smem:[#allocation0]]
  $region26: #{encoder_forward.6} parent=0
    _
  %s6 = ssub.s32 1, %s4
  %s7 = scalar_select 0, %s6, %s4
  $region1: #{encoder_forward.6} parent=0
    #allocation2 [shape = 'u8[262144]{0}', space=vmem, size = 0x40000, scoped, tag = 'input window, operand 1, single buffered']
    #allocation3 [shape = 's32[1]{0}', space=sflag, size = 0x4, scoped, tag = 'scoped memory for encoder_forward.6']
    %8 = vsyncpa [#allocation3], 0
    // Predicated region
    $region2: #{encoder_forward.6} parent=1 // pred_check
      _
    $region3: #{encoder_forward.6} parent=1 // pred_check_branch
      %10 = sbr.rel (0) target = $region5
    $region4: #{encoder_forward.6} parent=1 // pred_region
      _
    $region5: #{encoder_forward.6} parent=1 // pred_fallthru
      _
    // Predicated region
    $region6: #{encoder_forward.6} parent=1 // pred_check
      _
    $region7: #{encoder_forward.6} parent=1 // pred_check_branch
      %12 = sbr.rel (0) target = $region9
    $region8: #{encoder_forward.6} parent=1 // pred_region
      %14 = vsyncadd [#allocation3], 0
      %s15 = sshll.u32 %s1, 4
      %s16 = int_to_ptr.hbm [resolvable:$true] %s15
      %s17 = sshll.u32 [#allocation2], 4
      %s18 = int_to_ptr.vmem [resolvable:$true] %s17
      %23 = dma.hbm_to_vmem [thread:$0]  %s16, 8192, %s18, [#allocation3], 512, 512, 32
    $region9: #{encoder_forward.6} parent=1 // pred_fallthru
      _
    // Predicated region
    $region10: #{encoder_forward.6} parent=1 // pred_check
      _
    $region11: #{encoder_forward.6} parent=1 // pred_check_branch
      %25 = sbr.rel (0) target = $region13
    $region12: #{encoder_forward.6} parent=1 // pred_region
      _
    $region13: #{encoder_forward.6} parent=1 // pred_fallthru
      _
    // Predicated region
    $region14: #{encoder_forward.6} parent=1 // pred_check
      _
    $region15: #{encoder_forward.6} parent=1 // pred_check_branch
      %27 = sbr.rel (0) target = $region17
    $region16: #{encoder_forward.6} parent=1 // pred_region
      %29 = dma.done [#allocation3], 8192
    $region17: #{encoder_forward.6} parent=1 // pred_fallthru
      _
    %v30 = vld [vmem:[%s0] sm:$0xff]
    %v31 = vld [vmem:[%s0 + $0x8] sm:$0xff]
    %v32 = vld [vmem:[%s0 + $0x10] sm:$0xff]
    %v33 = vld [vmem:[%s0 + $0x18] sm:$0xff]
    %v34 = vld [vmem:[%s0 + $0x20] sm:$0xff]
    %v35 = vld [vmem:[%s0 + $0x28] sm:$0xff]
    %v36 = vld [vmem:[%s0 + $0x30] sm:$0xff]
    %v37 = vld [vmem:[%s0 + $0x38] sm:$0xff]
    %v38 = vld [vmem:[#allocation2] sm:$0xff]
    %v39 = vld [vmem:[#allocation2 + $0x8] sm:$0xff]
    %v40 = vld [vmem:[#allocation2 + $0x10] sm:$0xff]
    %v41 = vld [vmem:[#allocation2 + $0x18] sm:$0xff]
    %v42 = vld [vmem:[#allocation2 + $0x20] sm:$0xff]
    %v43 = vld [vmem:[#allocation2 + $0x28] sm:$0xff]
    %v44 = vld [vmem:[#allocation2 + $0x30] sm:$0xff]
    %v45 = vld [vmem:[#allocation2 + $0x38] sm:$0xff]
    %v46 = vld [vmem:[#allocation2 + $0x40] sm:$0xff]
    %v47 = vld [vmem:[#allocation2 + $0x48] sm:$0xff]
    %v48 = vld [vmem:[#allocation2 + $0x50] sm:$0xff]
    %v49 = vld [vmem:[#allocation2 + $0x58] sm:$0xff]
    %v50 = vld [vmem:[#allocation2 + $0x60] sm:$0xff]
    %v51 = vld [vmem:[#allocation2 + $0x68] sm:$0xff]
    %v52 = vld [vmem:[#allocation2 + $0x70] sm:$0xff]
    %v53 = vld [vmem:[#allocation2 + $0x78] sm:$0xff]
    %v54 = vld [vmem:[#allocation2 + $0x80] sm:$0xff]
    %v55 = vld [vmem:[#allocation2 + $0x88] sm:$0xff]
    %v56 = vld [vmem:[#allocation2 + $0x90] sm:$0xff]
    %v57 = vld [vmem:[#allocation2 + $0x98] sm:$0xff]
    %v58 = vld [vmem:[#allocation2 + $0xa0] sm:$0xff]
    %v59 = vld [vmem:[#allocation2 + $0xa8] sm:$0xff]
    %v60 = vld [vmem:[#allocation2 + $0xb0] sm:$0xff]
    %v61 = vld [vmem:[#allocation2 + $0xb8] sm:$0xff]
    %v62 = vld [vmem:[#allocation2 + $0xc0] sm:$0xff]
    %v63 = vld [vmem:[#allocation2 + $0xc8] sm:$0xff]
    %v64 = vld [vmem:[#allocation2 + $0xd0] sm:$0xff]
    %v65 = vld [vmem:[#allocation2 + $0xd8] sm:$0xff]
    %v66 = vld [vmem:[#allocation2 + $0xe0] sm:$0xff]
    %v67 = vld [vmem:[#allocation2 + $0xe8] sm:$0xff]
    %v68 = vld [vmem:[#allocation2 + $0xf0] sm:$0xff]
    %v69 = vld [vmem:[#allocation2 + $0xf8] sm:$0xff]
    %v70 = vld [vmem:[#allocation2 + $0x100] sm:$0xff]
    %v71 = vld [vmem:[#allocation2 + $0x108] sm:$0xff]
    %v72 = vld [vmem:[#allocation2 + $0x110] sm:$0xff]
    %v73 = vld [vmem:[#allocation2 + $0x118] sm:$0xff]
    %v74 = vld [vmem:[#allocation2 + $0x120] sm:$0xff]
    %v75 = vld [vmem:[#allocation2 + $0x128] sm:$0xff]
    %v76 = vld [vmem:[#allocation2 + $0x130] sm:$0xff]
    %v77 = vld [vmem:[#allocation2 + $0x138] sm:$0xff]
    %v78 = vld [vmem:[#allocation2 + $0x140] sm:$0xff]
    %v79 = vld [vmem:[#allocation2 + $0x148] sm:$0xff]
    %v80 = vld [vmem:[#allocation2 + $0x150] sm:$0xff]
    %v81 = vld [vmem:[#allocation2 + $0x158] sm:$0xff]
    %v82 = vld [vmem:[#allocation2 + $0x160] sm:$0xff]
    %v83 = vld [vmem:[#allocation2 + $0x168] sm:$0xff]
    %v84 = vld [vmem:[#allocation2 + $0x170] sm:$0xff]
    %v85 = vld [vmem:[#allocation2 + $0x178] sm:$0xff]
    %v86 = vld [vmem:[#allocation2 + $0x180] sm:$0xff]
    %v87 = vld [vmem:[#allocation2 + $0x188] sm:$0xff]
    %v88 = vld [vmem:[#allocation2 + $0x190] sm:$0xff]
    %v89 = vld [vmem:[#allocation2 + $0x198] sm:$0xff]
    %v90 = vld [vmem:[#allocation2 + $0x1a0] sm:$0xff]
    %v91 = vld [vmem:[#allocation2 + $0x1a8] sm:$0xff]
    %v92 = vld [vmem:[#allocation2 + $0x1b0] sm:$0xff]
    %v93 = vld [vmem:[#allocation2 + $0x1b8] sm:$0xff]
    %v94 = vld [vmem:[#allocation2 + $0x1c0] sm:$0xff]
    %v95 = vld [vmem:[#allocation2 + $0x1c8] sm:$0xff]
    %v96 = vld [vmem:[#allocation2 + $0x1d0] sm:$0xff]
    %v97 = vld [vmem:[#allocation2 + $0x1d8] sm:$0xff]
    %v98 = vld [vmem:[#allocation2 + $0x1e0] sm:$0xff]
    %v99 = vld [vmem:[#allocation2 + $0x1e8] sm:$0xff]
    %v100 = vld [vmem:[#allocation2 + $0x1f0] sm:$0xff]
    %v101 = vld [vmem:[#allocation2 + $0x1f8] sm:$0xff]
    %v102 = vld [vmem:[%s2] sm:$0xf]
    %v104 = vperm.slane %v102, 0
    %v105 = vperm.slane %v102, 1
    %v106 = vperm.slane %v102, 2
    %v107 = vperm.slane %v102, 3
    %112 = vmatpush.msra.mxu0 %v98
    %113 = vmatpush.msra.mxu0 %v94
    %114 = vmatpush.msra.mxu0 %v90
    %115 = vmatpush.msra.mxu0 %v86
    %116 = vmatpush.msra.mxu0 %v82
    %117 = vmatpush.msra.mxu0 %v78
    %118 = vmatpush.msra.mxu0 %v74
    %119 = vmatpush.msra.mxu0 %v70
    %120 = vmatpush.msra.mxu0 %v66
    %121 = vmatpush.msra.mxu0 %v62
    %122 = vmatpush.msra.mxu0 %v58
    %123 = vmatpush.msra.mxu0 %v54
    %124 = vmatpush.msra.mxu0 %v50
    %125 = vmatpush.msra.mxu0 %v46
    %126 = vmatpush.msra.mxu0 %v42
    %127 = vmatpush.msra.mxu0 %v38
    %128 = vmatmul.f32.gmra.mxu0 %v30
    %v129 = vpop.f32.mrf.mxu0
    %v130 = vadd.f32 %v104, %v129
    %131 = vmatmul.f32.gmra.mxu0 %v31
    %v132 = vpop.f32.mrf.mxu0
    %v133 = vadd.f32 %v104, %v132
    %134 = vmatmul.f32.gmra.mxu0 %v32
    %v135 = vpop.f32.mrf.mxu0
    %v136 = vadd.f32 %v104, %v135
    %137 = vmatmul.f32.gmra.mxu0 %v33
    %v138 = vpop.f32.mrf.mxu0
    %v139 = vadd.f32 %v104, %v138
    %140 = vmatmul.f32.gmra.mxu0 %v34
    %v141 = vpop.f32.mrf.mxu0
    %v142 = vadd.f32 %v104, %v141
    %143 = vmatmul.f32.gmra.mxu0 %v35
    %v144 = vpop.f32.mrf.mxu0
    %v145 = vadd.f32 %v104, %v144
    %146 = vmatmul.f32.gmra.mxu0 %v36
    %v147 = vpop.f32.mrf.mxu0
    %v148 = vadd.f32 %v104, %v147
    %149 = vmatmul.f32.gmra.mxu0 %v37
    %v150 = vpop.f32.mrf.mxu0
    %v151 = vadd.f32 %v104, %v150
    %152 = vdwg.mxu0
    %153 = vmatpush.msra.mxu0 %v99
    %154 = vmatpush.msra.mxu0 %v95
    %155 = vmatpush.msra.mxu0 %v91
    %156 = vmatpush.msra.mxu0 %v87
    %157 = vmatpush.msra.mxu0 %v83
    %158 = vmatpush.msra.mxu0 %v79
    %159 = vmatpush.msra.mxu0 %v75
    %160 = vmatpush.msra.mxu0 %v71
    %161 = vmatpush.msra.mxu0 %v67
    %162 = vmatpush.msra.mxu0 %v63
    %163 = vmatpush.msra.mxu0 %v59
    %164 = vmatpush.msra.mxu0 %v55
    %165 = vmatpush.msra.mxu0 %v51
    %166 = vmatpush.msra.mxu0 %v47
    %167 = vmatpush.msra.mxu0 %v43
    %168 = vmatpush.msra.mxu0 %v39
    %169 = vmatmul.f32.gmra.mxu0 %v30
    %v170 = vpop.f32.mrf.mxu0
    %v171 = vadd.f32 %v105, %v170
    %172 = vmatmul.f32.gmra.mxu0 %v31
    %v173 = vpop.f32.mrf.mxu0
    %v174 = vadd.f32 %v105, %v173
    %175 = vmatmul.f32.gmra.mxu0 %v32
    %v176 = vpop.f32.mrf.mxu0
    %v177 = vadd.f32 %v105, %v176
    %178 = vmatmul.f32.gmra.mxu0 %v33
    %v179 = vpop.f32.mrf.mxu0
    %v180 = vadd.f32 %v105, %v179
    %181 = vmatmul.f32.gmra.mxu0 %v34
    %v182 = vpop.f32.mrf.mxu0
    %v183 = vadd.f32 %v105, %v182
    %184 = vmatmul.f32.gmra.mxu0 %v35
    %v185 = vpop.f32.mrf.mxu0
    %v186 = vadd.f32 %v105, %v185
    %187 = vmatmul.f32.gmra.mxu0 %v36
    %v188 = vpop.f32.mrf.mxu0
    %v189 = vadd.f32 %v105, %v188
    %190 = vmatmul.f32.gmra.mxu0 %v37
    %v191 = vpop.f32.mrf.mxu0
    %v192 = vadd.f32 %v105, %v191
    %193 = vdwg.mxu0
    %194 = vmatpush.msra.mxu0 %v100
    %195 = vmatpush.msra.mxu0 %v96
    %196 = vmatpush.msra.mxu0 %v92
    %197 = vmatpush.msra.mxu0 %v88
    %198 = vmatpush.msra.mxu0 %v84
    %199 = vmatpush.msra.mxu0 %v80
    %200 = vmatpush.msra.mxu0 %v76
    %201 = vmatpush.msra.mxu0 %v72
    %202 = vmatpush.msra.mxu0 %v68
    %203 = vmatpush.msra.mxu0 %v64
    %204 = vmatpush.msra.mxu0 %v60
    %205 = vmatpush.msra.mxu0 %v56
    %206 = vmatpush.msra.mxu0 %v52
    %207 = vmatpush.msra.mxu0 %v48
    %208 = vmatpush.msra.mxu0 %v44
    %209 = vmatpush.msra.mxu0 %v40
    %210 = vmatmul.f32.gmra.mxu0 %v30
    %v211 = vpop.f32.mrf.mxu0
    %v212 = vadd.f32 %v106, %v211
    %213 = vmatmul.f32.gmra.mxu0 %v31
    %v214 = vpop.f32.mrf.mxu0
    %v215 = vadd.f32 %v106, %v214
    %216 = vmatmul.f32.gmra.mxu0 %v32
    %v217 = vpop.f32.mrf.mxu0
    %v218 = vadd.f32 %v106, %v217
    %219 = vmatmul.f32.gmra.mxu0 %v33
    %v220 = vpop.f32.mrf.mxu0
    %v221 = vadd.f32 %v106, %v220
    %222 = vmatmul.f32.gmra.mxu0 %v34
    %v223 = vpop.f32.mrf.mxu0
    %v224 = vadd.f32 %v106, %v223
    %225 = vmatmul.f32.gmra.mxu0 %v35
    %v226 = vpop.f32.mrf.mxu0
    %v227 = vadd.f32 %v106, %v226
    %228 = vmatmul.f32.gmra.mxu0 %v36
    %v229 = vpop.f32.mrf.mxu0
    %v230 = vadd.f32 %v106, %v229
    %231 = vmatmul.f32.gmra.mxu0 %v37
    %v232 = vpop.f32.mrf.mxu0
    %v233 = vadd.f32 %v106, %v232
    %234 = vdwg.mxu0
    %235 = vmatpush.msra.mxu0 %v101
    %236 = vmatpush.msra.mxu0 %v97
    %237 = vmatpush.msra.mxu0 %v93
    %238 = vmatpush.msra.mxu0 %v89
    %239 = vmatpush.msra.mxu0 %v85
    %240 = vmatpush.msra.mxu0 %v81
    %241 = vmatpush.msra.mxu0 %v77
    %242 = vmatpush.msra.mxu0 %v73
    %243 = vmatpush.msra.mxu0 %v69
    %244 = vmatpush.msra.mxu0 %v65
    %245 = vmatpush.msra.mxu0 %v61
    %246 = vmatpush.msra.mxu0 %v57
    %247 = vmatpush.msra.mxu0 %v53
    %248 = vmatpush.msra.mxu0 %v49
    %249 = vmatpush.msra.mxu0 %v45
    %250 = vmatpush.msra.mxu0 %v41
    %251 = vmatmul.f32.gmra.mxu0 %v30
    %v252 = vpop.f32.mrf.mxu0
    %v253 = vadd.f32 %v107, %v252
    %254 = vmatmul.f32.gmra.mxu0 %v31
    %v255 = vpop.f32.mrf.mxu0
    %v256 = vadd.f32 %v107, %v255
    %257 = vmatmul.f32.gmra.mxu0 %v32
    %v258 = vpop.f32.mrf.mxu0
    %v259 = vadd.f32 %v107, %v258
    %260 = vmatmul.f32.gmra.mxu0 %v33
    %v261 = vpop.f32.mrf.mxu0
    %v262 = vadd.f32 %v107, %v261
    %263 = vmatmul.f32.gmra.mxu0 %v34
    %v264 = vpop.f32.mrf.mxu0
    %v265 = vadd.f32 %v107, %v264
    %266 = vmatmul.f32.gmra.mxu0 %v35
    %v267 = vpop.f32.mrf.mxu0
    %v268 = vadd.f32 %v107, %v267
    %269 = vmatmul.f32.gmra.mxu0 %v36
    %v270 = vpop.f32.mrf.mxu0
    %v271 = vadd.f32 %v107, %v270
    %272 = vmatmul.f32.gmra.mxu0 %v37
    %v273 = vpop.f32.mrf.mxu0
    %v274 = vadd.f32 %v107, %v273
    %275 = vdwg.mxu0
    %276 = vst [vmem:[%s3] sm:$0xff] %v130
    %277 = vst [vmem:[%s3 + $0x8] sm:$0xff] %v171
    %278 = vst [vmem:[%s3 + $0x10] sm:$0xff] %v212
    %279 = vst [vmem:[%s3 + $0x18] sm:$0xff] %v253
    %280 = vst [vmem:[%s3 + $0x20] sm:$0xff] %v133
    %281 = vst [vmem:[%s3 + $0x28] sm:$0xff] %v174
    %282 = vst [vmem:[%s3 + $0x30] sm:$0xff] %v215
    %283 = vst [vmem:[%s3 + $0x38] sm:$0xff] %v256
    %284 = vst [vmem:[%s3 + $0x40] sm:$0xff] %v136
    %285 = vst [vmem:[%s3 + $0x48] sm:$0xff] %v177
    %286 = vst [vmem:[%s3 + $0x50] sm:$0xff] %v218
    %287 = vst [vmem:[%s3 + $0x58] sm:$0xff] %v259
    %288 = vst [vmem:[%s3 + $0x60] sm:$0xff] %v139
    %289 = vst [vmem:[%s3 + $0x68] sm:$0xff] %v180
    %290 = vst [vmem:[%s3 + $0x70] sm:$0xff] %v221
    %291 = vst [vmem:[%s3 + $0x78] sm:$0xff] %v262
    %292 = vst [vmem:[%s3 + $0x80] sm:$0xff] %v142
    %293 = vst [vmem:[%s3 + $0x88] sm:$0xff] %v183
    %294 = vst [vmem:[%s3 + $0x90] sm:$0xff] %v224
    %295 = vst [vmem:[%s3 + $0x98] sm:$0xff] %v265
    %296 = vst [vmem:[%s3 + $0xa0] sm:$0xff] %v145
    %297 = vst [vmem:[%s3 + $0xa8] sm:$0xff] %v186
    %298 = vst [vmem:[%s3 + $0xb0] sm:$0xff] %v227
    %299 = vst [vmem:[%s3 + $0xb8] sm:$0xff] %v268
    %300 = vst [vmem:[%s3 + $0xc0] sm:$0xff] %v148
    %301 = vst [vmem:[%s3 + $0xc8] sm:$0xff] %v189
    %302 = vst [vmem:[%s3 + $0xd0] sm:$0xff] %v230
    %303 = vst [vmem:[%s3 + $0xd8] sm:$0xff] %v271
    %304 = vst [vmem:[%s3 + $0xe0] sm:$0xff] %v151
    %305 = vst [vmem:[%s3 + $0xe8] sm:$0xff] %v192
    %306 = vst [vmem:[%s3 + $0xf0] sm:$0xff] %v233
    %307 = vst [vmem:[%s3 + $0xf8] sm:$0xff] %v274
    // Predicated region
    $region18: #{encoder_forward.6} parent=1 // pred_check
      _
    $region19: #{encoder_forward.6} parent=1 // pred_check_branch
      %309 = sbr.rel (0) target = $region21
    $region20: #{encoder_forward.6} parent=1 // pred_region
      _
    $region21: #{encoder_forward.6} parent=1 // pred_fallthru
      _
    // Predicated region
    $region22: #{encoder_forward.6} parent=1 // pred_check
      _
    $region23: #{encoder_forward.6} parent=1 // pred_check_branch
      %311 = sbr.rel (0) target = $region25
    $region24: #{encoder_forward.6} parent=1 // pred_region
      _
    $region25: #{encoder_forward.6} parent=1 // pred_fallthru
      _
    %312 = vsyncpa [#allocation3], 1

// kernel: encoder_forward.5
$region0: #{encoder_forward.5}
  #allocation0 [shape = 'u32[]', space=smem, size = 0x4, offset = 0x4, fixed_abs, tag = 'smem constant byte address 0x4 - core index']
  #allocation1 [shape = 'u32[72,128]{1,0:T(1,128)}', space=vmem, size = 0x9000, scoped, tag = 'internal scratch']
  #allocation2 [shape = 'f32[8,128]{1,0:T(8,128)}', space=vmem, size = 0x1000, scoped, tag = 'scratch operand']
  #allocation3 [shape = 'f32[8,128]{1,0:T(8,128)}', space=vmem, size = 0x1000, scoped, tag = 'scratch operand']
  %s0 = inlined_call_operand.vmem [shape: f32[8,8,512], index: 0, kind: input, shape index: {}]
  %s1 = inlined_call_operand.hbm [shape: f32[128,512], index: 1, kind: input, shape index: {}]
  %s2 = inlined_call_operand.vmem [shape: f32[8,128], index: 2, kind: input, shape index: {}]
  %s3 = inlined_call_operand.vmem [shape: f32[8,128], index: 3, kind: input, shape index: {}]
  %s4 = inlined_call_operand.vmem [shape: f32[8,8,128], index: 4, kind: output, shape index: {0}]
  %s5 = inlined_call_operand.vmem [shape: f32[8,128], index: 5, kind: output, shape index: {1}]
  %s6 = inlined_call_operand.vmem [shape: f32[8,128], index: 6, kind: output, shape index: {2}]
  %7 = xla_tuple %s4, %s5, %s6
  %s8 = sld [smem:[#allocation0]]
  $region54: #{encoder_forward.5} parent=0
    _
  %s10 = ssub.s32 1, %s8
  %s11 = scalar_select 0, %s10, %s8
  $region1: #{encoder_forward.5} parent=0
    #allocation4 [shape = 'u8[262144]{0}', space=vmem, size = 0x40000, scoped, tag = 'input window, operand 1, single buffered']
    #allocation5 [shape = 's32[1]{0}', space=sflag, size = 0x4, scoped, tag = 'scoped memory for encoder_forward.5']
    %12 = vsyncpa [#allocation5], 0
    // Predicated region
    $region2: #{encoder_forward.5} parent=1 // pred_check
      _
    $region3: #{encoder_forward.5} parent=1 // pred_check_branch
      %14 = sbr.rel (0) target = $region5
    $region4: #{encoder_forward.5} parent=1 // pred_region
      _
    $region5: #{encoder_forward.5} parent=1 // pred_fallthru
      _
    // Predicated region
    $region6: #{encoder_forward.5} parent=1 // pred_check
      _
    $region7: #{encoder_forward.5} parent=1 // pred_check_branch
      %16 = sbr.rel (0) target = $region9
    $region8: #{encoder_forward.5} parent=1 // pred_region
      %18 = vsyncadd [#allocation5], 0
      %s19 = sshll.u32 %s1, 4
      %s20 = int_to_ptr.hbm [resolvable:$true] %s19
      %s21 = sshll.u32 [#allocation4], 4
      %s22 = int_to_ptr.vmem [resolvable:$true] %s21
      %27 = dma.hbm_to_vmem [thread:$0]  %s20, 8192, %s22, [#allocation5], 512, 512, 32
    $region9: #{encoder_forward.5} parent=1 // pred_fallthru
      _
    // Predicated region
    $region10: #{encoder_forward.5} parent=1 // pred_check
      _
    $region11: #{encoder_forward.5} parent=1 // pred_check_branch
      %29 = sbr.rel (0) target = $region13
    $region12: #{encoder_forward.5} parent=1 // pred_region
      _
    $region13: #{encoder_forward.5} parent=1 // pred_fallthru
      _
    // Predicated region
    $region14: #{encoder_forward.5} parent=1 // pred_check
      _
    $region15: #{encoder_forward.5} parent=1 // pred_check_branch
      %31 = sbr.rel (0) target = $region17
    $region16: #{encoder_forward.5} parent=1 // pred_region
      _
    $region17: #{encoder_forward.5} parent=1 // pred_fallthru
      _
    // Predicated region
    $region18: #{encoder_forward.5} parent=1 // pred_check
      _
    $region19: #{encoder_forward.5} parent=1 // pred_check_branch
      %33 = sbr.rel (0) target = $region21
    $region20: #{encoder_forward.5} parent=1 // pred_region
      %35 = dma.done [#allocation5], 8192
    $region21: #{encoder_forward.5} parent=1 // pred_fallthru
      _
    %p36 = scmp.eq.s32.totalorder 0, 0
    // Predicated region
    $region22: #{encoder_forward.5} parent=1 // pred_check
      %p37 = pneg %p36
    $region23: #{encoder_forward.5} parent=1 // pred_check_branch
      %39 = sbr.rel (%p37) target = $region25
    $region24: #{encoder_forward.5} parent=1 // pred_region
      %v40 = vld [vmem:[%s2] sm:$0xff]
      %41 = vst [vmem:[#allocation2] sm:$0xff] %v40
      %v42 = vld [vmem:[%s3] sm:$0xff]
      %43 = vst [vmem:[#allocation3] sm:$0xff] %v42
    $region25: #{encoder_forward.5} parent=1 // pred_fallthru
      _
    %v44 = vld [vmem:[#allocation4] sm:$0xff]
    %v45 = vld [vmem:[#allocation4 + $0x8] sm:$0xff]
    %v46 = vld [vmem:[#allocation4 + $0x10] sm:$0xff]
    %v47 = vld [vmem:[#allocation4 + $0x18] sm:$0xff]
    %v48 = vld [vmem:[#allocation4 + $0x20] sm:$0xff]
    %v49 = vld [vmem:[#allocation4 + $0x28] sm:$0xff]
    %v50 = vld [vmem:[#allocation4 + $0x30] sm:$0xff]
    %v51 = vld [vmem:[#allocation4 + $0x38] sm:$0xff]
    %v52 = vld [vmem:[#allocation4 + $0x40] sm:$0xff]
    %v53 = vld [vmem:[#allocation4 + $0x48] sm:$0xff]
    %v54 = vld [vmem:[#allocation4 + $0x50] sm:$0xff]
    %v55 = vld [vmem:[#allocation4 + $0x58] sm:$0xff]
    %v56 = vld [vmem:[#allocation4 + $0x60] sm:$0xff]
    %v57 = vld [vmem:[#allocation4 + $0x68] sm:$0xff]
    %v58 = vld [vmem:[#allocation4 + $0x70] sm:$0xff]
    %v59 = vld [vmem:[#allocation4 + $0x78] sm:$0xff]
    %v60 = vld [vmem:[#allocation4 + $0x80] sm:$0xff]
    %v61 = vld [vmem:[#allocation4 + $0x88] sm:$0xff]
    %v62 = vld [vmem:[#allocation4 + $0x90] sm:$0xff]
    %v63 = vld [vmem:[#allocation4 + $0x98] sm:$0xff]
    %v64 = vld [vmem:[#allocation4 + $0xa0] sm:$0xff]
    %v65 = vld [vmem:[#allocation4 + $0xa8] sm:$0xff]
    %v66 = vld [vmem:[#allocation4 + $0xb0] sm:$0xff]
    %v67 = vld [vmem:[#allocation4 + $0xb8] sm:$0xff]
    %v68 = vld [vmem:[#allocation4 + $0xc0] sm:$0xff]
    %v69 = vld [vmem:[#allocation4 + $0xc8] sm:$0xff]
    %v70 = vld [vmem:[#allocation4 + $0xd0] sm:$0xff]
    %v71 = vld [vmem:[#allocation4 + $0xd8] sm:$0xff]
    %v72 = vld [vmem:[#allocation4 + $0xe0] sm:$0xff]
    %v73 = vld [vmem:[#allocation4 + $0xe8] sm:$0xff]
    %v74 = vld [vmem:[#allocation4 + $0xf0] sm:$0xff]
    %v75 = vld [vmem:[#allocation4 + $0xf8] sm:$0xff]
    %v76 = vld [vmem:[#allocation4 + $0x100] sm:$0xff]
    %v77 = vld [vmem:[#allocation4 + $0x108] sm:$0xff]
    %v78 = vld [vmem:[#allocation4 + $0x110] sm:$0xff]
    %v79 = vld [vmem:[#allocation4 + $0x118] sm:$0xff]
    %v80 = vld [vmem:[#allocation4 + $0x120] sm:$0xff]
    %v81 = vld [vmem:[#allocation4 + $0x128] sm:$0xff]
    %v82 = vld [vmem:[#allocation4 + $0x130] sm:$0xff]
    %v83 = vld [vmem:[#allocation4 + $0x138] sm:$0xff]
    %v84 = vld [vmem:[#allocation4 + $0x140] sm:$0xff]
    %v85 = vld [vmem:[#allocation4 + $0x148] sm:$0xff]
    %v86 = vld [vmem:[#allocation4 + $0x150] sm:$0xff]
    %v87 = vld [vmem:[#allocation4 + $0x158] sm:$0xff]
    %v88 = vld [vmem:[#allocation4 + $0x160] sm:$0xff]
    %v89 = vld [vmem:[#allocation4 + $0x168] sm:$0xff]
    %v90 = vld [vmem:[#allocation4 + $0x170] sm:$0xff]
    %v91 = vld [vmem:[#allocation4 + $0x178] sm:$0xff]
    %v92 = vld [vmem:[#allocation4 + $0x180] sm:$0xff]
    %v93 = vld [vmem:[#allocation4 + $0x188] sm:$0xff]
    %v94 = vld [vmem:[#allocation4 + $0x190] sm:$0xff]
    %v95 = vld [vmem:[#allocation4 + $0x198] sm:$0xff]
    %v96 = vld [vmem:[#allocation4 + $0x1a0] sm:$0xff]
    %v97 = vld [vmem:[#allocation4 + $0x1a8] sm:$0xff]
    %v98 = vld [vmem:[#allocation4 + $0x1b0] sm:$0xff]
    %v99 = vld [vmem:[#allocation4 + $0x1b8] sm:$0xff]
    %v100 = vld [vmem:[#allocation4 + $0x1c0] sm:$0xff]
    %v101 = vld [vmem:[#allocation4 + $0x1c8] sm:$0xff]
    %v102 = vld [vmem:[#allocation4 + $0x1d0] sm:$0xff]
    %v103 = vld [vmem:[#allocation4 + $0x1d8] sm:$0xff]
    %v104 = vld [vmem:[#allocation4 + $0x1e0] sm:$0xff]
    %v105 = vld [vmem:[#allocation4 + $0x1e8] sm:$0xff]
    %v106 = vld [vmem:[#allocation4 + $0x1f0] sm:$0xff]
    %v107 = vld [vmem:[#allocation4 + $0x1f8] sm:$0xff]
    %v108 = vld [vmem:[#allocation2] sm:$0xff]
    %v109 = vld [vmem:[#allocation3] sm:$0xff]
    %v110 = vld [vmem:[%s0] sm:$0xff]
    %v111 = vld [vmem:[%s0 + $0x8] sm:$0xff]
    %v112 = vld [vmem:[%s0 + $0x10] sm:$0xff]
    %v113 = vld [vmem:[%s0 + $0x18] sm:$0xff]
    %114 = vmatpush.msra.mxu0 %v104
    %115 = vmatpush.msra.mxu0 %v100
    %116 = vmatpush.msra.mxu0 %v96
    %117 = vmatpush.msra.mxu0 %v92
    %118 = vmatpush.msra.mxu0 %v88
    %119 = vmatpush.msra.mxu0 %v84
    %120 = vmatpush.msra.mxu0 %v80
    %121 = vmatpush.msra.mxu0 %v76
    %122 = vmatpush.msra.mxu0 %v72
    %123 = vmatpush.msra.mxu0 %v68
    %124 = vmatpush.msra.mxu0 %v64
    %125 = vmatpush.msra.mxu0 %v60
    %126 = vmatpush.msra.mxu0 %v56
    %127 = vmatpush.msra.mxu0 %v52
    %128 = vmatpush.msra.mxu0 %v48
    %129 = vmatpush.msra.mxu0 %v44
    %130 = vmatmul.f32.gmra.mxu0 %v108
    %v131 = vpop.f32.mrf.mxu0
    %v132 = vadd.f32 0.0, %v131
    %133 = vdwg.mxu0
    %134 = vmatpush.msra.mxu0 %v105
    %135 = vmatpush.msra.mxu0 %v101
    %136 = vmatpush.msra.mxu0 %v97
    %137 = vmatpush.msra.mxu0 %v93
    %138 = vmatpush.msra.mxu0 %v89
    %139 = vmatpush.msra.mxu0 %v85
    %140 = vmatpush.msra.mxu0 %v81
    %141 = vmatpush.msra.mxu0 %v77
    %142 = vmatpush.msra.mxu0 %v73
    %143 = vmatpush.msra.mxu0 %v69
    %144 = vmatpush.msra.mxu0 %v65
    %145 = vmatpush.msra.mxu0 %v61
    %146 = vmatpush.msra.mxu0 %v57
    %147 = vmatpush.msra.mxu0 %v53
    %148 = vmatpush.msra.mxu0 %v49
    %149 = vmatpush.msra.mxu0 %v45
    %150 = vmatmul.f32.gmra.mxu0 %v108
    %v151 = vpop.f32.mrf.mxu0
    %v152 = vadd.f32 0.0, %v151
    %153 = vdwg.mxu0
    %154 = vmatpush.msra.mxu0 %v106
    %155 = vmatpush.msra.mxu0 %v102
    %156 = vmatpush.msra.mxu0 %v98
    %157 = vmatpush.msra.mxu0 %v94
    %158 = vmatpush.msra.mxu0 %v90
    %159 = vmatpush.msra.mxu0 %v86
    %160 = vmatpush.msra.mxu0 %v82
    %161 = vmatpush.msra.mxu0 %v78
    %162 = vmatpush.msra.mxu0 %v74
    %163 = vmatpush.msra.mxu0 %v70
    %164 = vmatpush.msra.mxu0 %v66
    %165 = vmatpush.msra.mxu0 %v62
    %166 = vmatpush.msra.mxu0 %v58
    %167 = vmatpush.msra.mxu0 %v54
    %168 = vmatpush.msra.mxu0 %v50
    %169 = vmatpush.msra.mxu0 %v46
    %170 = vmatmul.f32.gmra.mxu0 %v108
    %v171 = vpop.f32.mrf.mxu0
    %v172 = vadd.f32 0.0, %v171
    %173 = vdwg.mxu0
    %174 = vmatpush.msra.mxu0 %v107
    %175 = vmatpush.msra.mxu0 %v103
    %176 = vmatpush.msra.mxu0 %v99
    %177 = vmatpush.msra.mxu0 %v95
    %178 = vmatpush.msra.mxu0 %v91
    %179 = vmatpush.msra.mxu0 %v87
    %180 = vmatpush.msra.mxu0 %v83
    %181 = vmatpush.msra.mxu0 %v79
    %182 = vmatpush.msra.mxu0 %v75
    %183 = vmatpush.msra.mxu0 %v71
    %184 = vmatpush.msra.mxu0 %v67
    %185 = vmatpush.msra.mxu0 %v63
    %186 = vmatpush.msra.mxu0 %v59
    %187 = vmatpush.msra.mxu0 %v55
    %188 = vmatpush.msra.mxu0 %v51
    %189 = vmatpush.msra.mxu0 %v47
    %190 = vmatmul.f32.gmra.mxu0 %v108
    %v191 = vpop.f32.mrf.mxu0
    %v192 = vadd.f32 0.0, %v191
    %193 = vdwg.mxu0
    %v194 = vadd.f32 %v110, %v132
    %v195 = vadd.f32 %v111, %v152
    %v196 = vadd.f32 %v112, %v172
    %v197 = vadd.f32 %v113, %v192
    %v198 = vxor.u32 %v194, 2147483648
    %v199 = vmul.f32 %v198, 1.442695
    %v200 = vpow.pop %v199
    %v201 = vadd.f32 %v200, 1.0
    %v202 = vrcp.pop %v201
    %v203 = vmul.f32 %v201, %v202
    %v204 = vsub.f32 1.0, %v203
    %v205 = vmul.f32 %v202, %v204
    %v206 = vadd.f32 %v202, %v205
    %vm207 = vweird.f32 %v201
    %vm208 = vweird.f32 %v202
    %vm209 = vmor %vm207, %vm208
    %v210 = vsel %vm209, %v202, %v206
    %v211 = vand.u32 2147483647, %v201
    %vm212 = vcmp.eq.f32.partialorder %v211, 8.507059e+37
    %v213 = vand.u32 %v201, 2147483648
    %v214 = vor.u32 1.1754944e-38, %v213
    %v215 = vsel %vm212, %v214, %v210
    %v216 = vmul.f32 1.0, %v215
    %v217 = vxor.u32 %v195, 2147483648
    %v218 = vmul.f32 %v217, 1.442695
    %v219 = vpow.pop %v218
    %v220 = vadd.f32 %v219, 1.0
    %v221 = vrcp.pop %v220
    %v222 = vmul.f32 %v220, %v221
    %v223 = vsub.f32 1.0, %v222
    %v224 = vmul.f32 %v221, %v223
    %v225 = vadd.f32 %v221, %v224
    %vm226 = vweird.f32 %v220
    %vm227 = vweird.f32 %v221
    %vm228 = vmor %vm226, %vm227
    %v229 = vsel %vm228, %v221, %v225
    %v230 = vand.u32 2147483647, %v220
    %vm231 = vcmp.eq.f32.partialorder %v230, 8.507059e+37
    %v232 = vand.u32 %v220, 2147483648
    %v233 = vor.u32 1.1754944e-38, %v232
    %v234 = vsel %vm231, %v233, %v229
    %v235 = vmul.f32 1.0, %v234
    %v236 = vtanh.pop %v196
    %v237 = vxor.u32 %v197, 2147483648
    %v238 = vmul.f32 %v237, 1.442695
    %v239 = vpow.pop %v238
    %v240 = vadd.f32 %v239, 1.0
    %v241 = vrcp.pop %v240
    %v242 = vmul.f32 %v240, %v241
    %v243 = vsub.f32 1.0, %v242
    %v244 = vmul.f32 %v241, %v243
    %v245 = vadd.f32 %v241, %v244
    %vm246 = vweird.f32 %v240
    %vm247 = vweird.f32 %v241
    %vm248 = vmor %vm246, %vm247
    %v249 = vsel %vm248, %v241, %v245
    %v250 = vand.u32 2147483647, %v240
    %vm251 = vcmp.eq.f32.partialorder %v250, 8.507059e+37
    %v252 = vand.u32 %v240, 2147483648
    %v253 = vor.u32 1.1754944e-38, %v252
    %v254 = vsel %vm251, %v253, %v249
    %v255 = vmul.f32 1.0, %v254
    %v256 = vmul.f32 %v235, %v109
    %v257 = vmul.f32 %v216, %v236
    %v258 = vadd.f32 %v256, %v257
    %v259 = vtanh.pop %v258
    %v260 = vmul.f32 %v255, %v259
    %261 = vst [vmem:[#allocation2] sm:$0xff] %v260
    %262 = vst [vmem:[#allocation3] sm:$0xff] %v258
    %263 = vst [vmem:[%s4] sm:$0xff] %v260
    %v264 = vld [vmem:[#allocation2] sm:$0xff]
    %v265 = vld [vmem:[#allocation3] sm:$0xff]
    %s266 = scalar_lea.vmem %s0, 32
    %v267 = vld [vmem:[%s266] sm:$0xff]
    %v268 = vld [vmem:[%s266 + $0x8] sm:$0xff]
    %v269 = vld [vmem:[%s266 + $0x10] sm:$0xff]
    %v270 = vld [vmem:[%s266 + $0x18] sm:$0xff]
    %271 = vmatpush.msra.mxu0 %v104
    %272 = vmatpush.msra.mxu0 %v100
    %273 = vmatpush.msra.mxu0 %v96
    %274 = vmatpush.msra.mxu0 %v92
    %275 = vmatpush.msra.mxu0 %v88
    %276 = vmatpush.msra.mxu0 %v84
    %277 = vmatpush.msra.mxu0 %v80
    %278 = vmatpush.msra.mxu0 %v76
    %279 = vmatpush.msra.mxu0 %v72
    %280 = vmatpush.msra.mxu0 %v68
    %281 = vmatpush.msra.mxu0 %v64
    %282 = vmatpush.msra.mxu0 %v60
    %283 = vmatpush.msra.mxu0 %v56
    %284 = vmatpush.msra.mxu0 %v52
    %285 = vmatpush.msra.mxu0 %v48
    %286 = vmatpush.msra.mxu0 %v44
    %287 = vmatmul.f32.gmra.mxu0 %v264
    %v288 = vpop.f32.mrf.mxu0
    %v289 = vadd.f32 0.0, %v288
    %290 = vdwg.mxu0
    %291 = vmatpush.msra.mxu0 %v105
    %292 = vmatpush.msra.mxu0 %v101
    %293 = vmatpush.msra.mxu0 %v97
    %294 = vmatpush.msra.mxu0 %v93
    %295 = vmatpush.msra.mxu0 %v89
    %296 = vmatpush.msra.mxu0 %v85
    %297 = vmatpush.msra.mxu0 %v81
    %298 = vmatpush.msra.mxu0 %v77
    %299 = vmatpush.msra.mxu0 %v73
    %300 = vmatpush.msra.mxu0 %v69
    %301 = vmatpush.msra.mxu0 %v65
    %302 = vmatpush.msra.mxu0 %v61
    %303 = vmatpush.msra.mxu0 %v57
    %304 = vmatpush.msra.mxu0 %v53
    %305 = vmatpush.msra.mxu0 %v49
    %306 = vmatpush.msra.mxu0 %v45
    %307 = vmatmul.f32.gmra.mxu0 %v264
    %v308 = vpop.f32.mrf.mxu0
    %v309 = vadd.f32 0.0, %v308
    %310 = vdwg.mxu0
    %311 = vmatpush.msra.mxu0 %v106
    %312 = vmatpush.msra.mxu0 %v102
    %313 = vmatpush.msra.mxu0 %v98
    %314 = vmatpush.msra.mxu0 %v94
    %315 = vmatpush.msra.mxu0 %v90
    %316 = vmatpush.msra.mxu0 %v86
    %317 = vmatpush.msra.mxu0 %v82
    %318 = vmatpush.msra.mxu0 %v78
    %319 = vmatpush.msra.mxu0 %v74
    %320 = vmatpush.msra.mxu0 %v70
    %321 = vmatpush.msra.mxu0 %v66
    %322 = vmatpush.msra.mxu0 %v62
    %323 = vmatpush.msra.mxu0 %v58
    %324 = vmatpush.msra.mxu0 %v54
    %325 = vmatpush.msra.mxu0 %v50
    %326 = vmatpush.msra.mxu0 %v46
    %327 = vmatmul.f32.gmra.mxu0 %v264
    %v328 = vpop.f32.mrf.mxu0
    %v329 = vadd.f32 0.0, %v328
    %330 = vdwg.mxu0
    %331 = vmatpush.msra.mxu0 %v107
    %332 = vmatpush.msra.mxu0 %v103
    %333 = vmatpush.msra.mxu0 %v99
    %334 = vmatpush.msra.mxu0 %v95
    %335 = vmatpush.msra.mxu0 %v91
    %336 = vmatpush.msra.mxu0 %v87
    %337 = vmatpush.msra.mxu0 %v83
    %338 = vmatpush.msra.mxu0 %v79
    %339 = vmatpush.msra.mxu0 %v75
    %340 = vmatpush.msra.mxu0 %v71
    %341 = vmatpush.msra.mxu0 %v67
    %342 = vmatpush.msra.mxu0 %v63
    %343 = vmatpush.msra.mxu0 %v59
    %344 = vmatpush.msra.mxu0 %v55
    %345 = vmatpush.msra.mxu0 %v51
    %346 = vmatpush.msra.mxu0 %v47
    %347 = vmatmul.f32.gmra.mxu0 %v264
    %v348 = vpop.f32.mrf.mxu0
    %v349 = vadd.f32 0.0, %v348
    %350 = vdwg.mxu0
    %v351 = vadd.f32 %v267, %v289
    %v352 = vadd.f32 %v268, %v309
    %v353 = vadd.f32 %v269, %v329
    %v354 = vadd.f32 %v270, %v349
    %v355 = vxor.u32 %v351, 2147483648
    %v356 = vmul.f32 %v355, 1.442695
    %v357 = vpow.pop %v356
    %v358 = vadd.f32 %v357, 1.0
    %v359 = vrcp.pop %v358
    %v360 = vmul.f32 %v358, %v359
    %v361 = vsub.f32 1.0, %v360
    %v362 = vmul.f32 %v359, %v361
    %v363 = vadd.f32 %v359, %v362
    %vm364 = vweird.f32 %v358
    %vm365 = vweird.f32 %v359
    %vm366 = vmor %vm364, %vm365
    %v367 = vsel %vm366, %v359, %v363
    %v368 = vand.u32 2147483647, %v358
    %vm369 = vcmp.eq.f32.partialorder %v368, 8.507059e+37
    %v370 = vand.u32 %v358, 2147483648
    %v371 = vor.u32 1.1754944e-38, %v370
    %v372 = vsel %vm369, %v371, %v367
    %v373 = vmul.f32 1.0, %v372
    %v374 = vxor.u32 %v352, 2147483648
    %v375 = vmul.f32 %v374, 1.442695
    %v376 = vpow.pop %v375
    %v377 = vadd.f32 %v376, 1.0
    %v378 = vrcp.pop %v377
    %v379 = vmul.f32 %v377, %v378
    %v380 = vsub.f32 1.0, %v379
    %v381 = vmul.f32 %v378, %v380
    %v382 = vadd.f32 %v378, %v381
    %vm383 = vweird.f32 %v377
    %vm384 = vweird.f32 %v378
    %vm385 = vmor %vm383, %vm384
    %v386 = vsel %vm385, %v378, %v382
    %v387 = vand.u32 2147483647, %v377
    %vm388 = vcmp.eq.f32.partialorder %v387, 8.507059e+37
    %v389 = vand.u32 %v377, 2147483648
    %v390 = vor.u32 1.1754944e-38, %v389
    %v391 = vsel %vm388, %v390, %v386
    %v392 = vmul.f32 1.0, %v391
    %v393 = vtanh.pop %v353
    %v394 = vxor.u32 %v354, 2147483648
    %v395 = vmul.f32 %v394, 1.442695
    %v396 = vpow.pop %v395
    %v397 = vadd.f32 %v396, 1.0
    %v398 = vrcp.pop %v397
    %v399 = vmul.f32 %v397, %v398
    %v400 = vsub.f32 1.0, %v399
    %v401 = vmul.f32 %v398, %v400
    %v402 = vadd.f32 %v398, %v401
    %vm403 = vweird.f32 %v397
    %vm404 = vweird.f32 %v398
    %vm405 = vmor %vm403, %vm404
    %v406 = vsel %vm405, %v398, %v402
    %v407 = vand.u32 2147483647, %v397
    %vm408 = vcmp.eq.f32.partialorder %v407, 8.507059e+37
    %v409 = vand.u32 %v397, 2147483648
    %v410 = vor.u32 1.1754944e-38, %v409
    %v411 = vsel %vm408, %v410, %v406
    %v412 = vmul.f32 1.0, %v411
    %v413 = vmul.f32 %v392, %v265
    %v414 = vmul.f32 %v373, %v393
    %v415 = vadd.f32 %v413, %v414
    %v416 = vtanh.pop %v415
    %v417 = vmul.f32 %v412, %v416
    %418 = vst [vmem:[#allocation2] sm:$0xff] %v417
    %419 = vst [vmem:[#allocation3] sm:$0xff] %v415
    %s420 = scalar_lea.vmem %s4, 8
    %421 = vst [vmem:[%s420] sm:$0xff] %v417
    %v422 = vld [vmem:[#allocation2] sm:$0xff]
    %v423 = vld [vmem:[#allocation3] sm:$0xff]
    %s424 = scalar_lea.vmem %s0, 64
    %v425 = vld [vmem:[%s424] sm:$0xff]
    %v426 = vld [vmem:[%s424 + $0x8] sm:$0xff]
    %v427 = vld [vmem:[%s424 + $0x10] sm:$0xff]
    %v428 = vld [vmem:[%s424 + $0x18] sm:$0xff]
    %429 = vmatpush.msra.mxu0 %v104
    %430 = vmatpush.msra.mxu0 %v100
    %431 = vmatpush.msra.mxu0 %v96
    %432 = vmatpush.msra.mxu0 %v92
    %433 = vmatpush.msra.mxu0 %v88
    %434 = vmatpush.msra.mxu0 %v84
    %435 = vmatpush.msra.mxu0 %v80
    %436 = vmatpush.msra.mxu0 %v76
    %437 = vmatpush.msra.mxu0 %v72
    %438 = vmatpush.msra.mxu0 %v68
    %439 = vmatpush.msra.mxu0 %v64
    %440 = vmatpush.msra.mxu0 %v60
    %441 = vmatpush.msra.mxu0 %v56
    %442 = vmatpush.msra.mxu0 %v52
    %443 = vmatpush.msra.mxu0 %v48
    %444 = vmatpush.msra.mxu0 %v44
    %445 = vmatmul.f32.gmra.mxu0 %v422
    %v446 = vpop.f32.mrf.mxu0
    %v447 = vadd.f32 0.0, %v446
    %448 = vdwg.mxu0
    %449 = vmatpush.msra.mxu0 %v105
    %450 = vmatpush.msra.mxu0 %v101
    %451 = vmatpush.msra.mxu0 %v97
    %452 = vmatpush.msra.mxu0 %v93
    %453 = vmatpush.msra.mxu0 %v89
    %454 = vmatpush.msra.mxu0 %v85
    %455 = vmatpush.msra.mxu0 %v81
    %456 = vmatpush.msra.mxu0 %v77
    %457 = vmatpush.msra.mxu0 %v73
    %458 = vmatpush.msra.mxu0 %v69
    %459 = vmatpush.msra.mxu0 %v65
    %460 = vmatpush.msra.mxu0 %v61
    %461 = vmatpush.msra.mxu0 %v57
    %462 = vmatpush.msra.mxu0 %v53
    %463 = vmatpush.msra.mxu0 %v49
    %464 = vmatpush.msra.mxu0 %v45
    %465 = vmatmul.f32.gmra.mxu0 %v422
    %v466 = vpop.f32.mrf.mxu0
    %v467 = vadd.f32 0.0, %v466
    %468 = vdwg.mxu0
    %469 = vmatpush.msra.mxu0 %v106
    %470 = vmatpush.msra.mxu0 %v102
    %471 = vmatpush.msra.mxu0 %v98
    %472 = vmatpush.msra.mxu0 %v94
    %473 = vmatpush.msra.mxu0 %v90
    %474 = vmatpush.msra.mxu0 %v86
    %475 = vmatpush.msra.mxu0 %v82
    %476 = vmatpush.msra.mxu0 %v78
    %477 = vmatpush.msra.mxu0 %v74
    %478 = vmatpush.msra.mxu0 %v70
    %479 = vmatpush.msra.mxu0 %v66
    %480 = vmatpush.msra.mxu0 %v62
    %481 = vmatpush.msra.mxu0 %v58
    %482 = vmatpush.msra.mxu0 %v54
    %483 = vmatpush.msra.mxu0 %v50
    %484 = vmatpush.msra.mxu0 %v46
    %485 = vmatmul.f32.gmra.mxu0 %v422
    %v486 = vpop.f32.mrf.mxu0
    %v487 = vadd.f32 0.0, %v486
    %488 = vdwg.mxu0
    %489 = vmatpush.msra.mxu0 %v107
    %490 = vmatpush.msra.mxu0 %v103
    %491 = vmatpush.msra.mxu0 %v99
    %492 = vmatpush.msra.mxu0 %v95
    %493 = vmatpush.msra.mxu0 %v91
    %494 = vmatpush.msra.mxu0 %v87
    %495 = vmatpush.msra.mxu0 %v83
    %496 = vmatpush.msra.mxu0 %v79
    %497 = vmatpush.msra.mxu0 %v75
    %498 = vmatpush.msra.mxu0 %v71
    %499 = vmatpush.msra.mxu0 %v67
    %500 = vmatpush.msra.mxu0 %v63
    %501 = vmatpush.msra.mxu0 %v59
    %502 = vmatpush.msra.mxu0 %v55
    %503 = vmatpush.msra.mxu0 %v51
    %504 = vmatpush.msra.mxu0 %v47
    %505 = vmatmul.f32.gmra.mxu0 %v422
    %v506 = vpop.f32.mrf.mxu0
    %v507 = vadd.f32 0.0, %v506
    %508 = vdwg.mxu0
    %v509 = vadd.f32 %v425, %v447
    %v510 = vadd.f32 %v426, %v467
    %v511 = vadd.f32 %v427, %v487
    %v512 = vadd.f32 %v428, %v507
    %v513 = vxor.u32 %v509, 2147483648
    %v514 = vmul.f32 %v513, 1.442695
    %v515 = vpow.pop %v514
    %v516 = vadd.f32 %v515, 1.0
    %v517 = vrcp.pop %v516
    %v518 = vmul.f32 %v516, %v517
    %v519 = vsub.f32 1.0, %v518
    %v520 = vmul.f32 %v517, %v519
    %v521 = vadd.f32 %v517, %v520
    %vm522 = vweird.f32 %v516
    %vm523 = vweird.f32 %v517
    %vm524 = vmor %vm522, %vm523
    %v525 = vsel %vm524, %v517, %v521
    %v526 = vand.u32 2147483647, %v516
    %vm527 = vcmp.eq.f32.partialorder %v526, 8.507059e+37
    %v528 = vand.u32 %v516, 2147483648
    %v529 = vor.u32 1.1754944e-38, %v528
    %v530 = vsel %vm527, %v529, %v525
    %v531 = vmul.f32 1.0, %v530
    %v532 = vxor.u32 %v510, 2147483648
    %v533 = vmul.f32 %v532, 1.442695
    %v534 = vpow.pop %v533
    %v535 = vadd.f32 %v534, 1.0
    %v536 = vrcp.pop %v535
    %v537 = vmul.f32 %v535, %v536
    %v538 = vsub.f32 1.0, %v537
    %v539 = vmul.f32 %v536, %v538
    %v540 = vadd.f32 %v536, %v539
    %vm541 = vweird.f32 %v535
    %vm542 = vweird.f32 %v536
    %vm543 = vmor %vm541, %vm542
    %v544 = vsel %vm543, %v536, %v540
    %v545 = vand.u32 2147483647, %v535
    %vm546 = vcmp.eq.f32.partialorder %v545, 8.507059e+37
    %v547 = vand.u32 %v535, 2147483648
    %v548 = vor.u32 1.1754944e-38, %v547
    %v549 = vsel %vm546, %v548, %v544
    %v550 = vmul.f32 1.0, %v549
    %v551 = vtanh.pop %v511
    %v552 = vxor.u32 %v512, 2147483648
    %v553 = vmul.f32 %v552, 1.442695
    %v554 = vpow.pop %v553
    %v555 = vadd.f32 %v554, 1.0
    %v556 = vrcp.pop %v555
    %v557 = vmul.f32 %v555, %v556
    %v558 = vsub.f32 1.0, %v557
    %v559 = vmul.f32 %v556, %v558
    %v560 = vadd.f32 %v556, %v559
    %vm561 = vweird.f32 %v555
    %vm562 = vweird.f32 %v556
    %vm563 = vmor %vm561, %vm562
    %v564 = vsel %vm563, %v556, %v560
    %v565 = vand.u32 2147483647, %v555
    %vm566 = vcmp.eq.f32.partialorder %v565, 8.507059e+37
    %v567 = vand.u32 %v555, 2147483648
    %v568 = vor.u32 1.1754944e-38, %v567
    %v569 = vsel %vm566, %v568, %v564
    %v570 = vmul.f32 1.0, %v569
    %v571 = vmul.f32 %v550, %v423
    %v572 = vmul.f32 %v531, %v551
    %v573 = vadd.f32 %v571, %v572
    %v574 = vtanh.pop %v573
    %v575 = vmul.f32 %v570, %v574
    %576 = vst [vmem:[#allocation2] sm:$0xff] %v575
    %577 = vst [vmem:[#allocation3] sm:$0xff] %v573
    %s578 = scalar_lea.vmem %s4, 16
    %579 = vst [vmem:[%s578] sm:$0xff] %v575
    %v580 = vld [vmem:[#allocation2] sm:$0xff]
    %v581 = vld [vmem:[#allocation3] sm:$0xff]
    %s582 = scalar_lea.vmem %s0, 96
    %v583 = vld [vmem:[%s582] sm:$0xff]
    %v584 = vld [vmem:[%s582 + $0x8] sm:$0xff]
    %v585 = vld [vmem:[%s582 + $0x10] sm:$0xff]
    %v586 = vld [vmem:[%s582 + $0x18] sm:$0xff]
    %587 = vmatpush.msra.mxu0 %v104
    %588 = vmatpush.msra.mxu0 %v100
    %589 = vmatpush.msra.mxu0 %v96
    %590 = vmatpush.msra.mxu0 %v92
    %591 = vmatpush.msra.mxu0 %v88
    %592 = vmatpush.msra.mxu0 %v84
    %593 = vmatpush.msra.mxu0 %v80
    %594 = vmatpush.msra.mxu0 %v76
    %595 = vmatpush.msra.mxu0 %v72
    %596 = vmatpush.msra.mxu0 %v68
    %597 = vmatpush.msra.mxu0 %v64
    %598 = vmatpush.msra.mxu0 %v60
    %599 = vmatpush.msra.mxu0 %v56
    %600 = vmatpush.msra.mxu0 %v52
    %601 = vmatpush.msra.mxu0 %v48
    %602 = vmatpush.msra.mxu0 %v44
    %603 = vmatmul.f32.gmra.mxu0 %v580
    %v604 = vpop.f32.mrf.mxu0
    %v605 = vadd.f32 0.0, %v604
    %606 = vdwg.mxu0
    %607 = vmatpush.msra.mxu0 %v105
    %608 = vmatpush.msra.mxu0 %v101
    %609 = vmatpush.msra.mxu0 %v97
    %610 = vmatpush.msra.mxu0 %v93
    %611 = vmatpush.msra.mxu0 %v89
    %612 = vmatpush.msra.mxu0 %v85
    %613 = vmatpush.msra.mxu0 %v81
    %614 = vmatpush.msra.mxu0 %v77
    %615 = vmatpush.msra.mxu0 %v73
    %616 = vmatpush.msra.mxu0 %v69
    %617 = vmatpush.msra.mxu0 %v65
    %618 = vmatpush.msra.mxu0 %v61
    %619 = vmatpush.msra.mxu0 %v57
    %620 = vmatpush.msra.mxu0 %v53
    %621 = vmatpush.msra.mxu0 %v49
    %622 = vmatpush.msra.mxu0 %v45
    %623 = vmatmul.f32.gmra.mxu0 %v580
    %v624 = vpop.f32.mrf.mxu0
    %v625 = vadd.f32 0.0, %v624
    %626 = vdwg.mxu0
    %627 = vmatpush.msra.mxu0 %v106
    %628 = vmatpush.msra.mxu0 %v102
    %629 = vmatpush.msra.mxu0 %v98
    %630 = vmatpush.msra.mxu0 %v94
    %631 = vmatpush.msra.mxu0 %v90
    %632 = vmatpush.msra.mxu0 %v86
    %633 = vmatpush.msra.mxu0 %v82
    %634 = vmatpush.msra.mxu0 %v78
    %635 = vmatpush.msra.mxu0 %v74
    %636 = vmatpush.msra.mxu0 %v70
    %637 = vmatpush.msra.mxu0 %v66
    %638 = vmatpush.msra.mxu0 %v62
    %639 = vmatpush.msra.mxu0 %v58
    %640 = vmatpush.msra.mxu0 %v54
    %641 = vmatpush.msra.mxu0 %v50
    %642 = vmatpush.msra.mxu0 %v46
    %643 = vmatmul.f32.gmra.mxu0 %v580
    %v644 = vpop.f32.mrf.mxu0
    %v645 = vadd.f32 0.0, %v644
    %646 = vdwg.mxu0
    %647 = vmatpush.msra.mxu0 %v107
    %648 = vmatpush.msra.mxu0 %v103
    %649 = vmatpush.msra.mxu0 %v99
    %650 = vmatpush.msra.mxu0 %v95
    %651 = vmatpush.msra.mxu0 %v91
    %652 = vmatpush.msra.mxu0 %v87
    %653 = vmatpush.msra.mxu0 %v83
    %654 = vmatpush.msra.mxu0 %v79
    %655 = vmatpush.msra.mxu0 %v75
    %656 = vmatpush.msra.mxu0 %v71
    %657 = vmatpush.msra.mxu0 %v67
    %658 = vmatpush.msra.mxu0 %v63
    %659 = vmatpush.msra.mxu0 %v59
    %660 = vmatpush.msra.mxu0 %v55
    %661 = vmatpush.msra.mxu0 %v51
    %662 = vmatpush.msra.mxu0 %v47
    %663 = vmatmul.f32.gmra.mxu0 %v580
    %v664 = vpop.f32.mrf.mxu0
    %v665 = vadd.f32 0.0, %v664
    %666 = vdwg.mxu0
    %v667 = vadd.f32 %v583, %v605
    %v668 = vadd.f32 %v584, %v625
    %v669 = vadd.f32 %v585, %v645
    %v670 = vadd.f32 %v586, %v665
    %v671 = vxor.u32 %v667, 2147483648
    %v672 = vmul.f32 %v671, 1.442695
    %v673 = vpow.pop %v672
    %v674 = vadd.f32 %v673, 1.0
    %v675 = vrcp.pop %v674
    %v676 = vmul.f32 %v674, %v675
    %v677 = vsub.f32 1.0, %v676
    %v678 = vmul.f32 %v675, %v677
    %v679 = vadd.f32 %v675, %v678
    %vm680 = vweird.f32 %v674
    %vm681 = vweird.f32 %v675
    %vm682 = vmor %vm680, %vm681
    %v683 = vsel %vm682, %v675, %v679
    %v684 = vand.u32 2147483647, %v674
    %vm685 = vcmp.eq.f32.partialorder %v684, 8.507059e+37
    %v686 = vand.u32 %v674, 2147483648
    %v687 = vor.u32 1.1754944e-38, %v686
    %v688 = vsel %vm685, %v687, %v683
    %v689 = vmul.f32 1.0, %v688
    %v690 = vxor.u32 %v668, 2147483648
    %v691 = vmul.f32 %v690, 1.442695
    %v692 = vpow.pop %v691
    %v693 = vadd.f32 %v692, 1.0
    %v694 = vrcp.pop %v693
    %v695 = vmul.f32 %v693, %v694
    %v696 = vsub.f32 1.0, %v695
    %v697 = vmul.f32 %v694, %v696
    %v698 = vadd.f32 %v694, %v697
    %vm699 = vweird.f32 %v693
    %vm700 = vweird.f32 %v694
    %vm701 = vmor %vm699, %vm700
    %v702 = vsel %vm701, %v694, %v698
    %v703 = vand.u32 2147483647, %v693
    %vm704 = vcmp.eq.f32.partialorder %v703, 8.507059e+37
    %v705 = vand.u32 %v693, 2147483648
    %v706 = vor.u32 1.1754944e-38, %v705
    %v707 = vsel %vm704, %v706, %v702
    %v708 = vmul.f32 1.0, %v707
    %v709 = vtanh.pop %v669
    %v710 = vxor.u32 %v670, 2147483648
    %v711 = vmul.f32 %v710, 1.442695
    %v712 = vpow.pop %v711
    %v713 = vadd.f32 %v712, 1.0
    %v714 = vrcp.pop %v713
    %v715 = vmul.f32 %v713, %v714
    %v716 = vsub.f32 1.0, %v715
    %v717 = vmul.f32 %v714, %v716
    %v718 = vadd.f32 %v714, %v717
    %vm719 = vweird.f32 %v713
    %vm720 = vweird.f32 %v714
    %vm721 = vmor %vm719, %vm720
    %v722 = vsel %vm721, %v714, %v718
    %v723 = vand.u32 2147483647, %v713
    %vm724 = vcmp.eq.f32.partialorder %v723, 8.507059e+37
    %v725 = vand.u32 %v713, 2147483648
    %v726 = vor.u32 1.1754944e-38, %v725
    %v727 = vsel %vm724, %v726, %v722
    %v728 = vmul.f32 1.0, %v727
    %v729 = vmul.f32 %v708, %v581
    %v730 = vmul.f32 %v689, %v709
    %v731 = vadd.f32 %v729, %v730
    %v732 = vtanh.pop %v731
    %v733 = vmul.f32 %v728, %v732
    %734 = vst [vmem:[#allocation2] sm:$0xff] %v733
    %735 = vst [vmem:[#allocation3] sm:$0xff] %v731
    %s736 = scalar_lea.vmem %s4, 24
    %737 = vst [vmem:[%s736] sm:$0xff] %v733
    %v738 = vld [vmem:[#allocation2] sm:$0xff]
    %v739 = vld [vmem:[#allocation3] sm:$0xff]
    %s740 = scalar_lea.vmem %s0, 128
    %v741 = vld [vmem:[%s740] sm:$0xff]
    %v742 = vld [vmem:[%s740 + $0x8] sm:$0xff]
    %v743 = vld [vmem:[%s740 + $0x10] sm:$0xff]
    %v744 = vld [vmem:[%s740 + $0x18] sm:$0xff]
    %745 = vmatpush.msra.mxu0 %v104
    %746 = vmatpush.msra.mxu0 %v100
    %747 = vmatpush.msra.mxu0 %v96
    %748 = vmatpush.msra.mxu0 %v92
    %749 = vmatpush.msra.mxu0 %v88
    %750 = vmatpush.msra.mxu0 %v84
    %751 = vmatpush.msra.mxu0 %v80
    %752 = vmatpush.msra.mxu0 %v76
    %753 = vmatpush.msra.mxu0 %v72
    %754 = vmatpush.msra.mxu0 %v68
    %755 = vmatpush.msra.mxu0 %v64
    %756 = vmatpush.msra.mxu0 %v60
    %757 = vmatpush.msra.mxu0 %v56
    %758 = vmatpush.msra.mxu0 %v52
    %759 = vmatpush.msra.mxu0 %v48
    %760 = vmatpush.msra.mxu0 %v44
    %761 = vmatmul.f32.gmra.mxu0 %v738
    %v762 = vpop.f32.mrf.mxu0
    %v763 = vadd.f32 0.0, %v762
    %764 = vdwg.mxu0
    %765 = vmatpush.msra.mxu0 %v105
    %766 = vmatpush.msra.mxu0 %v101
    %767 = vmatpush.msra.mxu0 %v97
    %768 = vmatpush.msra.mxu0 %v93
    %769 = vmatpush.msra.mxu0 %v89
    %770 = vmatpush.msra.mxu0 %v85
    %771 = vmatpush.msra.mxu0 %v81
    %772 = vmatpush.msra.mxu0 %v77
    %773 = vmatpush.msra.mxu0 %v73
    %774 = vmatpush.msra.mxu0 %v69
    %775 = vmatpush.msra.mxu0 %v65
    %776 = vmatpush.msra.mxu0 %v61
    %777 = vmatpush.msra.mxu0 %v57
    %778 = vmatpush.msra.mxu0 %v53
    %779 = vmatpush.msra.mxu0 %v49
    %780 = vmatpush.msra.mxu0 %v45
    %781 = vmatmul.f32.gmra.mxu0 %v738
    %v782 = vpop.f32.mrf.mxu0
    %v783 = vadd.f32 0.0, %v782
    %784 = vdwg.mxu0
    %785 = vmatpush.msra.mxu0 %v106
    %786 = vmatpush.msra.mxu0 %v102
    %787 = vmatpush.msra.mxu0 %v98
    %788 = vmatpush.msra.mxu0 %v94
    %789 = vmatpush.msra.mxu0 %v90
    %790 = vmatpush.msra.mxu0 %v86
    %791 = vmatpush.msra.mxu0 %v82
    %792 = vmatpush.msra.mxu0 %v78
    %793 = vmatpush.msra.mxu0 %v74
    %794 = vmatpush.msra.mxu0 %v70
    %795 = vmatpush.msra.mxu0 %v66
    %796 = vmatpush.msra.mxu0 %v62
    %797 = vmatpush.msra.mxu0 %v58
    %798 = vmatpush.msra.mxu0 %v54
    %799 = vmatpush.msra.mxu0 %v50
    %800 = vmatpush.msra.mxu0 %v46
    %801 = vmatmul.f32.gmra.mxu0 %v738
    %v802 = vpop.f32.mrf.mxu0
    %v803 = vadd.f32 0.0, %v802
    %804 = vdwg.mxu0
    %805 = vmatpush.msra.mxu0 %v107
    %806 = vmatpush.msra.mxu0 %v103
    %807 = vmatpush.msra.mxu0 %v99
    %808 = vmatpush.msra.mxu0 %v95
    %809 = vmatpush.msra.mxu0 %v91
    %810 = vmatpush.msra.mxu0 %v87
    %811 = vmatpush.msra.mxu0 %v83
    %812 = vmatpush.msra.mxu0 %v79
    %813 = vmatpush.msra.mxu0 %v75
    %814 = vmatpush.msra.mxu0 %v71
    %815 = vmatpush.msra.mxu0 %v67
    %816 = vmatpush.msra.mxu0 %v63
    %817 = vmatpush.msra.mxu0 %v59
    %818 = vmatpush.msra.mxu0 %v55
    %819 = vmatpush.msra.mxu0 %v51
    %820 = vmatpush.msra.mxu0 %v47
    %821 = vmatmul.f32.gmra.mxu0 %v738
    %v822 = vpop.f32.mrf.mxu0
    %v823 = vadd.f32 0.0, %v822
    %824 = vdwg.mxu0
    %v825 = vadd.f32 %v741, %v763
    %v826 = vadd.f32 %v742, %v783
    %v827 = vadd.f32 %v743, %v803
    %v828 = vadd.f32 %v744, %v823
    %v829 = vxor.u32 %v825, 2147483648
    %v830 = vmul.f32 %v829, 1.442695
    %v831 = vpow.pop %v830
    %v832 = vadd.f32 %v831, 1.0
    %v833 = vrcp.pop %v832
    %v834 = vmul.f32 %v832, %v833
    %v835 = vsub.f32 1.0, %v834
    %v836 = vmul.f32 %v833, %v835
    %v837 = vadd.f32 %v833, %v836
    %vm838 = vweird.f32 %v832
    %vm839 = vweird.f32 %v833
    %vm840 = vmor %vm838, %vm839
    %v841 = vsel %vm840, %v833, %v837
    %v842 = vand.u32 2147483647, %v832
    %vm843 = vcmp.eq.f32.partialorder %v842, 8.507059e+37
    %v844 = vand.u32 %v832, 2147483648
    %v845 = vor.u32 1.1754944e-38, %v844
    %v846 = vsel %vm843, %v845, %v841
    %v847 = vmul.f32 1.0, %v846
    %v848 = vxor.u32 %v826, 2147483648
    %v849 = vmul.f32 %v848, 1.442695
    %v850 = vpow.pop %v849
    %v851 = vadd.f32 %v850, 1.0
    %v852 = vrcp.pop %v851
    %v853 = vmul.f32 %v851, %v852
    %v854 = vsub.f32 1.0, %v853
    %v855 = vmul.f32 %v852, %v854
    %v856 = vadd.f32 %v852, %v855
    %vm857 = vweird.f32 %v851
    %vm858 = vweird.f32 %v852
    %vm859 = vmor %vm857, %vm858
    %v860 = vsel %vm859, %v852, %v856
    %v861 = vand.u32 2147483647, %v851
    %vm862 = vcmp.eq.f32.partialorder %v861, 8.507059e+37
    %v863 = vand.u32 %v851, 2147483648
    %v864 = vor.u32 1.1754944e-38, %v863
    %v865 = vsel %vm862, %v864, %v860
    %v866 = vmul.f32 1.0, %v865
    %v867 = vtanh.pop %v827
    %v868 = vxor.u32 %v828, 2147483648
    %v869 = vmul.f32 %v868, 1.442695
    %v870 = vpow.pop %v869
    %v871 = vadd.f32 %v870, 1.0
    %v872 = vrcp.pop %v871
    %v873 = vmul.f32 %v871, %v872
    %v874 = vsub.f32 1.0, %v873
    %v875 = vmul.f32 %v872, %v874
    %v876 = vadd.f32 %v872, %v875
    %vm877 = vweird.f32 %v871
    %vm878 = vweird.f32 %v872
    %vm879 = vmor %vm877, %vm878
    %v880 = vsel %vm879, %v872, %v876
    %v881 = vand.u32 2147483647, %v871
    %vm882 = vcmp.eq.f32.partialorder %v881, 8.507059e+37
    %v883 = vand.u32 %v871, 2147483648
    %v884 = vor.u32 1.1754944e-38, %v883
    %v885 = vsel %vm882, %v884, %v880
    %v886 = vmul.f32 1.0, %v885
    %v887 = vmul.f32 %v866, %v739
    %v888 = vmul.f32 %v847, %v867
    %v889 = vadd.f32 %v887, %v888
    %v890 = vtanh.pop %v889
    %v891 = vmul.f32 %v886, %v890
    %892 = vst [vmem:[#allocation2] sm:$0xff] %v891
    %893 = vst [vmem:[#allocation3] sm:$0xff] %v889
    %s894 = scalar_lea.vmem %s4, 32
    %895 = vst [vmem:[%s894] sm:$0xff] %v891
    %v896 = vld [vmem:[#allocation2] sm:$0xff]
    %v897 = vld [vmem:[#allocation3] sm:$0xff]
    %s898 = scalar_lea.vmem %s0, 160
    %v899 = vld [vmem:[%s898] sm:$0xff]
    %v900 = vld [vmem:[%s898 + $0x8] sm:$0xff]
    %v901 = vld [vmem:[%s898 + $0x10] sm:$0xff]
    %v902 = vld [vmem:[%s898 + $0x18] sm:$0xff]
    %903 = vmatpush.msra.mxu0 %v104
    %904 = vmatpush.msra.mxu0 %v100
    %905 = vmatpush.msra.mxu0 %v96
    %906 = vmatpush.msra.mxu0 %v92
    %907 = vmatpush.msra.mxu0 %v88
    %908 = vmatpush.msra.mxu0 %v84
    %909 = vmatpush.msra.mxu0 %v80
    %910 = vmatpush.msra.mxu0 %v76
    %911 = vmatpush.msra.mxu0 %v72
    %912 = vmatpush.msra.mxu0 %v68
    %913 = vmatpush.msra.mxu0 %v64
    %914 = vmatpush.msra.mxu0 %v60
    %915 = vmatpush.msra.mxu0 %v56
    %916 = vmatpush.msra.mxu0 %v52
    %917 = vmatpush.msra.mxu0 %v48
    %918 = vmatpush.msra.mxu0 %v44
    %919 = vmatmul.f32.gmra.mxu0 %v896
    %v920 = vpop.f32.mrf.mxu0
    %v921 = vadd.f32 0.0, %v920
    %922 = vdwg.mxu0
    %923 = vmatpush.msra.mxu0 %v105
    %924 = vmatpush.msra.mxu0 %v101
    %925 = vmatpush.msra.mxu0 %v97
    %926 = vmatpush.msra.mxu0 %v93
    %927 = vmatpush.msra.mxu0 %v89
    %928 = vmatpush.msra.mxu0 %v85
    %929 = vmatpush.msra.mxu0 %v81
    %930 = vmatpush.msra.mxu0 %v77
    %931 = vmatpush.msra.mxu0 %v73
    %932 = vmatpush.msra.mxu0 %v69
    %933 = vmatpush.msra.mxu0 %v65
    %934 = vmatpush.msra.mxu0 %v61
    %935 = vmatpush.msra.mxu0 %v57
    %936 = vmatpush.msra.mxu0 %v53
    %937 = vmatpush.msra.mxu0 %v49
    %938 = vmatpush.msra.mxu0 %v45
    %939 = vmatmul.f32.gmra.mxu0 %v896
    %v940 = vpop.f32.mrf.mxu0
    %v941 = vadd.f32 0.0, %v940
    %942 = vdwg.mxu0
    %943 = vmatpush.msra.mxu0 %v106
    %944 = vmatpush.msra.mxu0 %v102
    %945 = vmatpush.msra.mxu0 %v98
    %946 = vmatpush.msra.mxu0 %v94
    %947 = vmatpush.msra.mxu0 %v90
    %948 = vmatpush.msra.mxu0 %v86
    %949 = vmatpush.msra.mxu0 %v82
    %950 = vmatpush.msra.mxu0 %v78
    %951 = vmatpush.msra.mxu0 %v74
    %952 = vmatpush.msra.mxu0 %v70
    %953 = vmatpush.msra.mxu0 %v66
    %954 = vmatpush.msra.mxu0 %v62
    %955 = vmatpush.msra.mxu0 %v58
    %956 = vmatpush.msra.mxu0 %v54
    %957 = vmatpush.msra.mxu0 %v50
    %958 = vmatpush.msra.mxu0 %v46
    %959 = vmatmul.f32.gmra.mxu0 %v896
    %v960 = vpop.f32.mrf.mxu0
    %v961 = vadd.f32 0.0, %v960
    %962 = vdwg.mxu0
    %963 = vmatpush.msra.mxu0 %v107
    %964 = vmatpush.msra.mxu0 %v103
    %965 = vmatpush.msra.mxu0 %v99
    %966 = vmatpush.msra.mxu0 %v95
    %967 = vmatpush.msra.mxu0 %v91
    %968 = vmatpush.msra.mxu0 %v87
    %969 = vmatpush.msra.mxu0 %v83
    %970 = vmatpush.msra.mxu0 %v79
    %971 = vmatpush.msra.mxu0 %v75
    %972 = vmatpush.msra.mxu0 %v71
    %973 = vmatpush.msra.mxu0 %v67
    %974 = vmatpush.msra.mxu0 %v63
    %975 = vmatpush.msra.mxu0 %v59
    %976 = vmatpush.msra.mxu0 %v55
    %977 = vmatpush.msra.mxu0 %v51
    %978 = vmatpush.msra.mxu0 %v47
    %979 = vmatmul.f32.gmra.mxu0 %v896
    %v980 = vpop.f32.mrf.mxu0
    %v981 = vadd.f32 0.0, %v980
    %982 = vdwg.mxu0
    %v983 = vadd.f32 %v899, %v921
    %v984 = vadd.f32 %v900, %v941
    %v985 = vadd.f32 %v901, %v961
    %v986 = vadd.f32 %v902, %v981
    %v987 = vxor.u32 %v983, 2147483648
    %v988 = vmul.f32 %v987, 1.442695
    %v989 = vpow.pop %v988
    %v990 = vadd.f32 %v989, 1.0
    %v991 = vrcp.pop %v990
    %v992 = vmul.f32 %v990, %v991
    %v993 = vsub.f32 1.0, %v992
    %v994 = vmul.f32 %v991, %v993
    %v995 = vadd.f32 %v991, %v994
    %vm996 = vweird.f32 %v990
    %vm997 = vweird.f32 %v991
    %vm998 = vmor %vm996, %vm997
    %v999 = vsel %vm998, %v991, %v995
    %v1000 = vand.u32 2147483647, %v990
    %vm1001 = vcmp.eq.f32.partialorder %v1000, 8.507059e+37
    %v1002 = vand.u32 %v990, 2147483648
    %v1003 = vor.u32 1.1754944e-38, %v1002
    %v1004 = vsel %vm1001, %v1003, %v999
    %v1005 = vmul.f32 1.0, %v1004
    %v1006 = vxor.u32 %v984, 2147483648
    %v1007 = vmul.f32 %v1006, 1.442695
    %v1008 = vpow.pop %v1007
    %v1009 = vadd.f32 %v1008, 1.0
    %v1010 = vrcp.pop %v1009
    %v1011 = vmul.f32 %v1009, %v1010
    %v1012 = vsub.f32 1.0, %v1011
    %v1013 = vmul.f32 %v1010, %v1012
    %v1014 = vadd.f32 %v1010, %v1013
    %vm1015 = vweird.f32 %v1009
    %vm1016 = vweird.f32 %v1010
    %vm1017 = vmor %vm1015, %vm1016
    %v1018 = vsel %vm1017, %v1010, %v1014
    %v1019 = vand.u32 2147483647, %v1009
    %vm1020 = vcmp.eq.f32.partialorder %v1019, 8.507059e+37
    %v1021 = vand.u32 %v1009, 2147483648
    %v1022 = vor.u32 1.1754944e-38, %v1021
    %v1023 = vsel %vm1020, %v1022, %v1018
    %v1024 = vmul.f32 1.0, %v1023
    %v1025 = vtanh.pop %v985
    %v1026 = vxor.u32 %v986, 2147483648
    %v1027 = vmul.f32 %v1026, 1.442695
    %v1028 = vpow.pop %v1027
    %v1029 = vadd.f32 %v1028, 1.0
    %v1030 = vrcp.pop %v1029
    %v1031 = vmul.f32 %v1029, %v1030
    %v1032 = vsub.f32 1.0, %v1031
    %v1033 = vmul.f32 %v1030, %v1032
    %v1034 = vadd.f32 %v1030, %v1033
    %vm1035 = vweird.f32 %v1029
    %vm1036 = vweird.f32 %v1030
    %vm1037 = vmor %vm1035, %vm1036
    %v1038 = vsel %vm1037, %v1030, %v1034
    %v1039 = vand.u32 2147483647, %v1029
    %vm1040 = vcmp.eq.f32.partialorder %v1039, 8.507059e+37
    %v1041 = vand.u32 %v1029, 2147483648
    %v1042 = vor.u32 1.1754944e-38, %v1041
    %v1043 = vsel %vm1040, %v1042, %v1038
    %v1044 = vmul.f32 1.0, %v1043
    %v1045 = vmul.f32 %v1024, %v897
    %v1046 = vmul.f32 %v1005, %v1025
    %v1047 = vadd.f32 %v1045, %v1046
    %v1048 = vtanh.pop %v1047
    %v1049 = vmul.f32 %v1044, %v1048
    %1050 = vst [vmem:[#allocation2] sm:$0xff] %v1049
    %1051 = vst [vmem:[#allocation3] sm:$0xff] %v1047
    %s1052 = scalar_lea.vmem %s4, 40
    %1053 = vst [vmem:[%s1052] sm:$0xff] %v1049
    %v1054 = vld [vmem:[#allocation2] sm:$0xff]
    %v1055 = vld [vmem:[#allocation3] sm:$0xff]
    %s1056 = scalar_lea.vmem %s0, 192
    %v1057 = vld [vmem:[%s1056] sm:$0xff]
    %v1058 = vld [vmem:[%s1056 + $0x8] sm:$0xff]
    %v1059 = vld [vmem:[%s1056 + $0x10] sm:$0xff]
    %v1060 = vld [vmem:[%s1056 + $0x18] sm:$0xff]
    %1061 = vmatpush.msra.mxu0 %v104
    %1062 = vmatpush.msra.mxu0 %v100
    %1063 = vmatpush.msra.mxu0 %v96
    %1064 = vmatpush.msra.mxu0 %v92
    %1065 = vmatpush.msra.mxu0 %v88
    %1066 = vmatpush.msra.mxu0 %v84
    %1067 = vmatpush.msra.mxu0 %v80
    %1068 = vmatpush.msra.mxu0 %v76
    %1069 = vmatpush.msra.mxu0 %v72
    %1070 = vmatpush.msra.mxu0 %v68
    %1071 = vmatpush.msra.mxu0 %v64
    %1072 = vmatpush.msra.mxu0 %v60
    %1073 = vmatpush.msra.mxu0 %v56
    %1074 = vmatpush.msra.mxu0 %v52
    %1075 = vmatpush.msra.mxu0 %v48
    %1076 = vmatpush.msra.mxu0 %v44
    %1077 = vmatmul.f32.gmra.mxu0 %v1054
    %v1078 = vpop.f32.mrf.mxu0
    %v1079 = vadd.f32 0.0, %v1078
    %1080 = vdwg.mxu0
    %1081 = vmatpush.msra.mxu0 %v105
    %1082 = vmatpush.msra.mxu0 %v101
    %1083 = vmatpush.msra.mxu0 %v97
    %1084 = vmatpush.msra.mxu0 %v93
    %1085 = vmatpush.msra.mxu0 %v89
    %1086 = vmatpush.msra.mxu0 %v85
    %1087 = vmatpush.msra.mxu0 %v81
    %1088 = vmatpush.msra.mxu0 %v77
    %1089 = vmatpush.msra.mxu0 %v73
    %1090 = vmatpush.msra.mxu0 %v69
    %1091 = vmatpush.msra.mxu0 %v65
    %1092 = vmatpush.msra.mxu0 %v61
    %1093 = vmatpush.msra.mxu0 %v57
    %1094 = vmatpush.msra.mxu0 %v53
    %1095 = vmatpush.msra.mxu0 %v49
    %1096 = vmatpush.msra.mxu0 %v45
    %1097 = vmatmul.f32.gmra.mxu0 %v1054
    %v1098 = vpop.f32.mrf.mxu0
    %v1099 = vadd.f32 0.0, %v1098
    %1100 = vdwg.mxu0
    %1101 = vmatpush.msra.mxu0 %v106
    %1102 = vmatpush.msra.mxu0 %v102
    %1103 = vmatpush.msra.mxu0 %v98
    %1104 = vmatpush.msra.mxu0 %v94
    %1105 = vmatpush.msra.mxu0 %v90
    %1106 = vmatpush.msra.mxu0 %v86
    %1107 = vmatpush.msra.mxu0 %v82
    %1108 = vmatpush.msra.mxu0 %v78
    %1109 = vmatpush.msra.mxu0 %v74
    %1110 = vmatpush.msra.mxu0 %v70
    %1111 = vmatpush.msra.mxu0 %v66
    %1112 = vmatpush.msra.mxu0 %v62
    %1113 = vmatpush.msra.mxu0 %v58
    %1114 = vmatpush.msra.mxu0 %v54
    %1115 = vmatpush.msra.mxu0 %v50
    %1116 = vmatpush.msra.mxu0 %v46
    %1117 = vmatmul.f32.gmra.mxu0 %v1054
    %v1118 = vpop.f32.mrf.mxu0
    %v1119 = vadd.f32 0.0, %v1118
    %1120 = vdwg.mxu0
    %1121 = vmatpush.msra.mxu0 %v107
    %1122 = vmatpush.msra.mxu0 %v103
    %1123 = vmatpush.msra.mxu0 %v99
    %1124 = vmatpush.msra.mxu0 %v95
    %1125 = vmatpush.msra.mxu0 %v91
    %1126 = vmatpush.msra.mxu0 %v87
    %1127 = vmatpush.msra.mxu0 %v83
    %1128 = vmatpush.msra.mxu0 %v79
    %1129 = vmatpush.msra.mxu0 %v75
    %1130 = vmatpush.msra.mxu0 %v71
    %1131 = vmatpush.msra.mxu0 %v67
    %1132 = vmatpush.msra.mxu0 %v63
    %1133 = vmatpush.msra.mxu0 %v59
    %1134 = vmatpush.msra.mxu0 %v55
    %1135 = vmatpush.msra.mxu0 %v51
    %1136 = vmatpush.msra.mxu0 %v47
    %1137 = vmatmul.f32.gmra.mxu0 %v1054
    %v1138 = vpop.f32.mrf.mxu0
    %v1139 = vadd.f32 0.0, %v1138
    %1140 = vdwg.mxu0
    %v1141 = vadd.f32 %v1057, %v1079
    %v1142 = vadd.f32 %v1058, %v1099
    %v1143 = vadd.f32 %v1059, %v1119
    %v1144 = vadd.f32 %v1060, %v1139
    %v1145 = vxor.u32 %v1141, 2147483648
    %v1146 = vmul.f32 %v1145, 1.442695
    %v1147 = vpow.pop %v1146
    %v1148 = vadd.f32 %v1147, 1.0
    %v1149 = vrcp.pop %v1148
    %v1150 = vmul.f32 %v1148, %v1149
    %v1151 = vsub.f32 1.0, %v1150
    %v1152 = vmul.f32 %v1149, %v1151
    %v1153 = vadd.f32 %v1149, %v1152
    %vm1154 = vweird.f32 %v1148
    %vm1155 = vweird.f32 %v1149
    %vm1156 = vmor %vm1154, %vm1155
    %v1157 = vsel %vm1156, %v1149, %v1153
    %v1158 = vand.u32 2147483647, %v1148
    %vm1159 = vcmp.eq.f32.partialorder %v1158, 8.507059e+37
    %v1160 = vand.u32 %v1148, 2147483648
    %v1161 = vor.u32 1.1754944e-38, %v1160
    %v1162 = vsel %vm1159, %v1161, %v1157
    %v1163 = vmul.f32 1.0, %v1162
    %v1164 = vxor.u32 %v1142, 2147483648
    %v1165 = vmul.f32 %v1164, 1.442695
    %v1166 = vpow.pop %v1165
    %v1167 = vadd.f32 %v1166, 1.0
    %v1168 = vrcp.pop %v1167
    %v1169 = vmul.f32 %v1167, %v1168
    %v1170 = vsub.f32 1.0, %v1169
    %v1171 = vmul.f32 %v1168, %v1170
    %v1172 = vadd.f32 %v1168, %v1171
    %vm1173 = vweird.f32 %v1167
    %vm1174 = vweird.f32 %v1168
    %vm1175 = vmor %vm1173, %vm1174
    %v1176 = vsel %vm1175, %v1168, %v1172
    %v1177 = vand.u32 2147483647, %v1167
    %vm1178 = vcmp.eq.f32.partialorder %v1177, 8.507059e+37
    %v1179 = vand.u32 %v1167, 2147483648
    %v1180 = vor.u32 1.1754944e-38, %v1179
    %v1181 = vsel %vm1178, %v1180, %v1176
    %v1182 = vmul.f32 1.0, %v1181
    %v1183 = vtanh.pop %v1143
    %v1184 = vxor.u32 %v1144, 2147483648
    %v1185 = vmul.f32 %v1184, 1.442695
    %v1186 = vpow.pop %v1185
    %v1187 = vadd.f32 %v1186, 1.0
    %v1188 = vrcp.pop %v1187
    %v1189 = vmul.f32 %v1187, %v1188
    %v1190 = vsub.f32 1.0, %v1189
    %v1191 = vmul.f32 %v1188, %v1190
    %v1192 = vadd.f32 %v1188, %v1191
    %vm1193 = vweird.f32 %v1187
    %vm1194 = vweird.f32 %v1188
    %vm1195 = vmor %vm1193, %vm1194
    %v1196 = vsel %vm1195, %v1188, %v1192
    %v1197 = vand.u32 2147483647, %v1187
    %vm1198 = vcmp.eq.f32.partialorder %v1197, 8.507059e+37
    %v1199 = vand.u32 %v1187, 2147483648
    %v1200 = vor.u32 1.1754944e-38, %v1199
    %v1201 = vsel %vm1198, %v1200, %v1196
    %v1202 = vmul.f32 1.0, %v1201
    %v1203 = vmul.f32 %v1182, %v1055
    %v1204 = vmul.f32 %v1163, %v1183
    %v1205 = vadd.f32 %v1203, %v1204
    %v1206 = vtanh.pop %v1205
    %v1207 = vmul.f32 %v1202, %v1206
    %1208 = vst [vmem:[#allocation2] sm:$0xff] %v1207
    %1209 = vst [vmem:[#allocation3] sm:$0xff] %v1205
    %s1210 = scalar_lea.vmem %s4, 48
    %1211 = vst [vmem:[%s1210] sm:$0xff] %v1207
    %v1212 = vld [vmem:[#allocation2] sm:$0xff]
    %v1213 = vld [vmem:[#allocation3] sm:$0xff]
    %s1214 = scalar_lea.vmem %s0, 224
    %v1215 = vld [vmem:[%s1214] sm:$0xff]
    %v1216 = vld [vmem:[%s1214 + $0x8] sm:$0xff]
    %v1217 = vld [vmem:[%s1214 + $0x10] sm:$0xff]
    %v1218 = vld [vmem:[%s1214 + $0x18] sm:$0xff]
    %1219 = vmatpush.msra.mxu0 %v104
    %1220 = vmatpush.msra.mxu0 %v100
    %1221 = vmatpush.msra.mxu0 %v96
    %1222 = vmatpush.msra.mxu0 %v92
    %1223 = vmatpush.msra.mxu0 %v88
    %1224 = vmatpush.msra.mxu0 %v84
    %1225 = vmatpush.msra.mxu0 %v80
    %1226 = vmatpush.msra.mxu0 %v76
    %1227 = vmatpush.msra.mxu0 %v72
    %1228 = vmatpush.msra.mxu0 %v68
    %1229 = vmatpush.msra.mxu0 %v64
    %1230 = vmatpush.msra.mxu0 %v60
    %1231 = vmatpush.msra.mxu0 %v56
    %1232 = vmatpush.msra.mxu0 %v52
    %1233 = vmatpush.msra.mxu0 %v48
    %1234 = vmatpush.msra.mxu0 %v44
    %1235 = vmatmul.f32.gmra.mxu0 %v1212
    %v1236 = vpop.f32.mrf.mxu0
    %v1237 = vadd.f32 0.0, %v1236
    %1238 = vdwg.mxu0
    %1239 = vmatpush.msra.mxu0 %v105
    %1240 = vmatpush.msra.mxu0 %v101
    %1241 = vmatpush.msra.mxu0 %v97
    %1242 = vmatpush.msra.mxu0 %v93
    %1243 = vmatpush.msra.mxu0 %v89
    %1244 = vmatpush.msra.mxu0 %v85
    %1245 = vmatpush.msra.mxu0 %v81
    %1246 = vmatpush.msra.mxu0 %v77
    %1247 = vmatpush.msra.mxu0 %v73
    %1248 = vmatpush.msra.mxu0 %v69
    %1249 = vmatpush.msra.mxu0 %v65
    %1250 = vmatpush.msra.mxu0 %v61
    %1251 = vmatpush.msra.mxu0 %v57
    %1252 = vmatpush.msra.mxu0 %v53
    %1253 = vmatpush.msra.mxu0 %v49
    %1254 = vmatpush.msra.mxu0 %v45
    %1255 = vmatmul.f32.gmra.mxu0 %v1212
    %v1256 = vpop.f32.mrf.mxu0
    %v1257 = vadd.f32 0.0, %v1256
    %1258 = vdwg.mxu0
    %1259 = vmatpush.msra.mxu0 %v106
    %1260 = vmatpush.msra.mxu0 %v102
    %1261 = vmatpush.msra.mxu0 %v98
    %1262 = vmatpush.msra.mxu0 %v94
    %1263 = vmatpush.msra.mxu0 %v90
    %1264 = vmatpush.msra.mxu0 %v86
    %1265 = vmatpush.msra.mxu0 %v82
    %1266 = vmatpush.msra.mxu0 %v78
    %1267 = vmatpush.msra.mxu0 %v74
    %1268 = vmatpush.msra.mxu0 %v70
    %1269 = vmatpush.msra.mxu0 %v66
    %1270 = vmatpush.msra.mxu0 %v62
    %1271 = vmatpush.msra.mxu0 %v58
    %1272 = vmatpush.msra.mxu0 %v54
    %1273 = vmatpush.msra.mxu0 %v50
    %1274 = vmatpush.msra.mxu0 %v46
    %1275 = vmatmul.f32.gmra.mxu0 %v1212
    %v1276 = vpop.f32.mrf.mxu0
    %v1277 = vadd.f32 0.0, %v1276
    %1278 = vdwg.mxu0
    %1279 = vmatpush.msra.mxu0 %v107
    %1280 = vmatpush.msra.mxu0 %v103
    %1281 = vmatpush.msra.mxu0 %v99
    %1282 = vmatpush.msra.mxu0 %v95
    %1283 = vmatpush.msra.mxu0 %v91
    %1284 = vmatpush.msra.mxu0 %v87
    %1285 = vmatpush.msra.mxu0 %v83
    %1286 = vmatpush.msra.mxu0 %v79
    %1287 = vmatpush.msra.mxu0 %v75
    %1288 = vmatpush.msra.mxu0 %v71
    %1289 = vmatpush.msra.mxu0 %v67
    %1290 = vmatpush.msra.mxu0 %v63
    %1291 = vmatpush.msra.mxu0 %v59
    %1292 = vmatpush.msra.mxu0 %v55
    %1293 = vmatpush.msra.mxu0 %v51
    %1294 = vmatpush.msra.mxu0 %v47
    %1295 = vmatmul.f32.gmra.mxu0 %v1212
    %v1296 = vpop.f32.mrf.mxu0
    %v1297 = vadd.f32 0.0, %v1296
    %1298 = vdwg.mxu0
    %v1299 = vadd.f32 %v1215, %v1237
    %v1300 = vadd.f32 %v1216, %v1257
    %v1301 = vadd.f32 %v1217, %v1277
    %v1302 = vadd.f32 %v1218, %v1297
    %v1303 = vxor.u32 %v1299, 2147483648
    %v1304 = vmul.f32 %v1303, 1.442695
    %v1305 = vpow.pop %v1304
    %v1306 = vadd.f32 %v1305, 1.0
    %v1307 = vrcp.pop %v1306
    %v1308 = vmul.f32 %v1306, %v1307
    %v1309 = vsub.f32 1.0, %v1308
    %v1310 = vmul.f32 %v1307, %v1309
    %v1311 = vadd.f32 %v1307, %v1310
    %vm1312 = vweird.f32 %v1306
    %vm1313 = vweird.f32 %v1307
    %vm1314 = vmor %vm1312, %vm1313
    %v1315 = vsel %vm1314, %v1307, %v1311
    %v1316 = vand.u32 2147483647, %v1306
    %vm1317 = vcmp.eq.f32.partialorder %v1316, 8.507059e+37
    %v1318 = vand.u32 %v1306, 2147483648
    %v1319 = vor.u32 1.1754944e-38, %v1318
    %v1320 = vsel %vm1317, %v1319, %v1315
    %v1321 = vmul.f32 1.0, %v1320
    %v1322 = vxor.u32 %v1300, 2147483648
    %v1323 = vmul.f32 %v1322, 1.442695
    %v1324 = vpow.pop %v1323
    %v1325 = vadd.f32 %v1324, 1.0
    %v1326 = vrcp.pop %v1325
    %v1327 = vmul.f32 %v1325, %v1326
    %v1328 = vsub.f32 1.0, %v1327
    %v1329 = vmul.f32 %v1326, %v1328
    %v1330 = vadd.f32 %v1326, %v1329
    %vm1331 = vweird.f32 %v1325
    %vm1332 = vweird.f32 %v1326
    %vm1333 = vmor %vm1331, %vm1332
    %v1334 = vsel %vm1333, %v1326, %v1330
    %v1335 = vand.u32 2147483647, %v1325
    %vm1336 = vcmp.eq.f32.partialorder %v1335, 8.507059e+37
    %v1337 = vand.u32 %v1325, 2147483648
    %v1338 = vor.u32 1.1754944e-38, %v1337
    %v1339 = vsel %vm1336, %v1338, %v1334
    %v1340 = vmul.f32 1.0, %v1339
    %v1341 = vtanh.pop %v1301
    %v1342 = vxor.u32 %v1302, 2147483648
    %v1343 = vmul.f32 %v1342, 1.442695
    %v1344 = vpow.pop %v1343
    %v1345 = vadd.f32 %v1344, 1.0
    %v1346 = vrcp.pop %v1345
    %v1347 = vmul.f32 %v1345, %v1346
    %v1348 = vsub.f32 1.0, %v1347
    %v1349 = vmul.f32 %v1346, %v1348
    %v1350 = vadd.f32 %v1346, %v1349
    %vm1351 = vweird.f32 %v1345
    %vm1352 = vweird.f32 %v1346
    %vm1353 = vmor %vm1351, %vm1352
    %v1354 = vsel %vm1353, %v1346, %v1350
    %v1355 = vand.u32 2147483647, %v1345
    %vm1356 = vcmp.eq.f32.partialorder %v1355, 8.507059e+37
    %v1357 = vand.u32 %v1345, 2147483648
    %v1358 = vor.u32 1.1754944e-38, %v1357
    %v1359 = vsel %vm1356, %v1358, %v1354
    %v1360 = vmul.f32 1.0, %v1359
    %v1361 = vmul.f32 %v1340, %v1213
    %v1362 = vmul.f32 %v1321, %v1341
    %v1363 = vadd.f32 %v1361, %v1362
    %v1364 = vtanh.pop %v1363
    %v1365 = vmul.f32 %v1360, %v1364
    %1366 = vst [vmem:[#allocation2] sm:$0xff] %v1365
    %1367 = vst [vmem:[#allocation3] sm:$0xff] %v1363
    %s1368 = scalar_lea.vmem %s4, 56
    %1369 = vst [vmem:[%s1368] sm:$0xff] %v1365
    // Predicated region
    $region26: #{encoder_forward.5} parent=1 // pred_check
      %p1370 = pneg %p36
    $region27: #{encoder_forward.5} parent=1 // pred_check_branch
      %1372 = sbr.rel (%p1370) target = $region29
    $region28: #{encoder_forward.5} parent=1 // pred_region
      %v1373 = vld [vmem:[#allocation2] sm:$0xff]
      %1374 = vst [vmem:[%s5] sm:$0xff] %v1373
      %v1375 = vld [vmem:[#allocation3] sm:$0xff]
      %1376 = vst [vmem:[%s6] sm:$0xff] %v1375
    $region29: #{encoder_forward.5} parent=1 // pred_fallthru
      _
    // Predicated region
    $region30: #{encoder_forward.5} parent=1 // pred_check
      _
    $region31: #{encoder_forward.5} parent=1 // pred_check_branch
      %1378 = sbr.rel (0) target = $region33
    $region32: #{encoder_forward.5} parent=1 // pred_region
      _
    $region33: #{encoder_forward.5} parent=1 // pred_fallthru
      _
    // Predicated region
    $region34: #{encoder_forward.5} parent=1 // pred_check
      _
    $region35: #{encoder_forward.5} parent=1 // pred_check_branch
      %1380 = sbr.rel (0) target = $region37
    $region36: #{encoder_forward.5} parent=1 // pred_region
      _
    $region37: #{encoder_forward.5} parent=1 // pred_fallthru
      _
    // Predicated region
    $region38: #{encoder_forward.5} parent=1 // pred_check
      _
    $region39: #{encoder_forward.5} parent=1 // pred_check_branch
      %1382 = sbr.rel (0) target = $region41
    $region40: #{encoder_forward.5} parent=1 // pred_region
      _
    $region41: #{encoder_forward.5} parent=1 // pred_fallthru
      _
    // Predicated region
    $region42: #{encoder_forward.5} parent=1 // pred_check
      _
    $region43: #{encoder_forward.5} parent=1 // pred_check_branch
      %1384 = sbr.rel (0) target = $region45
    $region44: #{encoder_forward.5} parent=1 // pred_region
      _
    $region45: #{encoder_forward.5} parent=1 // pred_fallthru
      _
    // Predicated region
    $region46: #{encoder_forward.5} parent=1 // pred_check
      _
    $region47: #{encoder_forward.5} parent=1 // pred_check_branch
      %1386 = sbr.rel (0) target = $region49
    $region48: #{encoder_forward.5} parent=1 // pred_region
      _
    $region49: #{encoder_forward.5} parent=1 // pred_fallthru
      _
    // Predicated region
    $region50: #{encoder_forward.5} parent=1 // pred_check
      _
    $region51: #{encoder_forward.5} parent=1 // pred_check_branch
      %1388 = sbr.rel (0) target = $region53
    $region52: #{encoder_forward.5} parent=1 // pred_region
      _
    $region53: #{encoder_forward.5} parent=1 // pred_fallthru
      _
    %1389 = vsyncpa [#allocation5], 1

// kernel: encoder_forward.7
$region0: #{encoder_forward.7}
  #allocation0 [shape = 'u32[]', space=smem, size = 0x4, offset = 0x4, fixed_abs, tag = 'smem constant byte address 0x4 - core index']
  #allocation1 [shape = 'u32[72,128]{1,0:T(1,128)}', space=vmem, size = 0x9000, scoped, tag = 'internal scratch']
  #allocation2 [shape = 'f32[8,128]{1,0:T(8,128)}', space=vmem, size = 0x1000, scoped, tag = 'scratch operand']
  #allocation3 [shape = 'f32[8,128]{1,0:T(8,128)}', space=vmem, size = 0x1000, scoped, tag = 'scratch operand']
  %s0 = inlined_call_operand.vmem [shape: f32[8,8,512], index: 0, kind: input, shape index: {}]
  %s1 = inlined_call_operand.hbm [shape: f32[128,512], index: 1, kind: input, shape index: {}]
  %s2 = inlined_call_operand.vmem [shape: f32[8,128], index: 2, kind: input, shape index: {}]
  %s3 = inlined_call_operand.vmem [shape: f32[8,128], index: 3, kind: input, shape index: {}]
  %s4 = inlined_call_operand.hbm [shape: f32[8,8,128], index: 4, kind: output, shape index: {0}]
  %s5 = inlined_call_operand.vmem [shape: f32[8,128], index: 5, kind: output, shape index: {1}]
  %s6 = inlined_call_operand.vmem [shape: f32[8,128], index: 6, kind: output, shape index: {2}]
  %7 = xla_tuple %s4, %s5, %s6
  %s8 = sld [smem:[#allocation0]]
  $region54: #{encoder_forward.7} parent=0
    _
  %s10 = ssub.s32 1, %s8
  %s11 = scalar_select 0, %s10, %s8
  $region1: #{encoder_forward.7} parent=0
    #allocation4 [shape = 'u8[262144]{0}', space=vmem, size = 0x40000, scoped, tag = 'input window, operand 1, single buffered']
    #allocation5 [shape = 's32[1]{0}', space=sflag, size = 0x4, scoped, tag = 'scoped memory for encoder_forward.7']
    #allocation6 [shape = 's32[1]{0}', space=sflag, size = 0x4, scoped, tag = 'scoped memory for encoder_forward.7']
    #allocation7 [shape = 'u8[32768]{0}', space=vmem, size = 0x8000, scoped, tag = 'output window, operand 0, single buffered']
    %12 = vsyncpa [#allocation5], 0
    %13 = vsyncpa [#allocation6], 0
    // Predicated region
    $region2: #{encoder_forward.7} parent=1 // pred_check
      _
    $region3: #{encoder_forward.7} parent=1 // pred_check_branch
      %15 = sbr.rel (0) target = $region5
    $region4: #{encoder_forward.7} parent=1 // pred_region
      _
    $region5: #{encoder_forward.7} parent=1 // pred_fallthru
      _
    // Predicated region
    $region6: #{encoder_forward.7} parent=1 // pred_check
      _
    $region7: #{encoder_forward.7} parent=1 // pred_check_branch
      %17 = sbr.rel (0) target = $region9
    $region8: #{encoder_forward.7} parent=1 // pred_region
      %19 = vsyncadd [#allocation5], 0
      %s20 = sshll.u32 %s1, 4
      %s21 = int_to_ptr.hbm [resolvable:$true] %s20
      %s22 = sshll.u32 [#allocation4], 4
      %s23 = int_to_ptr.vmem [resolvable:$true] %s22
      %28 = dma.hbm_to_vmem [thread:$0]  %s21, 8192, %s23, [#allocation5], 512, 512, 32
    $region9: #{encoder_forward.7} parent=1 // pred_fallthru
      _
    // Predicated region
    $region10: #{encoder_forward.7} parent=1 // pred_check
      _
    $region11: #{encoder_forward.7} parent=1 // pred_check_branch
      %30 = sbr.rel (0) target = $region13
    $region12: #{encoder_forward.7} parent=1 // pred_region
      _
    $region13: #{encoder_forward.7} parent=1 // pred_fallthru
      _
    // Predicated region
    $region14: #{encoder_forward.7} parent=1 // pred_check
      _
    $region15: #{encoder_forward.7} parent=1 // pred_check_branch
      %32 = sbr.rel (0) target = $region17
    $region16: #{encoder_forward.7} parent=1 // pred_region
      _
    $region17: #{encoder_forward.7} parent=1 // pred_fallthru
      _
    // Predicated region
    $region18: #{encoder_forward.7} parent=1 // pred_check
      _
    $region19: #{encoder_forward.7} parent=1 // pred_check_branch
      %34 = sbr.rel (0) target = $region21
    $region20: #{encoder_forward.7} parent=1 // pred_region
      %36 = dma.done [#allocation5], 8192
    $region21: #{encoder_forward.7} parent=1 // pred_fallthru
      _
    %p37 = scmp.eq.s32.totalorder 0, 0
    // Predicated region
    $region22: #{encoder_forward.7} parent=1 // pred_check
      %p38 = pneg %p37
    $region23: #{encoder_forward.7} parent=1 // pred_check_branch
      %40 = sbr.rel (%p38) target = $region25
    $region24: #{encoder_forward.7} parent=1 // pred_region
      %v41 = vld [vmem:[%s2] sm:$0xff]
      %42 = vst [vmem:[#allocation2] sm:$0xff] %v41
      %v43 = vld [vmem:[%s3] sm:$0xff]
      %44 = vst [vmem:[#allocation3] sm:$0xff] %v43
    $region25: #{encoder_forward.7} parent=1 // pred_fallthru
      _
    %v45 = vld [vmem:[#allocation4] sm:$0xff]
    %v46 = vld [vmem:[#allocation4 + $0x8] sm:$0xff]
    %v47 = vld [vmem:[#allocation4 + $0x10] sm:$0xff]
    %v48 = vld [vmem:[#allocation4 + $0x18] sm:$0xff]
    %v49 = vld [vmem:[#allocation4 + $0x20] sm:$0xff]
    %v50 = vld [vmem:[#allocation4 + $0x28] sm:$0xff]
    %v51 = vld [vmem:[#allocation4 + $0x30] sm:$0xff]
    %v52 = vld [vmem:[#allocation4 + $0x38] sm:$0xff]
    %v53 = vld [vmem:[#allocation4 + $0x40] sm:$0xff]
    %v54 = vld [vmem:[#allocation4 + $0x48] sm:$0xff]
    %v55 = vld [vmem:[#allocation4 + $0x50] sm:$0xff]
    %v56 = vld [vmem:[#allocation4 + $0x58] sm:$0xff]
    %v57 = vld [vmem:[#allocation4 + $0x60] sm:$0xff]
    %v58 = vld [vmem:[#allocation4 + $0x68] sm:$0xff]
    %v59 = vld [vmem:[#allocation4 + $0x70] sm:$0xff]
    %v60 = vld [vmem:[#allocation4 + $0x78] sm:$0xff]
    %v61 = vld [vmem:[#allocation4 + $0x80] sm:$0xff]
    %v62 = vld [vmem:[#allocation4 + $0x88] sm:$0xff]
    %v63 = vld [vmem:[#allocation4 + $0x90] sm:$0xff]
    %v64 = vld [vmem:[#allocation4 + $0x98] sm:$0xff]
    %v65 = vld [vmem:[#allocation4 + $0xa0] sm:$0xff]
    %v66 = vld [vmem:[#allocation4 + $0xa8] sm:$0xff]
    %v67 = vld [vmem:[#allocation4 + $0xb0] sm:$0xff]
    %v68 = vld [vmem:[#allocation4 + $0xb8] sm:$0xff]
    %v69 = vld [vmem:[#allocation4 + $0xc0] sm:$0xff]
    %v70 = vld [vmem:[#allocation4 + $0xc8] sm:$0xff]
    %v71 = vld [vmem:[#allocation4 + $0xd0] sm:$0xff]
    %v72 = vld [vmem:[#allocation4 + $0xd8] sm:$0xff]
    %v73 = vld [vmem:[#allocation4 + $0xe0] sm:$0xff]
    %v74 = vld [vmem:[#allocation4 + $0xe8] sm:$0xff]
    %v75 = vld [vmem:[#allocation4 + $0xf0] sm:$0xff]
    %v76 = vld [vmem:[#allocation4 + $0xf8] sm:$0xff]
    %v77 = vld [vmem:[#allocation4 + $0x100] sm:$0xff]
    %v78 = vld [vmem:[#allocation4 + $0x108] sm:$0xff]
    %v79 = vld [vmem:[#allocation4 + $0x110] sm:$0xff]
    %v80 = vld [vmem:[#allocation4 + $0x118] sm:$0xff]
    %v81 = vld [vmem:[#allocation4 + $0x120] sm:$0xff]
    %v82 = vld [vmem:[#allocation4 + $0x128] sm:$0xff]
    %v83 = vld [vmem:[#allocation4 + $0x130] sm:$0xff]
    %v84 = vld [vmem:[#allocation4 + $0x138] sm:$0xff]
    %v85 = vld [vmem:[#allocation4 + $0x140] sm:$0xff]
    %v86 = vld [vmem:[#allocation4 + $0x148] sm:$0xff]
    %v87 = vld [vmem:[#allocation4 + $0x150] sm:$0xff]
    %v88 = vld [vmem:[#allocation4 + $0x158] sm:$0xff]
    %v89 = vld [vmem:[#allocation4 + $0x160] sm:$0xff]
    %v90 = vld [vmem:[#allocation4 + $0x168] sm:$0xff]
    %v91 = vld [vmem:[#allocation4 + $0x170] sm:$0xff]
    %v92 = vld [vmem:[#allocation4 + $0x178] sm:$0xff]
    %v93 = vld [vmem:[#allocation4 + $0x180] sm:$0xff]
    %v94 = vld [vmem:[#allocation4 + $0x188] sm:$0xff]
    %v95 = vld [vmem:[#allocation4 + $0x190] sm:$0xff]
    %v96 = vld [vmem:[#allocation4 + $0x198] sm:$0xff]
    %v97 = vld [vmem:[#allocation4 + $0x1a0] sm:$0xff]
    %v98 = vld [vmem:[#allocation4 + $0x1a8] sm:$0xff]
    %v99 = vld [vmem:[#allocation4 + $0x1b0] sm:$0xff]
    %v100 = vld [vmem:[#allocation4 + $0x1b8] sm:$0xff]
    %v101 = vld [vmem:[#allocation4 + $0x1c0] sm:$0xff]
    %v102 = vld [vmem:[#allocation4 + $0x1c8] sm:$0xff]
    %v103 = vld [vmem:[#allocation4 + $0x1d0] sm:$0xff]
    %v104 = vld [vmem:[#allocation4 + $0x1d8] sm:$0xff]
    %v105 = vld [vmem:[#allocation4 + $0x1e0] sm:$0xff]
    %v106 = vld [vmem:[#allocation4 + $0x1e8] sm:$0xff]
    %v107 = vld [vmem:[#allocation4 + $0x1f0] sm:$0xff]
    %v108 = vld [vmem:[#allocation4 + $0x1f8] sm:$0xff]
    %v109 = vld [vmem:[#allocation2] sm:$0xff]
    %v110 = vld [vmem:[#allocation3] sm:$0xff]
    %v111 = vld [vmem:[%s0] sm:$0xff]
    %v112 = vld [vmem:[%s0 + $0x8] sm:$0xff]
    %v113 = vld [vmem:[%s0 + $0x10] sm:$0xff]
    %v114 = vld [vmem:[%s0 + $0x18] sm:$0xff]
    %115 = vmatpush.msra.mxu0 %v105
    %116 = vmatpush.msra.mxu0 %v101
    %117 = vmatpush.msra.mxu0 %v97
    %118 = vmatpush.msra.mxu0 %v93
    %119 = vmatpush.msra.mxu0 %v89
    %120 = vmatpush.msra.mxu0 %v85
    %121 = vmatpush.msra.mxu0 %v81
    %122 = vmatpush.msra.mxu0 %v77
    %123 = vmatpush.msra.mxu0 %v73
    %124 = vmatpush.msra.mxu0 %v69
    %125 = vmatpush.msra.mxu0 %v65
    %126 = vmatpush.msra.mxu0 %v61
    %127 = vmatpush.msra.mxu0 %v57
    %128 = vmatpush.msra.mxu0 %v53
    %129 = vmatpush.msra.mxu0 %v49
    %130 = vmatpush.msra.mxu0 %v45
    %131 = vmatmul.f32.gmra.mxu0 %v109
    %v132 = vpop.f32.mrf.mxu0
    %v133 = vadd.f32 0.0, %v132
    %134 = vdwg.mxu0
    %135 = vmatpush.msra.mxu0 %v106
    %136 = vmatpush.msra.mxu0 %v102
    %137 = vmatpush.msra.mxu0 %v98
    %138 = vmatpush.msra.mxu0 %v94
    %139 = vmatpush.msra.mxu0 %v90
    %140 = vmatpush.msra.mxu0 %v86
    %141 = vmatpush.msra.mxu0 %v82
    %142 = vmatpush.msra.mxu0 %v78
    %143 = vmatpush.msra.mxu0 %v74
    %144 = vmatpush.msra.mxu0 %v70
    %145 = vmatpush.msra.mxu0 %v66
    %146 = vmatpush.msra.mxu0 %v62
    %147 = vmatpush.msra.mxu0 %v58
    %148 = vmatpush.msra.mxu0 %v54
    %149 = vmatpush.msra.mxu0 %v50
    %150 = vmatpush.msra.mxu0 %v46
    %151 = vmatmul.f32.gmra.mxu0 %v109
    %v152 = vpop.f32.mrf.mxu0
    %v153 = vadd.f32 0.0, %v152
    %154 = vdwg.mxu0
    %155 = vmatpush.msra.mxu0 %v107
    %156 = vmatpush.msra.mxu0 %v103
    %157 = vmatpush.msra.mxu0 %v99
    %158 = vmatpush.msra.mxu0 %v95
    %159 = vmatpush.msra.mxu0 %v91
    %160 = vmatpush.msra.mxu0 %v87
    %161 = vmatpush.msra.mxu0 %v83
    %162 = vmatpush.msra.mxu0 %v79
    %163 = vmatpush.msra.mxu0 %v75
    %164 = vmatpush.msra.mxu0 %v71
    %165 = vmatpush.msra.mxu0 %v67
    %166 = vmatpush.msra.mxu0 %v63
    %167 = vmatpush.msra.mxu0 %v59
    %168 = vmatpush.msra.mxu0 %v55
    %169 = vmatpush.msra.mxu0 %v51
    %170 = vmatpush.msra.mxu0 %v47
    %171 = vmatmul.f32.gmra.mxu0 %v109
    %v172 = vpop.f32.mrf.mxu0
    %v173 = vadd.f32 0.0, %v172
    %174 = vdwg.mxu0
    %175 = vmatpush.msra.mxu0 %v108
    %176 = vmatpush.msra.mxu0 %v104
    %177 = vmatpush.msra.mxu0 %v100
    %178 = vmatpush.msra.mxu0 %v96
    %179 = vmatpush.msra.mxu0 %v92
    %180 = vmatpush.msra.mxu0 %v88
    %181 = vmatpush.msra.mxu0 %v84
    %182 = vmatpush.msra.mxu0 %v80
    %183 = vmatpush.msra.mxu0 %v76
    %184 = vmatpush.msra.mxu0 %v72
    %185 = vmatpush.msra.mxu0 %v68
    %186 = vmatpush.msra.mxu0 %v64
    %187 = vmatpush.msra.mxu0 %v60
    %188 = vmatpush.msra.mxu0 %v56
    %189 = vmatpush.msra.mxu0 %v52
    %190 = vmatpush.msra.mxu0 %v48
    %191 = vmatmul.f32.gmra.mxu0 %v109
    %v192 = vpop.f32.mrf.mxu0
    %v193 = vadd.f32 0.0, %v192
    %194 = vdwg.mxu0
    %v195 = vadd.f32 %v111, %v133
    %v196 = vadd.f32 %v112, %v153
    %v197 = vadd.f32 %v113, %v173
    %v198 = vadd.f32 %v114, %v193
    %v199 = vxor.u32 %v195, 2147483648
    %v200 = vmul.f32 %v199, 1.442695
    %v201 = vpow.pop %v200
    %v202 = vadd.f32 %v201, 1.0
    %v203 = vrcp.pop %v202
    %v204 = vmul.f32 %v202, %v203
    %v205 = vsub.f32 1.0, %v204
    %v206 = vmul.f32 %v203, %v205
    %v207 = vadd.f32 %v203, %v206
    %vm208 = vweird.f32 %v202
    %vm209 = vweird.f32 %v203
    %vm210 = vmor %vm208, %vm209
    %v211 = vsel %vm210, %v203, %v207
    %v212 = vand.u32 2147483647, %v202
    %vm213 = vcmp.eq.f32.partialorder %v212, 8.507059e+37
    %v214 = vand.u32 %v202, 2147483648
    %v215 = vor.u32 1.1754944e-38, %v214
    %v216 = vsel %vm213, %v215, %v211
    %v217 = vmul.f32 1.0, %v216
    %v218 = vxor.u32 %v196, 2147483648
    %v219 = vmul.f32 %v218, 1.442695
    %v220 = vpow.pop %v219
    %v221 = vadd.f32 %v220, 1.0
    %v222 = vrcp.pop %v221
    %v223 = vmul.f32 %v221, %v222
    %v224 = vsub.f32 1.0, %v223
    %v225 = vmul.f32 %v222, %v224
    %v226 = vadd.f32 %v222, %v225
    %vm227 = vweird.f32 %v221
    %vm228 = vweird.f32 %v222
    %vm229 = vmor %vm227, %vm228
    %v230 = vsel %vm229, %v222, %v226
    %v231 = vand.u32 2147483647, %v221
    %vm232 = vcmp.eq.f32.partialorder %v231, 8.507059e+37
    %v233 = vand.u32 %v221, 2147483648
    %v234 = vor.u32 1.1754944e-38, %v233
    %v235 = vsel %vm232, %v234, %v230
    %v236 = vmul.f32 1.0, %v235
    %v237 = vtanh.pop %v197
    %v238 = vxor.u32 %v198, 2147483648
    %v239 = vmul.f32 %v238, 1.442695
    %v240 = vpow.pop %v239
    %v241 = vadd.f32 %v240, 1.0
    %v242 = vrcp.pop %v241
    %v243 = vmul.f32 %v241, %v242
    %v244 = vsub.f32 1.0, %v243
    %v245 = vmul.f32 %v242, %v244
    %v246 = vadd.f32 %v242, %v245
    %vm247 = vweird.f32 %v241
    %vm248 = vweird.f32 %v242
    %vm249 = vmor %vm247, %vm248
    %v250 = vsel %vm249, %v242, %v246
    %v251 = vand.u32 2147483647, %v241
    %vm252 = vcmp.eq.f32.partialorder %v251, 8.507059e+37
    %v253 = vand.u32 %v241, 2147483648
    %v254 = vor.u32 1.1754944e-38, %v253
    %v255 = vsel %vm252, %v254, %v250
    %v256 = vmul.f32 1.0, %v255
    %v257 = vmul.f32 %v236, %v110
    %v258 = vmul.f32 %v217, %v237
    %v259 = vadd.f32 %v257, %v258
    %v260 = vtanh.pop %v259
    %v261 = vmul.f32 %v256, %v260
    %262 = vst [vmem:[#allocation2] sm:$0xff] %v261
    %263 = vst [vmem:[#allocation3] sm:$0xff] %v259
    %264 = vst [vmem:[#allocation7] sm:$0xff] %v261
    %v265 = vld [vmem:[#allocation2] sm:$0xff]
    %v266 = vld [vmem:[#allocation3] sm:$0xff]
    %s267 = scalar_lea.vmem %s0, 32
    %v268 = vld [vmem:[%s267] sm:$0xff]
    %v269 = vld [vmem:[%s267 + $0x8] sm:$0xff]
    %v270 = vld [vmem:[%s267 + $0x10] sm:$0xff]
    %v271 = vld [vmem:[%s267 + $0x18] sm:$0xff]
    %272 = vmatpush.msra.mxu0 %v105
    %273 = vmatpush.msra.mxu0 %v101
    %274 = vmatpush.msra.mxu0 %v97
    %275 = vmatpush.msra.mxu0 %v93
    %276 = vmatpush.msra.mxu0 %v89
    %277 = vmatpush.msra.mxu0 %v85
    %278 = vmatpush.msra.mxu0 %v81
    %279 = vmatpush.msra.mxu0 %v77
    %280 = vmatpush.msra.mxu0 %v73
    %281 = vmatpush.msra.mxu0 %v69
    %282 = vmatpush.msra.mxu0 %v65
    %283 = vmatpush.msra.mxu0 %v61
    %284 = vmatpush.msra.mxu0 %v57
    %285 = vmatpush.msra.mxu0 %v53
    %286 = vmatpush.msra.mxu0 %v49
    %287 = vmatpush.msra.mxu0 %v45
    %288 = vmatmul.f32.gmra.mxu0 %v265
    %v289 = vpop.f32.mrf.mxu0
    %v290 = vadd.f32 0.0, %v289
    %291 = vdwg.mxu0
    %292 = vmatpush.msra.mxu0 %v106
    %293 = vmatpush.msra.mxu0 %v102
    %294 = vmatpush.msra.mxu0 %v98
    %295 = vmatpush.msra.mxu0 %v94
    %296 = vmatpush.msra.mxu0 %v90
    %297 = vmatpush.msra.mxu0 %v86
    %298 = vmatpush.msra.mxu0 %v82
    %299 = vmatpush.msra.mxu0 %v78
    %300 = vmatpush.msra.mxu0 %v74
    %301 = vmatpush.msra.mxu0 %v70
    %302 = vmatpush.msra.mxu0 %v66
    %303 = vmatpush.msra.mxu0 %v62
    %304 = vmatpush.msra.mxu0 %v58
    %305 = vmatpush.msra.mxu0 %v54
    %306 = vmatpush.msra.mxu0 %v50
    %307 = vmatpush.msra.mxu0 %v46
    %308 = vmatmul.f32.gmra.mxu0 %v265
    %v309 = vpop.f32.mrf.mxu0
    %v310 = vadd.f32 0.0, %v309
    %311 = vdwg.mxu0
    %312 = vmatpush.msra.mxu0 %v107
    %313 = vmatpush.msra.mxu0 %v103
    %314 = vmatpush.msra.mxu0 %v99
    %315 = vmatpush.msra.mxu0 %v95
    %316 = vmatpush.msra.mxu0 %v91
    %317 = vmatpush.msra.mxu0 %v87
    %318 = vmatpush.msra.mxu0 %v83
    %319 = vmatpush.msra.mxu0 %v79
    %320 = vmatpush.msra.mxu0 %v75
    %321 = vmatpush.msra.mxu0 %v71
    %322 = vmatpush.msra.mxu0 %v67
    %323 = vmatpush.msra.mxu0 %v63
    %324 = vmatpush.msra.mxu0 %v59
    %325 = vmatpush.msra.mxu0 %v55
    %326 = vmatpush.msra.mxu0 %v51
    %327 = vmatpush.msra.mxu0 %v47
    %328 = vmatmul.f32.gmra.mxu0 %v265
    %v329 = vpop.f32.mrf.mxu0
    %v330 = vadd.f32 0.0, %v329
    %331 = vdwg.mxu0
    %332 = vmatpush.msra.mxu0 %v108
    %333 = vmatpush.msra.mxu0 %v104
    %334 = vmatpush.msra.mxu0 %v100
    %335 = vmatpush.msra.mxu0 %v96
    %336 = vmatpush.msra.mxu0 %v92
    %337 = vmatpush.msra.mxu0 %v88
    %338 = vmatpush.msra.mxu0 %v84
    %339 = vmatpush.msra.mxu0 %v80
    %340 = vmatpush.msra.mxu0 %v76
    %341 = vmatpush.msra.mxu0 %v72
    %342 = vmatpush.msra.mxu0 %v68
    %343 = vmatpush.msra.mxu0 %v64
    %344 = vmatpush.msra.mxu0 %v60
    %345 = vmatpush.msra.mxu0 %v56
    %346 = vmatpush.msra.mxu0 %v52
    %347 = vmatpush.msra.mxu0 %v48
    %348 = vmatmul.f32.gmra.mxu0 %v265
    %v349 = vpop.f32.mrf.mxu0
    %v350 = vadd.f32 0.0, %v349
    %351 = vdwg.mxu0
    %v352 = vadd.f32 %v268, %v290
    %v353 = vadd.f32 %v269, %v310
    %v354 = vadd.f32 %v270, %v330
    %v355 = vadd.f32 %v271, %v350
    %v356 = vxor.u32 %v352, 2147483648
    %v357 = vmul.f32 %v356, 1.442695
    %v358 = vpow.pop %v357
    %v359 = vadd.f32 %v358, 1.0
    %v360 = vrcp.pop %v359
    %v361 = vmul.f32 %v359, %v360
    %v362 = vsub.f32 1.0, %v361
    %v363 = vmul.f32 %v360, %v362
    %v364 = vadd.f32 %v360, %v363
    %vm365 = vweird.f32 %v359
    %vm366 = vweird.f32 %v360
    %vm367 = vmor %vm365, %vm366
    %v368 = vsel %vm367, %v360, %v364
    %v369 = vand.u32 2147483647, %v359
    %vm370 = vcmp.eq.f32.partialorder %v369, 8.507059e+37
    %v371 = vand.u32 %v359, 2147483648
    %v372 = vor.u32 1.1754944e-38, %v371
    %v373 = vsel %vm370, %v372, %v368
    %v374 = vmul.f32 1.0, %v373
    %v375 = vxor.u32 %v353, 2147483648
    %v376 = vmul.f32 %v375, 1.442695
    %v377 = vpow.pop %v376
    %v378 = vadd.f32 %v377, 1.0
    %v379 = vrcp.pop %v378
    %v380 = vmul.f32 %v378, %v379
    %v381 = vsub.f32 1.0, %v380
    %v382 = vmul.f32 %v379, %v381
    %v383 = vadd.f32 %v379, %v382
    %vm384 = vweird.f32 %v378
    %vm385 = vweird.f32 %v379
    %vm386 = vmor %vm384, %vm385
    %v387 = vsel %vm386, %v379, %v383
    %v388 = vand.u32 2147483647, %v378
    %vm389 = vcmp.eq.f32.partialorder %v388, 8.507059e+37
    %v390 = vand.u32 %v378, 2147483648
    %v391 = vor.u32 1.1754944e-38, %v390
    %v392 = vsel %vm389, %v391, %v387
    %v393 = vmul.f32 1.0, %v392
    %v394 = vtanh.pop %v354
    %v395 = vxor.u32 %v355, 2147483648
    %v396 = vmul.f32 %v395, 1.442695
    %v397 = vpow.pop %v396
    %v398 = vadd.f32 %v397, 1.0
    %v399 = vrcp.pop %v398
    %v400 = vmul.f32 %v398, %v399
    %v401 = vsub.f32 1.0, %v400
    %v402 = vmul.f32 %v399, %v401
    %v403 = vadd.f32 %v399, %v402
    %vm404 = vweird.f32 %v398
    %vm405 = vweird.f32 %v399
    %vm406 = vmor %vm404, %vm405
    %v407 = vsel %vm406, %v399, %v403
    %v408 = vand.u32 2147483647, %v398
    %vm409 = vcmp.eq.f32.partialorder %v408, 8.507059e+37
    %v410 = vand.u32 %v398, 2147483648
    %v411 = vor.u32 1.1754944e-38, %v410
    %v412 = vsel %vm409, %v411, %v407
    %v413 = vmul.f32 1.0, %v412
    %v414 = vmul.f32 %v393, %v266
    %v415 = vmul.f32 %v374, %v394
    %v416 = vadd.f32 %v414, %v415
    %v417 = vtanh.pop %v416
    %v418 = vmul.f32 %v413, %v417
    %419 = vst [vmem:[#allocation2] sm:$0xff] %v418
    %420 = vst [vmem:[#allocation3] sm:$0xff] %v416
    %s421 = scalar_lea.vmem [#allocation7], 8
    %422 = vst [vmem:[%s421] sm:$0xff] %v418
    %v423 = vld [vmem:[#allocation2] sm:$0xff]
    %v424 = vld [vmem:[#allocation3] sm:$0xff]
    %s425 = scalar_lea.vmem %s0, 64
    %v426 = vld [vmem:[%s425] sm:$0xff]
    %v427 = vld [vmem:[%s425 + $0x8] sm:$0xff]
    %v428 = vld [vmem:[%s425 + $0x10] sm:$0xff]
    %v429 = vld [vmem:[%s425 + $0x18] sm:$0xff]
    %430 = vmatpush.msra.mxu0 %v105
    %431 = vmatpush.msra.mxu0 %v101
    %432 = vmatpush.msra.mxu0 %v97
    %433 = vmatpush.msra.mxu0 %v93
    %434 = vmatpush.msra.mxu0 %v89
    %435 = vmatpush.msra.mxu0 %v85
    %436 = vmatpush.msra.mxu0 %v81
    %437 = vmatpush.msra.mxu0 %v77
    %438 = vmatpush.msra.mxu0 %v73
    %439 = vmatpush.msra.mxu0 %v69
    %440 = vmatpush.msra.mxu0 %v65
    %441 = vmatpush.msra.mxu0 %v61
    %442 = vmatpush.msra.mxu0 %v57
    %443 = vmatpush.msra.mxu0 %v53
    %444 = vmatpush.msra.mxu0 %v49
    %445 = vmatpush.msra.mxu0 %v45
    %446 = vmatmul.f32.gmra.mxu0 %v423
    %v447 = vpop.f32.mrf.mxu0
    %v448 = vadd.f32 0.0, %v447
    %449 = vdwg.mxu0
    %450 = vmatpush.msra.mxu0 %v106
    %451 = vmatpush.msra.mxu0 %v102
    %452 = vmatpush.msra.mxu0 %v98
    %453 = vmatpush.msra.mxu0 %v94
    %454 = vmatpush.msra.mxu0 %v90
    %455 = vmatpush.msra.mxu0 %v86
    %456 = vmatpush.msra.mxu0 %v82
    %457 = vmatpush.msra.mxu0 %v78
    %458 = vmatpush.msra.mxu0 %v74
    %459 = vmatpush.msra.mxu0 %v70
    %460 = vmatpush.msra.mxu0 %v66
    %461 = vmatpush.msra.mxu0 %v62
    %462 = vmatpush.msra.mxu0 %v58
    %463 = vmatpush.msra.mxu0 %v54
    %464 = vmatpush.msra.mxu0 %v50
    %465 = vmatpush.msra.mxu0 %v46
    %466 = vmatmul.f32.gmra.mxu0 %v423
    %v467 = vpop.f32.mrf.mxu0
    %v468 = vadd.f32 0.0, %v467
    %469 = vdwg.mxu0
    %470 = vmatpush.msra.mxu0 %v107
    %471 = vmatpush.msra.mxu0 %v103
    %472 = vmatpush.msra.mxu0 %v99
    %473 = vmatpush.msra.mxu0 %v95
    %474 = vmatpush.msra.mxu0 %v91
    %475 = vmatpush.msra.mxu0 %v87
    %476 = vmatpush.msra.mxu0 %v83
    %477 = vmatpush.msra.mxu0 %v79
    %478 = vmatpush.msra.mxu0 %v75
    %479 = vmatpush.msra.mxu0 %v71
    %480 = vmatpush.msra.mxu0 %v67
    %481 = vmatpush.msra.mxu0 %v63
    %482 = vmatpush.msra.mxu0 %v59
    %483 = vmatpush.msra.mxu0 %v55
    %484 = vmatpush.msra.mxu0 %v51
    %485 = vmatpush.msra.mxu0 %v47
    %486 = vmatmul.f32.gmra.mxu0 %v423
    %v487 = vpop.f32.mrf.mxu0
    %v488 = vadd.f32 0.0, %v487
    %489 = vdwg.mxu0
    %490 = vmatpush.msra.mxu0 %v108
    %491 = vmatpush.msra.mxu0 %v104
    %492 = vmatpush.msra.mxu0 %v100
    %493 = vmatpush.msra.mxu0 %v96
    %494 = vmatpush.msra.mxu0 %v92
    %495 = vmatpush.msra.mxu0 %v88
    %496 = vmatpush.msra.mxu0 %v84
    %497 = vmatpush.msra.mxu0 %v80
    %498 = vmatpush.msra.mxu0 %v76
    %499 = vmatpush.msra.mxu0 %v72
    %500 = vmatpush.msra.mxu0 %v68
    %501 = vmatpush.msra.mxu0 %v64
    %502 = vmatpush.msra.mxu0 %v60
    %503 = vmatpush.msra.mxu0 %v56
    %504 = vmatpush.msra.mxu0 %v52
    %505 = vmatpush.msra.mxu0 %v48
    %506 = vmatmul.f32.gmra.mxu0 %v423
    %v507 = vpop.f32.mrf.mxu0
    %v508 = vadd.f32 0.0, %v507
    %509 = vdwg.mxu0
    %v510 = vadd.f32 %v426, %v448
    %v511 = vadd.f32 %v427, %v468
    %v512 = vadd.f32 %v428, %v488
    %v513 = vadd.f32 %v429, %v508
    %v514 = vxor.u32 %v510, 2147483648
    %v515 = vmul.f32 %v514, 1.442695
    %v516 = vpow.pop %v515
    %v517 = vadd.f32 %v516, 1.0
    %v518 = vrcp.pop %v517
    %v519 = vmul.f32 %v517, %v518
    %v520 = vsub.f32 1.0, %v519
    %v521 = vmul.f32 %v518, %v520
    %v522 = vadd.f32 %v518, %v521
    %vm523 = vweird.f32 %v517
    %vm524 = vweird.f32 %v518
    %vm525 = vmor %vm523, %vm524
    %v526 = vsel %vm525, %v518, %v522
    %v527 = vand.u32 2147483647, %v517
    %vm528 = vcmp.eq.f32.partialorder %v527, 8.507059e+37
    %v529 = vand.u32 %v517, 2147483648
    %v530 = vor.u32 1.1754944e-38, %v529
    %v531 = vsel %vm528, %v530, %v526
    %v532 = vmul.f32 1.0, %v531
    %v533 = vxor.u32 %v511, 2147483648
    %v534 = vmul.f32 %v533, 1.442695
    %v535 = vpow.pop %v534
    %v536 = vadd.f32 %v535, 1.0
    %v537 = vrcp.pop %v536
    %v538 = vmul.f32 %v536, %v537
    %v539 = vsub.f32 1.0, %v538
    %v540 = vmul.f32 %v537, %v539
    %v541 = vadd.f32 %v537, %v540
    %vm542 = vweird.f32 %v536
    %vm543 = vweird.f32 %v537
    %vm544 = vmor %vm542, %vm543
    %v545 = vsel %vm544, %v537, %v541
    %v546 = vand.u32 2147483647, %v536
    %vm547 = vcmp.eq.f32.partialorder %v546, 8.507059e+37
    %v548 = vand.u32 %v536, 2147483648
    %v549 = vor.u32 1.1754944e-38, %v548
    %v550 = vsel %vm547, %v549, %v545
    %v551 = vmul.f32 1.0, %v550
    %v552 = vtanh.pop %v512
    %v553 = vxor.u32 %v513, 2147483648
    %v554 = vmul.f32 %v553, 1.442695
    %v555 = vpow.pop %v554
    %v556 = vadd.f32 %v555, 1.0
    %v557 = vrcp.pop %v556
    %v558 = vmul.f32 %v556, %v557
    %v559 = vsub.f32 1.0, %v558
    %v560 = vmul.f32 %v557, %v559
    %v561 = vadd.f32 %v557, %v560
    %vm562 = vweird.f32 %v556
    %vm563 = vweird.f32 %v557
    %vm564 = vmor %vm562, %vm563
    %v565 = vsel %vm564, %v557, %v561
    %v566 = vand.u32 2147483647, %v556
    %vm567 = vcmp.eq.f32.partialorder %v566, 8.507059e+37
    %v568 = vand.u32 %v556, 2147483648
    %v569 = vor.u32 1.1754944e-38, %v568
    %v570 = vsel %vm567, %v569, %v565
    %v571 = vmul.f32 1.0, %v570
    %v572 = vmul.f32 %v551, %v424
    %v573 = vmul.f32 %v532, %v552
    %v574 = vadd.f32 %v572, %v573
    %v575 = vtanh.pop %v574
    %v576 = vmul.f32 %v571, %v575
    %577 = vst [vmem:[#allocation2] sm:$0xff] %v576
    %578 = vst [vmem:[#allocation3] sm:$0xff] %v574
    %s579 = scalar_lea.vmem [#allocation7], 16
    %580 = vst [vmem:[%s579] sm:$0xff] %v576
    %v581 = vld [vmem:[#allocation2] sm:$0xff]
    %v582 = vld [vmem:[#allocation3] sm:$0xff]
    %s583 = scalar_lea.vmem %s0, 96
    %v584 = vld [vmem:[%s583] sm:$0xff]
    %v585 = vld [vmem:[%s583 + $0x8] sm:$0xff]
    %v586 = vld [vmem:[%s583 + $0x10] sm:$0xff]
    %v587 = vld [vmem:[%s583 + $0x18] sm:$0xff]
    %588 = vmatpush.msra.mxu0 %v105
    %589 = vmatpush.msra.mxu0 %v101
    %590 = vmatpush.msra.mxu0 %v97
    %591 = vmatpush.msra.mxu0 %v93
    %592 = vmatpush.msra.mxu0 %v89
    %593 = vmatpush.msra.mxu0 %v85
    %594 = vmatpush.msra.mxu0 %v81
    %595 = vmatpush.msra.mxu0 %v77
    %596 = vmatpush.msra.mxu0 %v73
    %597 = vmatpush.msra.mxu0 %v69
    %598 = vmatpush.msra.mxu0 %v65
    %599 = vmatpush.msra.mxu0 %v61
    %600 = vmatpush.msra.mxu0 %v57
    %601 = vmatpush.msra.mxu0 %v53
    %602 = vmatpush.msra.mxu0 %v49
    %603 = vmatpush.msra.mxu0 %v45
    %604 = vmatmul.f32.gmra.mxu0 %v581
    %v605 = vpop.f32.mrf.mxu0
    %v606 = vadd.f32 0.0, %v605
    %607 = vdwg.mxu0
    %608 = vmatpush.msra.mxu0 %v106
    %609 = vmatpush.msra.mxu0 %v102
    %610 = vmatpush.msra.mxu0 %v98
    %611 = vmatpush.msra.mxu0 %v94
    %612 = vmatpush.msra.mxu0 %v90
    %613 = vmatpush.msra.mxu0 %v86
    %614 = vmatpush.msra.mxu0 %v82
    %615 = vmatpush.msra.mxu0 %v78
    %616 = vmatpush.msra.mxu0 %v74
    %617 = vmatpush.msra.mxu0 %v70
    %618 = vmatpush.msra.mxu0 %v66
    %619 = vmatpush.msra.mxu0 %v62
    %620 = vmatpush.msra.mxu0 %v58
    %621 = vmatpush.msra.mxu0 %v54
    %622 = vmatpush.msra.mxu0 %v50
    %623 = vmatpush.msra.mxu0 %v46
    %624 = vmatmul.f32.gmra.mxu0 %v581
    %v625 = vpop.f32.mrf.mxu0
    %v626 = vadd.f32 0.0, %v625
    %627 = vdwg.mxu0
    %628 = vmatpush.msra.mxu0 %v107
    %629 = vmatpush.msra.mxu0 %v103
    %630 = vmatpush.msra.mxu0 %v99
    %631 = vmatpush.msra.mxu0 %v95
    %632 = vmatpush.msra.mxu0 %v91
    %633 = vmatpush.msra.mxu0 %v87
    %634 = vmatpush.msra.mxu0 %v83
    %635 = vmatpush.msra.mxu0 %v79
    %636 = vmatpush.msra.mxu0 %v75
    %637 = vmatpush.msra.mxu0 %v71
    %638 = vmatpush.msra.mxu0 %v67
    %639 = vmatpush.msra.mxu0 %v63
    %640 = vmatpush.msra.mxu0 %v59
    %641 = vmatpush.msra.mxu0 %v55
    %642 = vmatpush.msra.mxu0 %v51
    %643 = vmatpush.msra.mxu0 %v47
    %644 = vmatmul.f32.gmra.mxu0 %v581
    %v645 = vpop.f32.mrf.mxu0
    %v646 = vadd.f32 0.0, %v645
    %647 = vdwg.mxu0
    %648 = vmatpush.msra.mxu0 %v108
    %649 = vmatpush.msra.mxu0 %v104
    %650 = vmatpush.msra.mxu0 %v100
    %651 = vmatpush.msra.mxu0 %v96
    %652 = vmatpush.msra.mxu0 %v92
    %653 = vmatpush.msra.mxu0 %v88
    %654 = vmatpush.msra.mxu0 %v84
    %655 = vmatpush.msra.mxu0 %v80
    %656 = vmatpush.msra.mxu0 %v76
    %657 = vmatpush.msra.mxu0 %v72
    %658 = vmatpush.msra.mxu0 %v68
    %659 = vmatpush.msra.mxu0 %v64
    %660 = vmatpush.msra.mxu0 %v60
    %661 = vmatpush.msra.mxu0 %v56
    %662 = vmatpush.msra.mxu0 %v52
    %663 = vmatpush.msra.mxu0 %v48
    %664 = vmatmul.f32.gmra.mxu0 %v581
    %v665 = vpop.f32.mrf.mxu0
    %v666 = vadd.f32 0.0, %v665
    %667 = vdwg.mxu0
    %v668 = vadd.f32 %v584, %v606
    %v669 = vadd.f32 %v585, %v626
    %v670 = vadd.f32 %v586, %v646
    %v671 = vadd.f32 %v587, %v666
    %v672 = vxor.u32 %v668, 2147483648
    %v673 = vmul.f32 %v672, 1.442695
    %v674 = vpow.pop %v673
    %v675 = vadd.f32 %v674, 1.0
    %v676 = vrcp.pop %v675
    %v677 = vmul.f32 %v675, %v676
    %v678 = vsub.f32 1.0, %v677
    %v679 = vmul.f32 %v676, %v678
    %v680 = vadd.f32 %v676, %v679
    %vm681 = vweird.f32 %v675
    %vm682 = vweird.f32 %v676
    %vm683 = vmor %vm681, %vm682
    %v684 = vsel %vm683, %v676, %v680
    %v685 = vand.u32 2147483647, %v675
    %vm686 = vcmp.eq.f32.partialorder %v685, 8.507059e+37
    %v687 = vand.u32 %v675, 2147483648
    %v688 = vor.u32 1.1754944e-38, %v687
    %v689 = vsel %vm686, %v688, %v684
    %v690 = vmul.f32 1.0, %v689
    %v691 = vxor.u32 %v669, 2147483648
    %v692 = vmul.f32 %v691, 1.442695
    %v693 = vpow.pop %v692
    %v694 = vadd.f32 %v693, 1.0
    %v695 = vrcp.pop %v694
    %v696 = vmul.f32 %v694, %v695
    %v697 = vsub.f32 1.0, %v696
    %v698 = vmul.f32 %v695, %v697
    %v699 = vadd.f32 %v695, %v698
    %vm700 = vweird.f32 %v694
    %vm701 = vweird.f32 %v695
    %vm702 = vmor %vm700, %vm701
    %v703 = vsel %vm702, %v695, %v699
    %v704 = vand.u32 2147483647, %v694
    %vm705 = vcmp.eq.f32.partialorder %v704, 8.507059e+37
    %v706 = vand.u32 %v694, 2147483648
    %v707 = vor.u32 1.1754944e-38, %v706
    %v708 = vsel %vm705, %v707, %v703
    %v709 = vmul.f32 1.0, %v708
    %v710 = vtanh.pop %v670
    %v711 = vxor.u32 %v671, 2147483648
    %v712 = vmul.f32 %v711, 1.442695
    %v713 = vpow.pop %v712
    %v714 = vadd.f32 %v713, 1.0
    %v715 = vrcp.pop %v714
    %v716 = vmul.f32 %v714, %v715
    %v717 = vsub.f32 1.0, %v716
    %v718 = vmul.f32 %v715, %v717
    %v719 = vadd.f32 %v715, %v718
    %vm720 = vweird.f32 %v714
    %vm721 = vweird.f32 %v715
    %vm722 = vmor %vm720, %vm721
    %v723 = vsel %vm722, %v715, %v719
    %v724 = vand.u32 2147483647, %v714
    %vm725 = vcmp.eq.f32.partialorder %v724, 8.507059e+37
    %v726 = vand.u32 %v714, 2147483648
    %v727 = vor.u32 1.1754944e-38, %v726
    %v728 = vsel %vm725, %v727, %v723
    %v729 = vmul.f32 1.0, %v728
    %v730 = vmul.f32 %v709, %v582
    %v731 = vmul.f32 %v690, %v710
    %v732 = vadd.f32 %v730, %v731
    %v733 = vtanh.pop %v732
    %v734 = vmul.f32 %v729, %v733
    %735 = vst [vmem:[#allocation2] sm:$0xff] %v734
    %736 = vst [vmem:[#allocation3] sm:$0xff] %v732
    %s737 = scalar_lea.vmem [#allocation7], 24
    %738 = vst [vmem:[%s737] sm:$0xff] %v734
    %v739 = vld [vmem:[#allocation2] sm:$0xff]
    %v740 = vld [vmem:[#allocation3] sm:$0xff]
    %s741 = scalar_lea.vmem %s0, 128
    %v742 = vld [vmem:[%s741] sm:$0xff]
    %v743 = vld [vmem:[%s741 + $0x8] sm:$0xff]
    %v744 = vld [vmem:[%s741 + $0x10] sm:$0xff]
    %v745 = vld [vmem:[%s741 + $0x18] sm:$0xff]
    %746 = vmatpush.msra.mxu0 %v105
    %747 = vmatpush.msra.mxu0 %v101
    %748 = vmatpush.msra.mxu0 %v97
    %749 = vmatpush.msra.mxu0 %v93
    %750 = vmatpush.msra.mxu0 %v89
    %751 = vmatpush.msra.mxu0 %v85
    %752 = vmatpush.msra.mxu0 %v81
    %753 = vmatpush.msra.mxu0 %v77
    %754 = vmatpush.msra.mxu0 %v73
    %755 = vmatpush.msra.mxu0 %v69
    %756 = vmatpush.msra.mxu0 %v65
    %757 = vmatpush.msra.mxu0 %v61
    %758 = vmatpush.msra.mxu0 %v57
    %759 = vmatpush.msra.mxu0 %v53
    %760 = vmatpush.msra.mxu0 %v49
    %761 = vmatpush.msra.mxu0 %v45
    %762 = vmatmul.f32.gmra.mxu0 %v739
    %v763 = vpop.f32.mrf.mxu0
    %v764 = vadd.f32 0.0, %v763
    %765 = vdwg.mxu0
    %766 = vmatpush.msra.mxu0 %v106
    %767 = vmatpush.msra.mxu0 %v102
    %768 = vmatpush.msra.mxu0 %v98
    %769 = vmatpush.msra.mxu0 %v94
    %770 = vmatpush.msra.mxu0 %v90
    %771 = vmatpush.msra.mxu0 %v86
    %772 = vmatpush.msra.mxu0 %v82
    %773 = vmatpush.msra.mxu0 %v78
    %774 = vmatpush.msra.mxu0 %v74
    %775 = vmatpush.msra.mxu0 %v70
    %776 = vmatpush.msra.mxu0 %v66
    %777 = vmatpush.msra.mxu0 %v62
    %778 = vmatpush.msra.mxu0 %v58
    %779 = vmatpush.msra.mxu0 %v54
    %780 = vmatpush.msra.mxu0 %v50
    %781 = vmatpush.msra.mxu0 %v46
    %782 = vmatmul.f32.gmra.mxu0 %v739
    %v783 = vpop.f32.mrf.mxu0
    %v784 = vadd.f32 0.0, %v783
    %785 = vdwg.mxu0
    %786 = vmatpush.msra.mxu0 %v107
    %787 = vmatpush.msra.mxu0 %v103
    %788 = vmatpush.msra.mxu0 %v99
    %789 = vmatpush.msra.mxu0 %v95
    %790 = vmatpush.msra.mxu0 %v91
    %791 = vmatpush.msra.mxu0 %v87
    %792 = vmatpush.msra.mxu0 %v83
    %793 = vmatpush.msra.mxu0 %v79
    %794 = vmatpush.msra.mxu0 %v75
    %795 = vmatpush.msra.mxu0 %v71
    %796 = vmatpush.msra.mxu0 %v67
    %797 = vmatpush.msra.mxu0 %v63
    %798 = vmatpush.msra.mxu0 %v59
    %799 = vmatpush.msra.mxu0 %v55
    %800 = vmatpush.msra.mxu0 %v51
    %801 = vmatpush.msra.mxu0 %v47
    %802 = vmatmul.f32.gmra.mxu0 %v739
    %v803 = vpop.f32.mrf.mxu0
    %v804 = vadd.f32 0.0, %v803
    %805 = vdwg.mxu0
    %806 = vmatpush.msra.mxu0 %v108
    %807 = vmatpush.msra.mxu0 %v104
    %808 = vmatpush.msra.mxu0 %v100
    %809 = vmatpush.msra.mxu0 %v96
    %810 = vmatpush.msra.mxu0 %v92
    %811 = vmatpush.msra.mxu0 %v88
    %812 = vmatpush.msra.mxu0 %v84
    %813 = vmatpush.msra.mxu0 %v80
    %814 = vmatpush.msra.mxu0 %v76
    %815 = vmatpush.msra.mxu0 %v72
    %816 = vmatpush.msra.mxu0 %v68
    %817 = vmatpush.msra.mxu0 %v64
    %818 = vmatpush.msra.mxu0 %v60
    %819 = vmatpush.msra.mxu0 %v56
    %820 = vmatpush.msra.mxu0 %v52
    %821 = vmatpush.msra.mxu0 %v48
    %822 = vmatmul.f32.gmra.mxu0 %v739
    %v823 = vpop.f32.mrf.mxu0
    %v824 = vadd.f32 0.0, %v823
    %825 = vdwg.mxu0
    %v826 = vadd.f32 %v742, %v764
    %v827 = vadd.f32 %v743, %v784
    %v828 = vadd.f32 %v744, %v804
    %v829 = vadd.f32 %v745, %v824
    %v830 = vxor.u32 %v826, 2147483648
    %v831 = vmul.f32 %v830, 1.442695
    %v832 = vpow.pop %v831
    %v833 = vadd.f32 %v832, 1.0
    %v834 = vrcp.pop %v833
    %v835 = vmul.f32 %v833, %v834
    %v836 = vsub.f32 1.0, %v835
    %v837 = vmul.f32 %v834, %v836
    %v838 = vadd.f32 %v834, %v837
    %vm839 = vweird.f32 %v833
    %vm840 = vweird.f32 %v834
    %vm841 = vmor %vm839, %vm840
    %v842 = vsel %vm841, %v834, %v838
    %v843 = vand.u32 2147483647, %v833
    %vm844 = vcmp.eq.f32.partialorder %v843, 8.507059e+37
    %v845 = vand.u32 %v833, 2147483648
    %v846 = vor.u32 1.1754944e-38, %v845
    %v847 = vsel %vm844, %v846, %v842
    %v848 = vmul.f32 1.0, %v847
    %v849 = vxor.u32 %v827, 2147483648
    %v850 = vmul.f32 %v849, 1.442695
    %v851 = vpow.pop %v850
    %v852 = vadd.f32 %v851, 1.0
    %v853 = vrcp.pop %v852
    %v854 = vmul.f32 %v852, %v853
    %v855 = vsub.f32 1.0, %v854
    %v856 = vmul.f32 %v853, %v855
    %v857 = vadd.f32 %v853, %v856
    %vm858 = vweird.f32 %v852
    %vm859 = vweird.f32 %v853
    %vm860 = vmor %vm858, %vm859
    %v861 = vsel %vm860, %v853, %v857
    %v862 = vand.u32 2147483647, %v852
    %vm863 = vcmp.eq.f32.partialorder %v862, 8.507059e+37
    %v864 = vand.u32 %v852, 2147483648
    %v865 = vor.u32 1.1754944e-38, %v864
    %v866 = vsel %vm863, %v865, %v861
    %v867 = vmul.f32 1.0, %v866
    %v868 = vtanh.pop %v828
    %v869 = vxor.u32 %v829, 2147483648
    %v870 = vmul.f32 %v869, 1.442695
    %v871 = vpow.pop %v870
    %v872 = vadd.f32 %v871, 1.0
    %v873 = vrcp.pop %v872
    %v874 = vmul.f32 %v872, %v873
    %v875 = vsub.f32 1.0, %v874
    %v876 = vmul.f32 %v873, %v875
    %v877 = vadd.f32 %v873, %v876
    %vm878 = vweird.f32 %v872
    %vm879 = vweird.f32 %v873
    %vm880 = vmor %vm878, %vm879
    %v881 = vsel %vm880, %v873, %v877
    %v882 = vand.u32 2147483647, %v872
    %vm883 = vcmp.eq.f32.partialorder %v882, 8.507059e+37
    %v884 = vand.u32 %v872, 2147483648
    %v885 = vor.u32 1.1754944e-38, %v884
    %v886 = vsel %vm883, %v885, %v881
    %v887 = vmul.f32 1.0, %v886
    %v888 = vmul.f32 %v867, %v740
    %v889 = vmul.f32 %v848, %v868
    %v890 = vadd.f32 %v888, %v889
    %v891 = vtanh.pop %v890
    %v892 = vmul.f32 %v887, %v891
    %893 = vst [vmem:[#allocation2] sm:$0xff] %v892
    %894 = vst [vmem:[#allocation3] sm:$0xff] %v890
    %s895 = scalar_lea.vmem [#allocation7], 32
    %896 = vst [vmem:[%s895] sm:$0xff] %v892
    %v897 = vld [vmem:[#allocation2] sm:$0xff]
    %v898 = vld [vmem:[#allocation3] sm:$0xff]
    %s899 = scalar_lea.vmem %s0, 160
    %v900 = vld [vmem:[%s899] sm:$0xff]
    %v901 = vld [vmem:[%s899 + $0x8] sm:$0xff]
    %v902 = vld [vmem:[%s899 + $0x10] sm:$0xff]
    %v903 = vld [vmem:[%s899 + $0x18] sm:$0xff]
    %904 = vmatpush.msra.mxu0 %v105
    %905 = vmatpush.msra.mxu0 %v101
    %906 = vmatpush.msra.mxu0 %v97
    %907 = vmatpush.msra.mxu0 %v93
    %908 = vmatpush.msra.mxu0 %v89
    %909 = vmatpush.msra.mxu0 %v85
    %910 = vmatpush.msra.mxu0 %v81
    %911 = vmatpush.msra.mxu0 %v77
    %912 = vmatpush.msra.mxu0 %v73
    %913 = vmatpush.msra.mxu0 %v69
    %914 = vmatpush.msra.mxu0 %v65
    %915 = vmatpush.msra.mxu0 %v61
    %916 = vmatpush.msra.mxu0 %v57
    %917 = vmatpush.msra.mxu0 %v53
    %918 = vmatpush.msra.mxu0 %v49
    %919 = vmatpush.msra.mxu0 %v45
    %920 = vmatmul.f32.gmra.mxu0 %v897
    %v921 = vpop.f32.mrf.mxu0
    %v922 = vadd.f32 0.0, %v921
    %923 = vdwg.mxu0
    %924 = vmatpush.msra.mxu0 %v106
    %925 = vmatpush.msra.mxu0 %v102
    %926 = vmatpush.msra.mxu0 %v98
    %927 = vmatpush.msra.mxu0 %v94
    %928 = vmatpush.msra.mxu0 %v90
    %929 = vmatpush.msra.mxu0 %v86
    %930 = vmatpush.msra.mxu0 %v82
    %931 = vmatpush.msra.mxu0 %v78
    %932 = vmatpush.msra.mxu0 %v74
    %933 = vmatpush.msra.mxu0 %v70
    %934 = vmatpush.msra.mxu0 %v66
    %935 = vmatpush.msra.mxu0 %v62
    %936 = vmatpush.msra.mxu0 %v58
    %937 = vmatpush.msra.mxu0 %v54
    %938 = vmatpush.msra.mxu0 %v50
    %939 = vmatpush.msra.mxu0 %v46
    %940 = vmatmul.f32.gmra.mxu0 %v897
    %v941 = vpop.f32.mrf.mxu0
    %v942 = vadd.f32 0.0, %v941
    %943 = vdwg.mxu0
    %944 = vmatpush.msra.mxu0 %v107
    %945 = vmatpush.msra.mxu0 %v103
    %946 = vmatpush.msra.mxu0 %v99
    %947 = vmatpush.msra.mxu0 %v95
    %948 = vmatpush.msra.mxu0 %v91
    %949 = vmatpush.msra.mxu0 %v87
    %950 = vmatpush.msra.mxu0 %v83
    %951 = vmatpush.msra.mxu0 %v79
    %952 = vmatpush.msra.mxu0 %v75
    %953 = vmatpush.msra.mxu0 %v71
    %954 = vmatpush.msra.mxu0 %v67
    %955 = vmatpush.msra.mxu0 %v63
    %956 = vmatpush.msra.mxu0 %v59
    %957 = vmatpush.msra.mxu0 %v55
    %958 = vmatpush.msra.mxu0 %v51
    %959 = vmatpush.msra.mxu0 %v47
    %960 = vmatmul.f32.gmra.mxu0 %v897
    %v961 = vpop.f32.mrf.mxu0
    %v962 = vadd.f32 0.0, %v961
    %963 = vdwg.mxu0
    %964 = vmatpush.msra.mxu0 %v108
    %965 = vmatpush.msra.mxu0 %v104
    %966 = vmatpush.msra.mxu0 %v100
    %967 = vmatpush.msra.mxu0 %v96
    %968 = vmatpush.msra.mxu0 %v92
    %969 = vmatpush.msra.mxu0 %v88
    %970 = vmatpush.msra.mxu0 %v84
    %971 = vmatpush.msra.mxu0 %v80
    %972 = vmatpush.msra.mxu0 %v76
    %973 = vmatpush.msra.mxu0 %v72
    %974 = vmatpush.msra.mxu0 %v68
    %975 = vmatpush.msra.mxu0 %v64
    %976 = vmatpush.msra.mxu0 %v60
    %977 = vmatpush.msra.mxu0 %v56
    %978 = vmatpush.msra.mxu0 %v52
    %979 = vmatpush.msra.mxu0 %v48
    %980 = vmatmul.f32.gmra.mxu0 %v897
    %v981 = vpop.f32.mrf.mxu0
    %v982 = vadd.f32 0.0, %v981
    %983 = vdwg.mxu0
    %v984 = vadd.f32 %v900, %v922
    %v985 = vadd.f32 %v901, %v942
    %v986 = vadd.f32 %v902, %v962
    %v987 = vadd.f32 %v903, %v982
    %v988 = vxor.u32 %v984, 2147483648
    %v989 = vmul.f32 %v988, 1.442695
    %v990 = vpow.pop %v989
    %v991 = vadd.f32 %v990, 1.0
    %v992 = vrcp.pop %v991
    %v993 = vmul.f32 %v991, %v992
    %v994 = vsub.f32 1.0, %v993
    %v995 = vmul.f32 %v992, %v994
    %v996 = vadd.f32 %v992, %v995
    %vm997 = vweird.f32 %v991
    %vm998 = vweird.f32 %v992
    %vm999 = vmor %vm997, %vm998
    %v1000 = vsel %vm999, %v992, %v996
    %v1001 = vand.u32 2147483647, %v991
    %vm1002 = vcmp.eq.f32.partialorder %v1001, 8.507059e+37
    %v1003 = vand.u32 %v991, 2147483648
    %v1004 = vor.u32 1.1754944e-38, %v1003
    %v1005 = vsel %vm1002, %v1004, %v1000
    %v1006 = vmul.f32 1.0, %v1005
    %v1007 = vxor.u32 %v985, 2147483648
    %v1008 = vmul.f32 %v1007, 1.442695
    %v1009 = vpow.pop %v1008
    %v1010 = vadd.f32 %v1009, 1.0
    %v1011 = vrcp.pop %v1010
    %v1012 = vmul.f32 %v1010, %v1011
    %v1013 = vsub.f32 1.0, %v1012
    %v1014 = vmul.f32 %v1011, %v1013
    %v1015 = vadd.f32 %v1011, %v1014
    %vm1016 = vweird.f32 %v1010
    %vm1017 = vweird.f32 %v1011
    %vm1018 = vmor %vm1016, %vm1017
    %v1019 = vsel %vm1018, %v1011, %v1015
    %v1020 = vand.u32 2147483647, %v1010
    %vm1021 = vcmp.eq.f32.partialorder %v1020, 8.507059e+37
    %v1022 = vand.u32 %v1010, 2147483648
    %v1023 = vor.u32 1.1754944e-38, %v1022
    %v1024 = vsel %vm1021, %v1023, %v1019
    %v1025 = vmul.f32 1.0, %v1024
    %v1026 = vtanh.pop %v986
    %v1027 = vxor.u32 %v987, 2147483648
    %v1028 = vmul.f32 %v1027, 1.442695
    %v1029 = vpow.pop %v1028
    %v1030 = vadd.f32 %v1029, 1.0
    %v1031 = vrcp.pop %v1030
    %v1032 = vmul.f32 %v1030, %v1031
    %v1033 = vsub.f32 1.0, %v1032
    %v1034 = vmul.f32 %v1031, %v1033
    %v1035 = vadd.f32 %v1031, %v1034
    %vm1036 = vweird.f32 %v1030
    %vm1037 = vweird.f32 %v1031
    %vm1038 = vmor %vm1036, %vm1037
    %v1039 = vsel %vm1038, %v1031, %v1035
    %v1040 = vand.u32 2147483647, %v1030
    %vm1041 = vcmp.eq.f32.partialorder %v1040, 8.507059e+37
    %v1042 = vand.u32 %v1030, 2147483648
    %v1043 = vor.u32 1.1754944e-38, %v1042
    %v1044 = vsel %vm1041, %v1043, %v1039
    %v1045 = vmul.f32 1.0, %v1044
    %v1046 = vmul.f32 %v1025, %v898
    %v1047 = vmul.f32 %v1006, %v1026
    %v1048 = vadd.f32 %v1046, %v1047
    %v1049 = vtanh.pop %v1048
    %v1050 = vmul.f32 %v1045, %v1049
    %1051 = vst [vmem:[#allocation2] sm:$0xff] %v1050
    %1052 = vst [vmem:[#allocation3] sm:$0xff] %v1048
    %s1053 = scalar_lea.vmem [#allocation7], 40
    %1054 = vst [vmem:[%s1053] sm:$0xff] %v1050
    %v1055 = vld [vmem:[#allocation2] sm:$0xff]
    %v1056 = vld [vmem:[#allocation3] sm:$0xff]
    %s1057 = scalar_lea.vmem %s0, 192
    %v1058 = vld [vmem:[%s1057] sm:$0xff]
    %v1059 = vld [vmem:[%s1057 + $0x8] sm:$0xff]
    %v1060 = vld [vmem:[%s1057 + $0x10] sm:$0xff]
    %v1061 = vld [vmem:[%s1057 + $0x18] sm:$0xff]
    %1062 = vmatpush.msra.mxu0 %v105
    %1063 = vmatpush.msra.mxu0 %v101
    %1064 = vmatpush.msra.mxu0 %v97
    %1065 = vmatpush.msra.mxu0 %v93
    %1066 = vmatpush.msra.mxu0 %v89
    %1067 = vmatpush.msra.mxu0 %v85
    %1068 = vmatpush.msra.mxu0 %v81
    %1069 = vmatpush.msra.mxu0 %v77
    %1070 = vmatpush.msra.mxu0 %v73
    %1071 = vmatpush.msra.mxu0 %v69
    %1072 = vmatpush.msra.mxu0 %v65
    %1073 = vmatpush.msra.mxu0 %v61
    %1074 = vmatpush.msra.mxu0 %v57
    %1075 = vmatpush.msra.mxu0 %v53
    %1076 = vmatpush.msra.mxu0 %v49
    %1077 = vmatpush.msra.mxu0 %v45
    %1078 = vmatmul.f32.gmra.mxu0 %v1055
    %v1079 = vpop.f32.mrf.mxu0
    %v1080 = vadd.f32 0.0, %v1079
    %1081 = vdwg.mxu0
    %1082 = vmatpush.msra.mxu0 %v106
    %1083 = vmatpush.msra.mxu0 %v102
    %1084 = vmatpush.msra.mxu0 %v98
    %1085 = vmatpush.msra.mxu0 %v94
    %1086 = vmatpush.msra.mxu0 %v90
    %1087 = vmatpush.msra.mxu0 %v86
    %1088 = vmatpush.msra.mxu0 %v82
    %1089 = vmatpush.msra.mxu0 %v78
    %1090 = vmatpush.msra.mxu0 %v74
    %1091 = vmatpush.msra.mxu0 %v70
    %1092 = vmatpush.msra.mxu0 %v66
    %1093 = vmatpush.msra.mxu0 %v62
    %1094 = vmatpush.msra.mxu0 %v58
    %1095 = vmatpush.msra.mxu0 %v54
    %1096 = vmatpush.msra.mxu0 %v50
    %1097 = vmatpush.msra.mxu0 %v46
    %1098 = vmatmul.f32.gmra.mxu0 %v1055
    %v1099 = vpop.f32.mrf.mxu0
    %v1100 = vadd.f32 0.0, %v1099
    %1101 = vdwg.mxu0
    %1102 = vmatpush.msra.mxu0 %v107
    %1103 = vmatpush.msra.mxu0 %v103
    %1104 = vmatpush.msra.mxu0 %v99
    %1105 = vmatpush.msra.mxu0 %v95
    %1106 = vmatpush.msra.mxu0 %v91
    %1107 = vmatpush.msra.mxu0 %v87
    %1108 = vmatpush.msra.mxu0 %v83
    %1109 = vmatpush.msra.mxu0 %v79
    %1110 = vmatpush.msra.mxu0 %v75
    %1111 = vmatpush.msra.mxu0 %v71
    %1112 = vmatpush.msra.mxu0 %v67
    %1113 = vmatpush.msra.mxu0 %v63
    %1114 = vmatpush.msra.mxu0 %v59
    %1115 = vmatpush.msra.mxu0 %v55
    %1116 = vmatpush.msra.mxu0 %v51
    %1117 = vmatpush.msra.mxu0 %v47
    %1118 = vmatmul.f32.gmra.mxu0 %v1055
    %v1119 = vpop.f32.mrf.mxu0
    %v1120 = vadd.f32 0.0, %v1119
    %1121 = vdwg.mxu0
    %1122 = vmatpush.msra.mxu0 %v108
    %1123 = vmatpush.msra.mxu0 %v104
    %1124 = vmatpush.msra.mxu0 %v100
    %1125 = vmatpush.msra.mxu0 %v96
    %1126 = vmatpush.msra.mxu0 %v92
    %1127 = vmatpush.msra.mxu0 %v88
    %1128 = vmatpush.msra.mxu0 %v84
    %1129 = vmatpush.msra.mxu0 %v80
    %1130 = vmatpush.msra.mxu0 %v76
    %1131 = vmatpush.msra.mxu0 %v72
    %1132 = vmatpush.msra.mxu0 %v68
    %1133 = vmatpush.msra.mxu0 %v64
    %1134 = vmatpush.msra.mxu0 %v60
    %1135 = vmatpush.msra.mxu0 %v56
    %1136 = vmatpush.msra.mxu0 %v52
    %1137 = vmatpush.msra.mxu0 %v48
    %1138 = vmatmul.f32.gmra.mxu0 %v1055
    %v1139 = vpop.f32.mrf.mxu0
    %v1140 = vadd.f32 0.0, %v1139
    %1141 = vdwg.mxu0
    %v1142 = vadd.f32 %v1058, %v1080
    %v1143 = vadd.f32 %v1059, %v1100
    %v1144 = vadd.f32 %v1060, %v1120
    %v1145 = vadd.f32 %v1061, %v1140
    %v1146 = vxor.u32 %v1142, 2147483648
    %v1147 = vmul.f32 %v1146, 1.442695
    %v1148 = vpow.pop %v1147
    %v1149 = vadd.f32 %v1148, 1.0
    %v1150 = vrcp.pop %v1149
    %v1151 = vmul.f32 %v1149, %v1150
    %v1152 = vsub.f32 1.0, %v1151
    %v1153 = vmul.f32 %v1150, %v1152
    %v1154 = vadd.f32 %v1150, %v1153
    %vm1155 = vweird.f32 %v1149
    %vm1156 = vweird.f32 %v1150
    %vm1157 = vmor %vm1155, %vm1156
    %v1158 = vsel %vm1157, %v1150, %v1154
    %v1159 = vand.u32 2147483647, %v1149
    %vm1160 = vcmp.eq.f32.partialorder %v1159, 8.507059e+37
    %v1161 = vand.u32 %v1149, 2147483648
    %v1162 = vor.u32 1.1754944e-38, %v1161
    %v1163 = vsel %vm1160, %v1162, %v1158
    %v1164 = vmul.f32 1.0, %v1163
    %v1165 = vxor.u32 %v1143, 2147483648
    %v1166 = vmul.f32 %v1165, 1.442695
    %v1167 = vpow.pop %v1166
    %v1168 = vadd.f32 %v1167, 1.0
    %v1169 = vrcp.pop %v1168
    %v1170 = vmul.f32 %v1168, %v1169
    %v1171 = vsub.f32 1.0, %v1170
    %v1172 = vmul.f32 %v1169, %v1171
    %v1173 = vadd.f32 %v1169, %v1172
    %vm1174 = vweird.f32 %v1168
    %vm1175 = vweird.f32 %v1169
    %vm1176 = vmor %vm1174, %vm1175
    %v1177 = vsel %vm1176, %v1169, %v1173
    %v1178 = vand.u32 2147483647, %v1168
    %vm1179 = vcmp.eq.f32.partialorder %v1178, 8.507059e+37
    %v1180 = vand.u32 %v1168, 2147483648
    %v1181 = vor.u32 1.1754944e-38, %v1180
    %v1182 = vsel %vm1179, %v1181, %v1177
    %v1183 = vmul.f32 1.0, %v1182
    %v1184 = vtanh.pop %v1144
    %v1185 = vxor.u32 %v1145, 2147483648
    %v1186 = vmul.f32 %v1185, 1.442695
    %v1187 = vpow.pop %v1186
    %v1188 = vadd.f32 %v1187, 1.0
    %v1189 = vrcp.pop %v1188
    %v1190 = vmul.f32 %v1188, %v1189
    %v1191 = vsub.f32 1.0, %v1190
    %v1192 = vmul.f32 %v1189, %v1191
    %v1193 = vadd.f32 %v1189, %v1192
    %vm1194 = vweird.f32 %v1188
    %vm1195 = vweird.f32 %v1189
    %vm1196 = vmor %vm1194, %vm1195
    %v1197 = vsel %vm1196, %v1189, %v1193
    %v1198 = vand.u32 2147483647, %v1188
    %vm1199 = vcmp.eq.f32.partialorder %v1198, 8.507059e+37
    %v1200 = vand.u32 %v1188, 2147483648
    %v1201 = vor.u32 1.1754944e-38, %v1200
    %v1202 = vsel %vm1199, %v1201, %v1197
    %v1203 = vmul.f32 1.0, %v1202
    %v1204 = vmul.f32 %v1183, %v1056
    %v1205 = vmul.f32 %v1164, %v1184
    %v1206 = vadd.f32 %v1204, %v1205
    %v1207 = vtanh.pop %v1206
    %v1208 = vmul.f32 %v1203, %v1207
    %1209 = vst [vmem:[#allocation2] sm:$0xff] %v1208
    %1210 = vst [vmem:[#allocation3] sm:$0xff] %v1206
    %s1211 = scalar_lea.vmem [#allocation7], 48
    %1212 = vst [vmem:[%s1211] sm:$0xff] %v1208
    %v1213 = vld [vmem:[#allocation2] sm:$0xff]
    %v1214 = vld [vmem:[#allocation3] sm:$0xff]
    %s1215 = scalar_lea.vmem %s0, 224
    %v1216 = vld [vmem:[%s1215] sm:$0xff]
    %v1217 = vld [vmem:[%s1215 + $0x8] sm:$0xff]
    %v1218 = vld [vmem:[%s1215 + $0x10] sm:$0xff]
    %v1219 = vld [vmem:[%s1215 + $0x18] sm:$0xff]
    %1220 = vmatpush.msra.mxu0 %v105
    %1221 = vmatpush.msra.mxu0 %v101
    %1222 = vmatpush.msra.mxu0 %v97
    %1223 = vmatpush.msra.mxu0 %v93
    %1224 = vmatpush.msra.mxu0 %v89
    %1225 = vmatpush.msra.mxu0 %v85
    %1226 = vmatpush.msra.mxu0 %v81
    %1227 = vmatpush.msra.mxu0 %v77
    %1228 = vmatpush.msra.mxu0 %v73
    %1229 = vmatpush.msra.mxu0 %v69
    %1230 = vmatpush.msra.mxu0 %v65
    %1231 = vmatpush.msra.mxu0 %v61
    %1232 = vmatpush.msra.mxu0 %v57
    %1233 = vmatpush.msra.mxu0 %v53
    %1234 = vmatpush.msra.mxu0 %v49
    %1235 = vmatpush.msra.mxu0 %v45
    %1236 = vmatmul.f32.gmra.mxu0 %v1213
    %v1237 = vpop.f32.mrf.mxu0
    %v1238 = vadd.f32 0.0, %v1237
    %1239 = vdwg.mxu0
    %1240 = vmatpush.msra.mxu0 %v106
    %1241 = vmatpush.msra.mxu0 %v102
    %1242 = vmatpush.msra.mxu0 %v98
    %1243 = vmatpush.msra.mxu0 %v94
    %1244 = vmatpush.msra.mxu0 %v90
    %1245 = vmatpush.msra.mxu0 %v86
    %1246 = vmatpush.msra.mxu0 %v82
    %1247 = vmatpush.msra.mxu0 %v78
    %1248 = vmatpush.msra.mxu0 %v74
    %1249 = vmatpush.msra.mxu0 %v70
    %1250 = vmatpush.msra.mxu0 %v66
    %1251 = vmatpush.msra.mxu0 %v62
    %1252 = vmatpush.msra.mxu0 %v58
    %1253 = vmatpush.msra.mxu0 %v54
    %1254 = vmatpush.msra.mxu0 %v50
    %1255 = vmatpush.msra.mxu0 %v46
    %1256 = vmatmul.f32.gmra.mxu0 %v1213
    %v1257 = vpop.f32.mrf.mxu0
    %v1258 = vadd.f32 0.0, %v1257
    %1259 = vdwg.mxu0
    %1260 = vmatpush.msra.mxu0 %v107
    %1261 = vmatpush.msra.mxu0 %v103
    %1262 = vmatpush.msra.mxu0 %v99
    %1263 = vmatpush.msra.mxu0 %v95
    %1264 = vmatpush.msra.mxu0 %v91
    %1265 = vmatpush.msra.mxu0 %v87
    %1266 = vmatpush.msra.mxu0 %v83
    %1267 = vmatpush.msra.mxu0 %v79
    %1268 = vmatpush.msra.mxu0 %v75
    %1269 = vmatpush.msra.mxu0 %v71
    %1270 = vmatpush.msra.mxu0 %v67
    %1271 = vmatpush.msra.mxu0 %v63
    %1272 = vmatpush.msra.mxu0 %v59
    %1273 = vmatpush.msra.mxu0 %v55
    %1274 = vmatpush.msra.mxu0 %v51
    %1275 = vmatpush.msra.mxu0 %v47
    %1276 = vmatmul.f32.gmra.mxu0 %v1213
    %v1277 = vpop.f32.mrf.mxu0
    %v1278 = vadd.f32 0.0, %v1277
    %1279 = vdwg.mxu0
    %1280 = vmatpush.msra.mxu0 %v108
    %1281 = vmatpush.msra.mxu0 %v104
    %1282 = vmatpush.msra.mxu0 %v100
    %1283 = vmatpush.msra.mxu0 %v96
    %1284 = vmatpush.msra.mxu0 %v92
    %1285 = vmatpush.msra.mxu0 %v88
    %1286 = vmatpush.msra.mxu0 %v84
    %1287 = vmatpush.msra.mxu0 %v80
    %1288 = vmatpush.msra.mxu0 %v76
    %1289 = vmatpush.msra.mxu0 %v72
    %1290 = vmatpush.msra.mxu0 %v68
    %1291 = vmatpush.msra.mxu0 %v64
    %1292 = vmatpush.msra.mxu0 %v60
    %1293 = vmatpush.msra.mxu0 %v56
    %1294 = vmatpush.msra.mxu0 %v52
    %1295 = vmatpush.msra.mxu0 %v48
    %1296 = vmatmul.f32.gmra.mxu0 %v1213
    %v1297 = vpop.f32.mrf.mxu0
    %v1298 = vadd.f32 0.0, %v1297
    %1299 = vdwg.mxu0
    %v1300 = vadd.f32 %v1216, %v1238
    %v1301 = vadd.f32 %v1217, %v1258
    %v1302 = vadd.f32 %v1218, %v1278
    %v1303 = vadd.f32 %v1219, %v1298
    %v1304 = vxor.u32 %v1300, 2147483648
    %v1305 = vmul.f32 %v1304, 1.442695
    %v1306 = vpow.pop %v1305
    %v1307 = vadd.f32 %v1306, 1.0
    %v1308 = vrcp.pop %v1307
    %v1309 = vmul.f32 %v1307, %v1308
    %v1310 = vsub.f32 1.0, %v1309
    %v1311 = vmul.f32 %v1308, %v1310
    %v1312 = vadd.f32 %v1308, %v1311
    %vm1313 = vweird.f32 %v1307
    %vm1314 = vweird.f32 %v1308
    %vm1315 = vmor %vm1313, %vm1314
    %v1316 = vsel %vm1315, %v1308, %v1312
    %v1317 = vand.u32 2147483647, %v1307
    %vm1318 = vcmp.eq.f32.partialorder %v1317, 8.507059e+37
    %v1319 = vand.u32 %v1307, 2147483648
    %v1320 = vor.u32 1.1754944e-38, %v1319
    %v1321 = vsel %vm1318, %v1320, %v1316
    %v1322 = vmul.f32 1.0, %v1321
    %v1323 = vxor.u32 %v1301, 2147483648
    %v1324 = vmul.f32 %v1323, 1.442695
    %v1325 = vpow.pop %v1324
    %v1326 = vadd.f32 %v1325, 1.0
    %v1327 = vrcp.pop %v1326
    %v1328 = vmul.f32 %v1326, %v1327
    %v1329 = vsub.f32 1.0, %v1328
    %v1330 = vmul.f32 %v1327, %v1329
    %v1331 = vadd.f32 %v1327, %v1330
    %vm1332 = vweird.f32 %v1326
    %vm1333 = vweird.f32 %v1327
    %vm1334 = vmor %vm1332, %vm1333
    %v1335 = vsel %vm1334, %v1327, %v1331
    %v1336 = vand.u32 2147483647, %v1326
    %vm1337 = vcmp.eq.f32.partialorder %v1336, 8.507059e+37
    %v1338 = vand.u32 %v1326, 2147483648
    %v1339 = vor.u32 1.1754944e-38, %v1338
    %v1340 = vsel %vm1337, %v1339, %v1335
    %v1341 = vmul.f32 1.0, %v1340
    %v1342 = vtanh.pop %v1302
    %v1343 = vxor.u32 %v1303, 2147483648
    %v1344 = vmul.f32 %v1343, 1.442695
    %v1345 = vpow.pop %v1344
    %v1346 = vadd.f32 %v1345, 1.0
    %v1347 = vrcp.pop %v1346
    %v1348 = vmul.f32 %v1346, %v1347
    %v1349 = vsub.f32 1.0, %v1348
    %v1350 = vmul.f32 %v1347, %v1349
    %v1351 = vadd.f32 %v1347, %v1350
    %vm1352 = vweird.f32 %v1346
    %vm1353 = vweird.f32 %v1347
    %vm1354 = vmor %vm1352, %vm1353
    %v1355 = vsel %vm1354, %v1347, %v1351
    %v1356 = vand.u32 2147483647, %v1346
    %vm1357 = vcmp.eq.f32.partialorder %v1356, 8.507059e+37
    %v1358 = vand.u32 %v1346, 2147483648
    %v1359 = vor.u32 1.1754944e-38, %v1358
    %v1360 = vsel %vm1357, %v1359, %v1355
    %v1361 = vmul.f32 1.0, %v1360
    %v1362 = vmul.f32 %v1341, %v1214
    %v1363 = vmul.f32 %v1322, %v1342
    %v1364 = vadd.f32 %v1362, %v1363
    %v1365 = vtanh.pop %v1364
    %v1366 = vmul.f32 %v1361, %v1365
    %1367 = vst [vmem:[#allocation2] sm:$0xff] %v1366
    %1368 = vst [vmem:[#allocation3] sm:$0xff] %v1364
    %s1369 = scalar_lea.vmem [#allocation7], 56
    %1370 = vst [vmem:[%s1369] sm:$0xff] %v1366
    // Predicated region
    $region26: #{encoder_forward.7} parent=1 // pred_check
      %p1371 = pneg %p37
    $region27: #{encoder_forward.7} parent=1 // pred_check_branch
      %1373 = sbr.rel (%p1371) target = $region29
    $region28: #{encoder_forward.7} parent=1 // pred_region
      %v1374 = vld [vmem:[#allocation2] sm:$0xff]
      %1375 = vst [vmem:[%s5] sm:$0xff] %v1374
      %v1376 = vld [vmem:[#allocation3] sm:$0xff]
      %1377 = vst [vmem:[%s6] sm:$0xff] %v1376
    $region29: #{encoder_forward.7} parent=1 // pred_fallthru
      _
    // Predicated region
    $region30: #{encoder_forward.7} parent=1 // pred_check
      _
    $region31: #{encoder_forward.7} parent=1 // pred_check_branch
      %1379 = sbr.rel (0) target = $region33
    $region32: #{encoder_forward.7} parent=1 // pred_region
      %1381 = vsyncadd [#allocation6], 0
      %s1382 = sshll.u32 [#allocation7], 4
      %s1383 = int_to_ptr.vmem [resolvable:$true] %s1382
      %s1384 = sshll.u32 %s4, 4
      %s1385 = int_to_ptr.hbm [resolvable:$true] %s1384
      %1390 = dma.vmem_to_hbm [thread:$0]  %s1383, 1024, %s1385, [#allocation6], 128, 128, 8
    $region33: #{encoder_forward.7} parent=1 // pred_fallthru
      _
    // Predicated region
    $region34: #{encoder_forward.7} parent=1 // pred_check
      _
    $region35: #{encoder_forward.7} parent=1 // pred_check_branch
      %1392 = sbr.rel (0) target = $region37
    $region36: #{encoder_forward.7} parent=1 // pred_region
      _
    $region37: #{encoder_forward.7} parent=1 // pred_fallthru
      _
    // Predicated region
    $region38: #{encoder_forward.7} parent=1 // pred_check
      _
    $region39: #{encoder_forward.7} parent=1 // pred_check_branch
      %1394 = sbr.rel (0) target = $region41
    $region40: #{encoder_forward.7} parent=1 // pred_region
      _
    $region41: #{encoder_forward.7} parent=1 // pred_fallthru
      _
    // Predicated region
    $region42: #{encoder_forward.7} parent=1 // pred_check
      _
    $region43: #{encoder_forward.7} parent=1 // pred_check_branch
      %1396 = sbr.rel (0) target = $region45
    $region44: #{encoder_forward.7} parent=1 // pred_region
      %1398 = dma.done [#allocation6], 1024
    $region45: #{encoder_forward.7} parent=1 // pred_fallthru
      _
    // Predicated region
    $region46: #{encoder_forward.7} parent=1 // pred_check
      _
    $region47: #{encoder_forward.7} parent=1 // pred_check_branch
      %1400 = sbr.rel (0) target = $region49
    $region48: #{encoder_forward.7} parent=1 // pred_region
      _
    $region49: #{encoder_forward.7} parent=1 // pred_fallthru
      _
    // Predicated region
    $region50: #{encoder_forward.7} parent=1 // pred_check
      _
    $region51: #{encoder_forward.7} parent=1 // pred_check_branch
      %1402 = sbr.rel (0) target = $region53
    $region52: #{encoder_forward.7} parent=1 // pred_region
      _
    $region53: #{encoder_forward.7} parent=1 // pred_fallthru
      _
    %1403 = vsyncpa [#allocation5], 1
    %1404 = vsyncpa [#allocation6], 1

</llo_original>
